<compile_context>
chip_gen: v5e
topology: v5e:2x2
jax: 0.10.0
libtpu: 0.0.40
codegen_flags: <defaults>
</compile_context>

<pallas_src>
import random
from functools import partial

import jax
import jax.numpy as jnp
from jax.experimental import pallas as pl
from jax.experimental.pallas import tpu as pltpu

# ----------------------------- hyper-params ---------------------------------
INPUT_DIM = 24    # source vocab size
OUTPUT_DIM = 16   # target vocab size (decoder.output_dim)
ENC_EMB = 16
DEC_EMB = 16
HID = 32          # encoder.hid_dim == decoder.hid_dim
N_LAYERS = 2      # encoder.n_layers == decoder.n_layers
SRC_LEN = 6
TRG_LEN = 8
BATCH = 4

B_PAD = max(8, ((BATCH + 7) // 8) * 8)   # pad batch to full sublane tile
V_PAD = 128                               # pad vocab to full lane tile


# ------------------------------ fused kernel --------------------------------
def _make_kernel(tf_mask):
    """Build the fused seq2seq kernel for a static teacher-forcing mask."""
    trg_len = len(tf_mask)

    def kernel(src_ref,        # (SRC_LEN, B_PAD, HID) f32  encoder input embeddings
               trg_ref,        # (TRG_LEN, B_PAD, HID) f32  teacher-forced decoder embeddings
               demb_ref,       # (V_PAD, HID) f32           decoder embedding (feedback path)
               enc_w_ref,      # (L, 2H, 4H) f32            packed [W_x ; W_h] (g cols pre-scaled x2)
               enc_b_ref,      # (L, 1, 4H) f32             folded bias (g cols pre-scaled x2)
               dec_w_ref,      # (L, 2H, 4H) f32
               dec_b_ref,      # (L, 1, 4H) f32
               fc_w_ref,       # (HID, V_PAD) f32           padded cols = 0
               fc_b_ref,       # (1, V_PAD) f32             padded cols = -1e30
               out_ref):       # (TRG_LEN, B_PAD, V_PAD) f32
        B = src_ref.shape[1]
        H = HID
        V = out_ref.shape[-1]
        src_len = src_ref.shape[0]

        def lstm_stack(x, h, c, w_ref, b):
            """One time step through all layers; h/c/x are SSA values (vregs)."""
            inp = x
            new_h, new_c = [], []
            for l in range(N_LAYERS):                     # static unroll
                w = w_ref[l]                              # (2H, 4H) per-step vld
                # TODO(synk): fuse the two gate dots into one (B,2H)x(2H,4H)
                # matmul via lane-concat of [inp|h] (and/or hold the RHS across
                # steps with pltpu.matmul_push_rhs) once unaligned lane-concat
                # lowering is guaranteed on the target toolchain.
                gates = (jnp.dot(inp, w[:H, :], preferred_element_type=jnp.float32)
                         + jnp.dot(h[l], w[H:, :], preferred_element_type=jnp.float32)
                         + b[l])                          # (B, 4H)
                sig = jax.nn.sigmoid(gates)               # single EUP pass over the vreg
                i_g = sig[:, 0 * H:1 * H]
                f_g = sig[:, 1 * H:2 * H]
                g_g = 2.0 * sig[:, 2 * H:3 * H] - 1.0     # tanh(x) = 2*sigmoid(2x) - 1
                o_g = sig[:, 3 * H:4 * H]
                c_new = f_g * c[l] + i_g * g_g
                h_new = o_g * jnp.tanh(c_new)
                new_h.append(h_new)
                new_c.append(c_new)
                inp = h_new
            return inp, new_h, new_c

        # ------------------------------ encoder ------------------------------
        zero = jnp.zeros((B, H), jnp.float32)
        h = [zero] * N_LAYERS
        c = [zero] * N_LAYERS
        enc_b = [enc_b_ref[l] for l in range(N_LAYERS)]   # hoisted (1,4H) loads
        for t in range(src_len):                          # static unroll
            _, h, c = lstm_stack(src_ref[t], h, c, enc_w_ref, enc_b)

        # ------------------------------ decoder ------------------------------
        dec_b = [dec_b_ref[l] for l in range(N_LAYERS)]   # hoisted loop-invariants
        fc_w = fc_w_ref[...]
        fc_b = fc_b_ref[...]

        out_ref[0] = jnp.zeros((B, V), jnp.float32)       # outputs[0] stays zero
        x = trg_ref[0]                                    # first decoder input = emb(trg[0])
        for t in range(1, trg_len):                       # static unroll
            top, h, c = lstm_stack(x, h, c, dec_w_ref, dec_b)
            logits = jnp.dot(top, fc_w, preferred_element_type=jnp.float32) + fc_b
            out_ref[t] = logits                           # lane-dense (B, 128) store

            if t < trg_len - 1:                           # last step's feedback is unused
                if tf_mask[t]:                            # static: teacher-forced step
                    x = trg_ref[t]
                else:
                    # on-chip argmax (first-max tie-break) -> one-hot -> embedding
                    lane = jax.lax.broadcasted_iota(jnp.int32, (B, V), 1)
                    m = jnp.max(logits, axis=-1, keepdims=True)
                    cand = jnp.where(logits == m, lane, V)
                    top1 = jnp.min(cand, axis=-1, keepdims=True)    # (B, 1) int32
                    onehot = (lane == top1).astype(jnp.float32)     # (B, V_PAD)
                    x = jnp.dot(onehot, demb_ref[...],
                                preferred_element_type=jnp.float32)  # (B, H)

    return kernel


# ----------------------------- params & packing ------------------------------
def init_params(key):
    def nrm(k, shape, scale=0.1):
        return (scale * jax.random.normal(k, shape)).astype(jnp.float32)

    ks = iter(jax.random.split(key, 32))
    enc = {"emb": nrm(next(ks), (INPUT_DIM, ENC_EMB)), "wih": [], "whh": [], "b": []}
    for l in range(N_LAYERS):
        in_dim = ENC_EMB if l == 0 else HID
        enc["wih"].append(nrm(next(ks), (in_dim, 4 * HID)))
        enc["whh"].append(nrm(next(ks), (HID, 4 * HID)))
        enc["b"].append(nrm(next(ks), (1, 4 * HID)))     # folded b_ih + b_hh

    dec = {"emb": nrm(next(ks), (OUTPUT_DIM, DEC_EMB)),
           "wih": [], "whh": [], "b": [],
           "fc_w": nrm(next(ks), (HID, OUTPUT_DIM)),
           "fc_b": nrm(next(ks), (1, OUTPUT_DIM))}
    for l in range(N_LAYERS):
        in_dim = DEC_EMB if l == 0 else HID
        dec["wih"].append(nrm(next(ks), (in_dim, 4 * HID)))
        dec["whh"].append(nrm(next(ks), (HID, 4 * HID)))
        dec["b"].append(nrm(next(ks), (1, 4 * HID)))
    return enc, dec


def _pack_lstm(wih_list, whh_list, b_list):
    """Per layer: (2H,4H) block [W_x ; W_h]; layer-0 rows past its in_dim are 0.

    The candidate-gate (g) columns of both weights and bias are pre-scaled by 2
    so the kernel needs only ONE sigmoid EUP pass: tanh(x) = 2*sigmoid(2x) - 1.
    """
    ws, bs = [], []
    for l in range(N_LAYERS):
        w = jnp.zeros((2 * HID, 4 * HID), jnp.float32)
        w = w.at[: wih_list[l].shape[0], :].set(wih_list[l])
        w = w.at[HID:, :].set(whh_list[l])
        w = w.at[:, 2 * HID:3 * HID].multiply(2.0)
        b = b_list[l].at[:, 2 * HID:3 * HID].multiply(2.0)
        ws.append(w)
        bs.append(b)
    return jnp.stack(ws), jnp.stack(bs)                   # (L,2H,4H), (L,1,4H)


def pack_params(enc, dec):
    dec_emb_pad = jnp.zeros((V_PAD, HID), jnp.float32)
    dec_emb_pad = dec_emb_pad.at[:OUTPUT_DIM, :DEC_EMB].set(dec["emb"])
    fc_w_pad = jnp.zeros((HID, V_PAD), jnp.float32).at[:, :OUTPUT_DIM].set(dec["fc_w"])
    fc_b_pad = jnp.full((1, V_PAD), -1e30, jnp.float32).at[:, :OUTPUT_DIM].set(dec["fc_b"])
    enc_w, enc_b = _pack_lstm(enc["wih"], enc["whh"], enc["b"])
    dec_w, dec_b = _pack_lstm(dec["wih"], dec["whh"], dec["b"])
    return {
        "enc_emb": enc["emb"],
        "dec_emb": dec["emb"],
        "dec_emb_pad": dec_emb_pad,
        "enc_w": enc_w, "enc_b": enc_b,
        "dec_w": dec_w, "dec_b": dec_b,
        "fc_w": fc_w_pad, "fc_b": fc_b_pad,
    }


# ------------------------------ jitted wrapper -------------------------------
def _pad_axis(x, axis, target):
    pads = [(0, 0)] * x.ndim
    pads[axis] = (0, target - x.shape[axis])
    return jnp.pad(x, pads)


@partial(jax.jit, static_argnums=(2,))
def seq2seq_forward(src, trg, tf_mask, p):
    batch = src.shape[1]
    trg_len = trg.shape[0]
    assert len(tf_mask) == trg_len

    # Embedding lookups for the fixed token streams (teacher-forced inputs and
    # encoder inputs) happen once here; the argmax-feedback path is in-kernel.
    src_emb = jnp.take(p["enc_emb"], src, axis=0)        # (S, B, E)
    trg_emb = jnp.take(p["dec_emb"], trg, axis=0)        # (T, B, E)
    src_emb = _pad_axis(_pad_axis(src_emb, 1, B_PAD), 2, HID)
    trg_emb = _pad_axis(_pad_axis(trg_emb, 1, B_PAD), 2, HID)

    vmem = pl.BlockSpec(memory_space=pltpu.MemorySpace.VMEM)
    out_pad = pl.pallas_call(
        _make_kernel(tf_mask),
        out_shape=jax.ShapeDtypeStruct((trg_len, B_PAD, V_PAD), jnp.float32),
        in_specs=[vmem] * 9,
        out_specs=vmem,
    )(src_emb, trg_emb, p["dec_emb_pad"],
      p["enc_w"], p["enc_b"], p["dec_w"], p["dec_b"], p["fc_w"], p["fc_b"])

    return out_pad[:, :batch, :OUTPUT_DIM]               # (T, B, V)


# --------------------------- pure-JAX reference ------------------------------
def reference_forward(src, trg, tf_mask, enc, dec):
    def cell(x, h, c, wih, whh, b):
        g = x @ wih + h @ whh + b
        i = jax.nn.sigmoid(g[:, 0 * HID:1 * HID])
        f = jax.nn.sigmoid(g[:, 1 * HID:2 * HID])
        gg = jnp.tanh(g[:, 2 * HID:3 * HID])
        o = jax.nn.sigmoid(g[:, 3 * HID:4 * HID])
        c2 = f * c + i * gg
        return o * jnp.tanh(c2), c2

    batch = src.shape[1]
    h = [jnp.zeros((batch, HID), jnp.float32) for _ in range(N_LAYERS)]
    c = [jnp.zeros((batch, HID), jnp.float32) for _ in range(N_LAYERS)]
    src_emb = jnp.take(enc["emb"], src, axis=0)
    for t in range(src.shape[0]):
        x = src_emb[t]
        for l in range(N_LAYERS):
            h[l], c[l] = cell(x, h[l], c[l], enc["wih"][l], enc["whh"][l], enc["b"][l])
            x = h[l]

    outputs = [jnp.zeros((batch, OUTPUT_DIM), jnp.float32)]
    tok = trg[0]
    for t in range(1, trg.shape[0]):
        x = jnp.take(dec["emb"], tok, axis=0)
        for l in range(N_LAYERS):
            h[l], c[l] = cell(x, h[l], c[l], dec["wih"][l], dec["whh"][l], dec["b"][l])
            x = h[l]
        logits = x @ dec["fc_w"] + dec["fc_b"]
        outputs.append(logits)
        top1 = jnp.argmax(logits, axis=1).astype(trg.dtype)
        tok = trg[t] if tf_mask[t] else top1
    return jnp.stack(outputs, axis=0)


# --------------------------------- main --------------------------------------
if __name__ == "__main__":
    key = jax.random.PRNGKey(0)
    kp, ks, kt = jax.random.split(key, 3)
    enc_params, dec_params = init_params(kp)
    packed = pack_params(enc_params, dec_params)

    src = jax.random.randint(ks, (SRC_LEN, BATCH), 0, INPUT_DIM, dtype=jnp.int32)
    trg = jax.random.randint(kt, (TRG_LEN, BATCH), 0, OUTPUT_DIM, dtype=jnp.int32)

    # Teacher-forcing coin flips (`random.random() < rate` in the PyTorch loop),
    # hoisted to a static per-step mask so the forward is jittable and
    # teacher-forced steps skip the feedback compute entirely; entry 0 unused.
    random.seed(0)
    rate = 0.5
    tf_mask = tuple([0] + [int(random.random() < rate) for _ in range(1, TRG_LEN)])

    out = seq2seq_forward(src, trg, tf_mask, packed)
    out = jax.block_until_ready(out)

    assert out.shape == (TRG_LEN, BATCH, OUTPUT_DIM)
    assert bool(jnp.all(out[0] == 0.0))

    ref = reference_forward(src, trg, tf_mask, enc_params, dec_params)
    err = float(jnp.max(jnp.abs(out - ref)))
    assert err < 1e-3, f"kernel/reference mismatch: max abs err = {err}"

    print("KERNEL_OK")
</pallas_src>

<mosaic_0001>
module attributes {stable_mosaic.version = 11 : i64} {
  func.func @kernel(%arg0: memref<6x8x32xf32, #tpu.memory_space<vmem>>, %arg1: memref<8x8x32xf32, #tpu.memory_space<vmem>>, %arg2: memref<128x32xf32, #tpu.memory_space<vmem>>, %arg3: memref<2x64x128xf32, #tpu.memory_space<vmem>>, %arg4: memref<2x1x128xf32, #tpu.memory_space<vmem>>, %arg5: memref<2x64x128xf32, #tpu.memory_space<vmem>>, %arg6: memref<2x1x128xf32, #tpu.memory_space<vmem>>, %arg7: memref<32x128xf32, #tpu.memory_space<vmem>>, %arg8: memref<1x128xf32, #tpu.memory_space<vmem>>, %arg9: memref<8x8x128xf32, #tpu.memory_space<vmem>>) attributes {dimension_semantics = [], scalar_prefetch = 0 : i64, scratch_operands = 0 : i64, tpu.core_type = #tpu.core_type<tc>} {
    %cst = arith.constant 0.000000e+00 : f32
    %0 = vector.broadcast %cst : f32 to vector<8x32xf32>
    %c0 = arith.constant 0 : index
    %c0_0 = arith.constant 0 : index
    %c0_1 = arith.constant 0 : index
    %1 = vector.load %arg4[%c0, %c0_0, %c0_1] : memref<2x1x128xf32, #tpu.memory_space<vmem>>, vector<1x1x128xf32>
    %2 = vector.shape_cast %1 : vector<1x1x128xf32> to vector<1x128xf32>
    %c1 = arith.constant 1 : index
    %c0_2 = arith.constant 0 : index
    %c0_3 = arith.constant 0 : index
    %3 = vector.load %arg4[%c1, %c0_2, %c0_3] : memref<2x1x128xf32, #tpu.memory_space<vmem>>, vector<1x1x128xf32>
    %4 = vector.shape_cast %3 : vector<1x1x128xf32> to vector<1x128xf32>
    %c0_4 = arith.constant 0 : index
    %c0_5 = arith.constant 0 : index
    %c0_6 = arith.constant 0 : index
    %5 = vector.load %arg0[%c0_4, %c0_5, %c0_6] : memref<6x8x32xf32, #tpu.memory_space<vmem>>, vector<1x8x32xf32>
    %6 = vector.shape_cast %5 : vector<1x8x32xf32> to vector<8x32xf32>
    %c0_7 = arith.constant 0 : index
    %c0_8 = arith.constant 0 : index
    %c0_9 = arith.constant 0 : index
    %7 = vector.load %arg3[%c0_7, %c0_8, %c0_9] : memref<2x64x128xf32, #tpu.memory_space<vmem>>, vector<1x64x128xf32>
    %8 = vector.shape_cast %7 : vector<1x64x128xf32> to vector<64x128xf32>
    %9 = vector.extract_strided_slice %8 {offsets = [0, 0], sizes = [32, 128], strides = [1, 1]} : vector<64x128xf32> to vector<32x128xf32>
    %cst_10 = arith.constant dense<0.000000e+00> : vector<8x128xf32>
    %10 = tpu.matmul %6, %9, %cst_10 {dimension_numbers = #tpu.dot_dimension_numbers<[1], [0], [0], [1], [0, 0, 1, 1], [], []>} : vector<8x32xf32>, vector<32x128xf32>, vector<8x128xf32> -> vector<8x128xf32>
    %11 = vector.extract_strided_slice %8 {offsets = [32, 0], sizes = [32, 128], strides = [1, 1]} : vector<64x128xf32> to vector<32x128xf32>
    %cst_11 = arith.constant dense<0.000000e+00> : vector<8x128xf32>
    %12 = tpu.matmul %0, %11, %cst_11 {dimension_numbers = #tpu.dot_dimension_numbers<[1], [0], [0], [1], [0, 0, 1, 1], [], []>} : vector<8x32xf32>, vector<32x128xf32>, vector<8x128xf32> -> vector<8x128xf32>
    %13 = arith.addf %10, %12 : vector<8x128xf32>
    %14 = vector.broadcast %2 : vector<1x128xf32> to vector<8x128xf32>
    %15 = arith.addf %13, %14 : vector<8x128xf32>
    %16 = arith.negf %15 : vector<8x128xf32>
    %17 = math.exp %16 : vector<8x128xf32>
    %cst_12 = arith.constant 1.000000e+00 : f32
    %18 = vector.broadcast %cst_12 : f32 to vector<8x128xf32>
    %19 = arith.addf %18, %17 : vector<8x128xf32>
    %20 = arith.divf %18, %19 : vector<8x128xf32>
    %21 = vector.extract_strided_slice %20 {offsets = [0, 0], sizes = [8, 32], strides = [1, 1]} : vector<8x128xf32> to vector<8x32xf32>
    %22 = vector.extract_strided_slice %20 {offsets = [0, 32], sizes = [8, 32], strides = [1, 1]} : vector<8x128xf32> to vector<8x32xf32>
    %23 = vector.extract_strided_slice %20 {offsets = [0, 64], sizes = [8, 32], strides = [1, 1]} : vector<8x128xf32> to vector<8x32xf32>
    %cst_13 = arith.constant 2.000000e+00 : f32
    %24 = vector.broadcast %cst_13 : f32 to vector<8x32xf32>
    %25 = arith.mulf %24, %23 : vector<8x32xf32>
    %cst_14 = arith.constant 1.000000e+00 : f32
    %26 = vector.broadcast %cst_14 : f32 to vector<8x32xf32>
    %27 = arith.subf %25, %26 : vector<8x32xf32>
    %28 = vector.extract_strided_slice %20 {offsets = [0, 96], sizes = [8, 32], strides = [1, 1]} : vector<8x128xf32> to vector<8x32xf32>
    %29 = arith.mulf %22, %0 : vector<8x32xf32>
    %30 = arith.mulf %21, %27 : vector<8x32xf32>
    %31 = arith.addf %29, %30 : vector<8x32xf32>
    %32 = math.tanh %31 : vector<8x32xf32>
    %33 = arith.mulf %28, %32 : vector<8x32xf32>
    %c1_15 = arith.constant 1 : index
    %c0_16 = arith.constant 0 : index
    %c0_17 = arith.constant 0 : index
    %34 = vector.load %arg3[%c1_15, %c0_16, %c0_17] : memref<2x64x128xf32, #tpu.memory_space<vmem>>, vector<1x64x128xf32>
    %35 = vector.shape_cast %34 : vector<1x64x128xf32> to vector<64x128xf32>
    %36 = vector.extract_strided_slice %35 {offsets = [0, 0], sizes = [32, 128], strides = [1, 1]} : vector<64x128xf32> to vector<32x128xf32>
    %cst_18 = arith.constant dense<0.000000e+00> : vector<8x128xf32>
    %37 = tpu.matmul %33, %36, %cst_18 {dimension_numbers = #tpu.dot_dimension_numbers<[1], [0], [0], [1], [0, 0, 1, 1], [], []>} : vector<8x32xf32>, vector<32x128xf32>, vector<8x128xf32> -> vector<8x128xf32>
    %38 = vector.extract_strided_slice %35 {offsets = [32, 0], sizes = [32, 128], strides = [1, 1]} : vector<64x128xf32> to vector<32x128xf32>
    %cst_19 = arith.constant dense<0.000000e+00> : vector<8x128xf32>
    %39 = tpu.matmul %0, %38, %cst_19 {dimension_numbers = #tpu.dot_dimension_numbers<[1], [0], [0], [1], [0, 0, 1, 1], [], []>} : vector<8x32xf32>, vector<32x128xf32>, vector<8x128xf32> -> vector<8x128xf32>
    %40 = arith.addf %37, %39 : vector<8x128xf32>
    %41 = vector.broadcast %4 : vector<1x128xf32> to vector<8x128xf32>
    %42 = arith.addf %40, %41 : vector<8x128xf32>
    %43 = arith.negf %42 : vector<8x128xf32>
    %44 = math.exp %43 : vector<8x128xf32>
    %cst_20 = arith.constant 1.000000e+00 : f32
    %45 = vector.broadcast %cst_20 : f32 to vector<8x128xf32>
    %46 = arith.addf %45, %44 : vector<8x128xf32>
    %47 = arith.divf %45, %46 : vector<8x128xf32>
    %48 = vector.extract_strided_slice %47 {offsets = [0, 0], sizes = [8, 32], strides = [1, 1]} : vector<8x128xf32> to vector<8x32xf32>
    %49 = vector.extract_strided_slice %47 {offsets = [0, 32], sizes = [8, 32], strides = [1, 1]} : vector<8x128xf32> to vector<8x32xf32>
    %50 = vector.extract_strided_slice %47 {offsets = [0, 64], sizes = [8, 32], strides = [1, 1]} : vector<8x128xf32> to vector<8x32xf32>
    %cst_21 = arith.constant 2.000000e+00 : f32
    %51 = vector.broadcast %cst_21 : f32 to vector<8x32xf32>
    %52 = arith.mulf %51, %50 : vector<8x32xf32>
    %cst_22 = arith.constant 1.000000e+00 : f32
    %53 = vector.broadcast %cst_22 : f32 to vector<8x32xf32>
    %54 = arith.subf %52, %53 : vector<8x32xf32>
    %55 = vector.extract_strided_slice %47 {offsets = [0, 96], sizes = [8, 32], strides = [1, 1]} : vector<8x128xf32> to vector<8x32xf32>
    %56 = arith.mulf %49, %0 : vector<8x32xf32>
    %57 = arith.mulf %48, %54 : vector<8x32xf32>
    %58 = arith.addf %56, %57 : vector<8x32xf32>
    %59 = math.tanh %58 : vector<8x32xf32>
    %60 = arith.mulf %55, %59 : vector<8x32xf32>
    %c1_23 = arith.constant 1 : index
    %c0_24 = arith.constant 0 : index
    %c0_25 = arith.constant 0 : index
    %61 = vector.load %arg0[%c1_23, %c0_24, %c0_25] : memref<6x8x32xf32, #tpu.memory_space<vmem>>, vector<1x8x32xf32>
    %62 = vector.shape_cast %61 : vector<1x8x32xf32> to vector<8x32xf32>
    %c0_26 = arith.constant 0 : index
    %c0_27 = arith.constant 0 : index
    %c0_28 = arith.constant 0 : index
    %63 = vector.load %arg3[%c0_26, %c0_27, %c0_28] : memref<2x64x128xf32, #tpu.memory_space<vmem>>, vector<1x64x128xf32>
    %64 = vector.shape_cast %63 : vector<1x64x128xf32> to vector<64x128xf32>
    %65 = vector.extract_strided_slice %64 {offsets = [0, 0], sizes = [32, 128], strides = [1, 1]} : vector<64x128xf32> to vector<32x128xf32>
    %cst_29 = arith.constant dense<0.000000e+00> : vector<8x128xf32>
    %66 = tpu.matmul %62, %65, %cst_29 {dimension_numbers = #tpu.dot_dimension_numbers<[1], [0], [0], [1], [0, 0, 1, 1], [], []>} : vector<8x32xf32>, vector<32x128xf32>, vector<8x128xf32> -> vector<8x128xf32>
    %67 = vector.extract_strided_slice %64 {offsets = [32, 0], sizes = [32, 128], strides = [1, 1]} : vector<64x128xf32> to vector<32x128xf32>
    %cst_30 = arith.constant dense<0.000000e+00> : vector<8x128xf32>
    %68 = tpu.matmul %33, %67, %cst_30 {dimension_numbers = #tpu.dot_dimension_numbers<[1], [0], [0], [1], [0, 0, 1, 1], [], []>} : vector<8x32xf32>, vector<32x128xf32>, vector<8x128xf32> -> vector<8x128xf32>
    %69 = arith.addf %66, %68 : vector<8x128xf32>
    %70 = vector.broadcast %2 : vector<1x128xf32> to vector<8x128xf32>
    %71 = arith.addf %69, %70 : vector<8x128xf32>
    %72 = arith.negf %71 : vector<8x128xf32>
    %73 = math.exp %72 : vector<8x128xf32>
    %cst_31 = arith.constant 1.000000e+00 : f32
    %74 = vector.broadcast %cst_31 : f32 to vector<8x128xf32>
    %75 = arith.addf %74, %73 : vector<8x128xf32>
    %76 = arith.divf %74, %75 : vector<8x128xf32>
    %77 = vector.extract_strided_slice %76 {offsets = [0, 0], sizes = [8, 32], strides = [1, 1]} : vector<8x128xf32> to vector<8x32xf32>
    %78 = vector.extract_strided_slice %76 {offsets = [0, 32], sizes = [8, 32], strides = [1, 1]} : vector<8x128xf32> to vector<8x32xf32>
    %79 = vector.extract_strided_slice %76 {offsets = [0, 64], sizes = [8, 32], strides = [1, 1]} : vector<8x128xf32> to vector<8x32xf32>
    %cst_32 = arith.constant 2.000000e+00 : f32
    %80 = vector.broadcast %cst_32 : f32 to vector<8x32xf32>
    %81 = arith.mulf %80, %79 : vector<8x32xf32>
    %cst_33 = arith.constant 1.000000e+00 : f32
    %82 = vector.broadcast %cst_33 : f32 to vector<8x32xf32>
    %83 = arith.subf %81, %82 : vector<8x32xf32>
    %84 = vector.extract_strided_slice %76 {offsets = [0, 96], sizes = [8, 32], strides = [1, 1]} : vector<8x128xf32> to vector<8x32xf32>
    %85 = arith.mulf %78, %31 : vector<8x32xf32>
    %86 = arith.mulf %77, %83 : vector<8x32xf32>
    %87 = arith.addf %85, %86 : vector<8x32xf32>
    %88 = math.tanh %87 : vector<8x32xf32>
    %89 = arith.mulf %84, %88 : vector<8x32xf32>
    %c1_34 = arith.constant 1 : index
    %c0_35 = arith.constant 0 : index
    %c0_36 = arith.constant 0 : index
    %90 = vector.load %arg3[%c1_34, %c0_35, %c0_36] : memref<2x64x128xf32, #tpu.memory_space<vmem>>, vector<1x64x128xf32>
    %91 = vector.shape_cast %90 : vector<1x64x128xf32> to vector<64x128xf32>
    %92 = vector.extract_strided_slice %91 {offsets = [0, 0], sizes = [32, 128], strides = [1, 1]} : vector<64x128xf32> to vector<32x128xf32>
    %cst_37 = arith.constant dense<0.000000e+00> : vector<8x128xf32>
    %93 = tpu.matmul %89, %92, %cst_37 {dimension_numbers = #tpu.dot_dimension_numbers<[1], [0], [0], [1], [0, 0, 1, 1], [], []>} : vector<8x32xf32>, vector<32x128xf32>, vector<8x128xf32> -> vector<8x128xf32>
    %94 = vector.extract_strided_slice %91 {offsets = [32, 0], sizes = [32, 128], strides = [1, 1]} : vector<64x128xf32> to vector<32x128xf32>
    %cst_38 = arith.constant dense<0.000000e+00> : vector<8x128xf32>
    %95 = tpu.matmul %60, %94, %cst_38 {dimension_numbers = #tpu.dot_dimension_numbers<[1], [0], [0], [1], [0, 0, 1, 1], [], []>} : vector<8x32xf32>, vector<32x128xf32>, vector<8x128xf32> -> vector<8x128xf32>
    %96 = arith.addf %93, %95 : vector<8x128xf32>
    %97 = vector.broadcast %4 : vector<1x128xf32> to vector<8x128xf32>
    %98 = arith.addf %96, %97 : vector<8x128xf32>
    %99 = arith.negf %98 : vector<8x128xf32>
    %100 = math.exp %99 : vector<8x128xf32>
    %cst_39 = arith.constant 1.000000e+00 : f32
    %101 = vector.broadcast %cst_39 : f32 to vector<8x128xf32>
    %102 = arith.addf %101, %100 : vector<8x128xf32>
    %103 = arith.divf %101, %102 : vector<8x128xf32>
    %104 = vector.extract_strided_slice %103 {offsets = [0, 0], sizes = [8, 32], strides = [1, 1]} : vector<8x128xf32> to vector<8x32xf32>
    %105 = vector.extract_strided_slice %103 {offsets = [0, 32], sizes = [8, 32], strides = [1, 1]} : vector<8x128xf32> to vector<8x32xf32>
    %106 = vector.extract_strided_slice %103 {offsets = [0, 64], sizes = [8, 32], strides = [1, 1]} : vector<8x128xf32> to vector<8x32xf32>
    %cst_40 = arith.constant 2.000000e+00 : f32
    %107 = vector.broadcast %cst_40 : f32 to vector<8x32xf32>
    %108 = arith.mulf %107, %106 : vector<8x32xf32>
    %cst_41 = arith.constant 1.000000e+00 : f32
    %109 = vector.broadcast %cst_41 : f32 to vector<8x32xf32>
    %110 = arith.subf %108, %109 : vector<8x32xf32>
    %111 = vector.extract_strided_slice %103 {offsets = [0, 96], sizes = [8, 32], strides = [1, 1]} : vector<8x128xf32> to vector<8x32xf32>
    %112 = arith.mulf %105, %58 : vector<8x32xf32>
    %113 = arith.mulf %104, %110 : vector<8x32xf32>
    %114 = arith.addf %112, %113 : vector<8x32xf32>
    %115 = math.tanh %114 : vector<8x32xf32>
    %116 = arith.mulf %111, %115 : vector<8x32xf32>
    %c2 = arith.constant 2 : index
    %c0_42 = arith.constant 0 : index
    %c0_43 = arith.constant 0 : index
    %117 = vector.load %arg0[%c2, %c0_42, %c0_43] : memref<6x8x32xf32, #tpu.memory_space<vmem>>, vector<1x8x32xf32>
    %118 = vector.shape_cast %117 : vector<1x8x32xf32> to vector<8x32xf32>
    %c0_44 = arith.constant 0 : index
    %c0_45 = arith.constant 0 : index
    %c0_46 = arith.constant 0 : index
    %119 = vector.load %arg3[%c0_44, %c0_45, %c0_46] : memref<2x64x128xf32, #tpu.memory_space<vmem>>, vector<1x64x128xf32>
    %120 = vector.shape_cast %119 : vector<1x64x128xf32> to vector<64x128xf32>
    %121 = vector.extract_strided_slice %120 {offsets = [0, 0], sizes = [32, 128], strides = [1, 1]} : vector<64x128xf32> to vector<32x128xf32>
    %cst_47 = arith.constant dense<0.000000e+00> : vector<8x128xf32>
    %122 = tpu.matmul %118, %121, %cst_47 {dimension_numbers = #tpu.dot_dimension_numbers<[1], [0], [0], [1], [0, 0, 1, 1], [], []>} : vector<8x32xf32>, vector<32x128xf32>, vector<8x128xf32> -> vector<8x128xf32>
    %123 = vector.extract_strided_slice %120 {offsets = [32, 0], sizes = [32, 128], strides = [1, 1]} : vector<64x128xf32> to vector<32x128xf32>
    %cst_48 = arith.constant dense<0.000000e+00> : vector<8x128xf32>
    %124 = tpu.matmul %89, %123, %cst_48 {dimension_numbers = #tpu.dot_dimension_numbers<[1], [0], [0], [1], [0, 0, 1, 1], [], []>} : vector<8x32xf32>, vector<32x128xf32>, vector<8x128xf32> -> vector<8x128xf32>
    %125 = arith.addf %122, %124 : vector<8x128xf32>
    %126 = vector.broadcast %2 : vector<1x128xf32> to vector<8x128xf32>
    %127 = arith.addf %125, %126 : vector<8x128xf32>
    %128 = arith.negf %127 : vector<8x128xf32>
    %129 = math.exp %128 : vector<8x128xf32>
    %cst_49 = arith.constant 1.000000e+00 : f32
    %130 = vector.broadcast %cst_49 : f32 to vector<8x128xf32>
    %131 = arith.addf %130, %129 : vector<8x128xf32>
    %132 = arith.divf %130, %131 : vector<8x128xf32>
    %133 = vector.extract_strided_slice %132 {offsets = [0, 0], sizes = [8, 32], strides = [1, 1]} : vector<8x128xf32> to vector<8x32xf32>
    %134 = vector.extract_strided_slice %132 {offsets = [0, 32], sizes = [8, 32], strides = [1, 1]} : vector<8x128xf32> to vector<8x32xf32>
    %135 = vector.extract_strided_slice %132 {offsets = [0, 64], sizes = [8, 32], strides = [1, 1]} : vector<8x128xf32> to vector<8x32xf32>
    %cst_50 = arith.constant 2.000000e+00 : f32
    %136 = vector.broadcast %cst_50 : f32 to vector<8x32xf32>
    %137 = arith.mulf %136, %135 : vector<8x32xf32>
    %cst_51 = arith.constant 1.000000e+00 : f32
    %138 = vector.broadcast %cst_51 : f32 to vector<8x32xf32>
    %139 = arith.subf %137, %138 : vector<8x32xf32>
    %140 = vector.extract_strided_slice %132 {offsets = [0, 96], sizes = [8, 32], strides = [1, 1]} : vector<8x128xf32> to vector<8x32xf32>
    %141 = arith.mulf %134, %87 : vector<8x32xf32>
    %142 = arith.mulf %133, %139 : vector<8x32xf32>
    %143 = arith.addf %141, %142 : vector<8x32xf32>
    %144 = math.tanh %143 : vector<8x32xf32>
    %145 = arith.mulf %140, %144 : vector<8x32xf32>
    %c1_52 = arith.constant 1 : index
    %c0_53 = arith.constant 0 : index
    %c0_54 = arith.constant 0 : index
    %146 = vector.load %arg3[%c1_52, %c0_53, %c0_54] : memref<2x64x128xf32, #tpu.memory_space<vmem>>, vector<1x64x128xf32>
    %147 = vector.shape_cast %146 : vector<1x64x128xf32> to vector<64x128xf32>
    %148 = vector.extract_strided_slice %147 {offsets = [0, 0], sizes = [32, 128], strides = [1, 1]} : vector<64x128xf32> to vector<32x128xf32>
    %cst_55 = arith.constant dense<0.000000e+00> : vector<8x128xf32>
    %149 = tpu.matmul %145, %148, %cst_55 {dimension_numbers = #tpu.dot_dimension_numbers<[1], [0], [0], [1], [0, 0, 1, 1], [], []>} : vector<8x32xf32>, vector<32x128xf32>, vector<8x128xf32> -> vector<8x128xf32>
    %150 = vector.extract_strided_slice %147 {offsets = [32, 0], sizes = [32, 128], strides = [1, 1]} : vector<64x128xf32> to vector<32x128xf32>
    %cst_56 = arith.constant dense<0.000000e+00> : vector<8x128xf32>
    %151 = tpu.matmul %116, %150, %cst_56 {dimension_numbers = #tpu.dot_dimension_numbers<[1], [0], [0], [1], [0, 0, 1, 1], [], []>} : vector<8x32xf32>, vector<32x128xf32>, vector<8x128xf32> -> vector<8x128xf32>
    %152 = arith.addf %149, %151 : vector<8x128xf32>
    %153 = vector.broadcast %4 : vector<1x128xf32> to vector<8x128xf32>
    %154 = arith.addf %152, %153 : vector<8x128xf32>
    %155 = arith.negf %154 : vector<8x128xf32>
    %156 = math.exp %155 : vector<8x128xf32>
    %cst_57 = arith.constant 1.000000e+00 : f32
    %157 = vector.broadcast %cst_57 : f32 to vector<8x128xf32>
    %158 = arith.addf %157, %156 : vector<8x128xf32>
    %159 = arith.divf %157, %158 : vector<8x128xf32>
    %160 = vector.extract_strided_slice %159 {offsets = [0, 0], sizes = [8, 32], strides = [1, 1]} : vector<8x128xf32> to vector<8x32xf32>
    %161 = vector.extract_strided_slice %159 {offsets = [0, 32], sizes = [8, 32], strides = [1, 1]} : vector<8x128xf32> to vector<8x32xf32>
    %162 = vector.extract_strided_slice %159 {offsets = [0, 64], sizes = [8, 32], strides = [1, 1]} : vector<8x128xf32> to vector<8x32xf32>
    %cst_58 = arith.constant 2.000000e+00 : f32
    %163 = vector.broadcast %cst_58 : f32 to vector<8x32xf32>
    %164 = arith.mulf %163, %162 : vector<8x32xf32>
    %cst_59 = arith.constant 1.000000e+00 : f32
    %165 = vector.broadcast %cst_59 : f32 to vector<8x32xf32>
    %166 = arith.subf %164, %165 : vector<8x32xf32>
    %167 = vector.extract_strided_slice %159 {offsets = [0, 96], sizes = [8, 32], strides = [1, 1]} : vector<8x128xf32> to vector<8x32xf32>
    %168 = arith.mulf %161, %114 : vector<8x32xf32>
    %169 = arith.mulf %160, %166 : vector<8x32xf32>
    %170 = arith.addf %168, %169 : vector<8x32xf32>
    %171 = math.tanh %170 : vector<8x32xf32>
    %172 = arith.mulf %167, %171 : vector<8x32xf32>
    %c3 = arith.constant 3 : index
    %c0_60 = arith.constant 0 : index
    %c0_61 = arith.constant 0 : index
    %173 = vector.load %arg0[%c3, %c0_60, %c0_61] : memref<6x8x32xf32, #tpu.memory_space<vmem>>, vector<1x8x32xf32>
    %174 = vector.shape_cast %173 : vector<1x8x32xf32> to vector<8x32xf32>
    %c0_62 = arith.constant 0 : index
    %c0_63 = arith.constant 0 : index
    %c0_64 = arith.constant 0 : index
    %175 = vector.load %arg3[%c0_62, %c0_63, %c0_64] : memref<2x64x128xf32, #tpu.memory_space<vmem>>, vector<1x64x128xf32>
    %176 = vector.shape_cast %175 : vector<1x64x128xf32> to vector<64x128xf32>
    %177 = vector.extract_strided_slice %176 {offsets = [0, 0], sizes = [32, 128], strides = [1, 1]} : vector<64x128xf32> to vector<32x128xf32>
    %cst_65 = arith.constant dense<0.000000e+00> : vector<8x128xf32>
    %178 = tpu.matmul %174, %177, %cst_65 {dimension_numbers = #tpu.dot_dimension_numbers<[1], [0], [0], [1], [0, 0, 1, 1], [], []>} : vector<8x32xf32>, vector<32x128xf32>, vector<8x128xf32> -> vector<8x128xf32>
    %179 = vector.extract_strided_slice %176 {offsets = [32, 0], sizes = [32, 128], strides = [1, 1]} : vector<64x128xf32> to vector<32x128xf32>
    %cst_66 = arith.constant dense<0.000000e+00> : vector<8x128xf32>
    %180 = tpu.matmul %145, %179, %cst_66 {dimension_numbers = #tpu.dot_dimension_numbers<[1], [0], [0], [1], [0, 0, 1, 1], [], []>} : vector<8x32xf32>, vector<32x128xf32>, vector<8x128xf32> -> vector<8x128xf32>
    %181 = arith.addf %178, %180 : vector<8x128xf32>
    %182 = vector.broadcast %2 : vector<1x128xf32> to vector<8x128xf32>
    %183 = arith.addf %181, %182 : vector<8x128xf32>
    %184 = arith.negf %183 : vector<8x128xf32>
    %185 = math.exp %184 : vector<8x128xf32>
    %cst_67 = arith.constant 1.000000e+00 : f32
    %186 = vector.broadcast %cst_67 : f32 to vector<8x128xf32>
    %187 = arith.addf %186, %185 : vector<8x128xf32>
    %188 = arith.divf %186, %187 : vector<8x128xf32>
    %189 = vector.extract_strided_slice %188 {offsets = [0, 0], sizes = [8, 32], strides = [1, 1]} : vector<8x128xf32> to vector<8x32xf32>
    %190 = vector.extract_strided_slice %188 {offsets = [0, 32], sizes = [8, 32], strides = [1, 1]} : vector<8x128xf32> to vector<8x32xf32>
    %191 = vector.extract_strided_slice %188 {offsets = [0, 64], sizes = [8, 32], strides = [1, 1]} : vector<8x128xf32> to vector<8x32xf32>
    %cst_68 = arith.constant 2.000000e+00 : f32
    %192 = vector.broadcast %cst_68 : f32 to vector<8x32xf32>
    %193 = arith.mulf %192, %191 : vector<8x32xf32>
    %cst_69 = arith.constant 1.000000e+00 : f32
    %194 = vector.broadcast %cst_69 : f32 to vector<8x32xf32>
    %195 = arith.subf %193, %194 : vector<8x32xf32>
    %196 = vector.extract_strided_slice %188 {offsets = [0, 96], sizes = [8, 32], strides = [1, 1]} : vector<8x128xf32> to vector<8x32xf32>
    %197 = arith.mulf %190, %143 : vector<8x32xf32>
    %198 = arith.mulf %189, %195 : vector<8x32xf32>
    %199 = arith.addf %197, %198 : vector<8x32xf32>
    %200 = math.tanh %199 : vector<8x32xf32>
    %201 = arith.mulf %196, %200 : vector<8x32xf32>
    %c1_70 = arith.constant 1 : index
    %c0_71 = arith.constant 0 : index
    %c0_72 = arith.constant 0 : index
    %202 = vector.load %arg3[%c1_70, %c0_71, %c0_72] : memref<2x64x128xf32, #tpu.memory_space<vmem>>, vector<1x64x128xf32>
    %203 = vector.shape_cast %202 : vector<1x64x128xf32> to vector<64x128xf32>
    %204 = vector.extract_strided_slice %203 {offsets = [0, 0], sizes = [32, 128], strides = [1, 1]} : vector<64x128xf32> to vector<32x128xf32>
    %cst_73 = arith.constant dense<0.000000e+00> : vector<8x128xf32>
    %205 = tpu.matmul %201, %204, %cst_73 {dimension_numbers = #tpu.dot_dimension_numbers<[1], [0], [0], [1], [0, 0, 1, 1], [], []>} : vector<8x32xf32>, vector<32x128xf32>, vector<8x128xf32> -> vector<8x128xf32>
    %206 = vector.extract_strided_slice %203 {offsets = [32, 0], sizes = [32, 128], strides = [1, 1]} : vector<64x128xf32> to vector<32x128xf32>
    %cst_74 = arith.constant dense<0.000000e+00> : vector<8x128xf32>
    %207 = tpu.matmul %172, %206, %cst_74 {dimension_numbers = #tpu.dot_dimension_numbers<[1], [0], [0], [1], [0, 0, 1, 1], [], []>} : vector<8x32xf32>, vector<32x128xf32>, vector<8x128xf32> -> vector<8x128xf32>
    %208 = arith.addf %205, %207 : vector<8x128xf32>
    %209 = vector.broadcast %4 : vector<1x128xf32> to vector<8x128xf32>
    %210 = arith.addf %208, %209 : vector<8x128xf32>
    %211 = arith.negf %210 : vector<8x128xf32>
    %212 = math.exp %211 : vector<8x128xf32>
    %cst_75 = arith.constant 1.000000e+00 : f32
    %213 = vector.broadcast %cst_75 : f32 to vector<8x128xf32>
    %214 = arith.addf %213, %212 : vector<8x128xf32>
    %215 = arith.divf %213, %214 : vector<8x128xf32>
    %216 = vector.extract_strided_slice %215 {offsets = [0, 0], sizes = [8, 32], strides = [1, 1]} : vector<8x128xf32> to vector<8x32xf32>
    %217 = vector.extract_strided_slice %215 {offsets = [0, 32], sizes = [8, 32], strides = [1, 1]} : vector<8x128xf32> to vector<8x32xf32>
    %218 = vector.extract_strided_slice %215 {offsets = [0, 64], sizes = [8, 32], strides = [1, 1]} : vector<8x128xf32> to vector<8x32xf32>
    %cst_76 = arith.constant 2.000000e+00 : f32
    %219 = vector.broadcast %cst_76 : f32 to vector<8x32xf32>
    %220 = arith.mulf %219, %218 : vector<8x32xf32>
    %cst_77 = arith.constant 1.000000e+00 : f32
    %221 = vector.broadcast %cst_77 : f32 to vector<8x32xf32>
    %222 = arith.subf %220, %221 : vector<8x32xf32>
    %223 = vector.extract_strided_slice %215 {offsets = [0, 96], sizes = [8, 32], strides = [1, 1]} : vector<8x128xf32> to vector<8x32xf32>
    %224 = arith.mulf %217, %170 : vector<8x32xf32>
    %225 = arith.mulf %216, %222 : vector<8x32xf32>
    %226 = arith.addf %224, %225 : vector<8x32xf32>
    %227 = math.tanh %226 : vector<8x32xf32>
    %228 = arith.mulf %223, %227 : vector<8x32xf32>
    %c4 = arith.constant 4 : index
    %c0_78 = arith.constant 0 : index
    %c0_79 = arith.constant 0 : index
    %229 = vector.load %arg0[%c4, %c0_78, %c0_79] : memref<6x8x32xf32, #tpu.memory_space<vmem>>, vector<1x8x32xf32>
    %230 = vector.shape_cast %229 : vector<1x8x32xf32> to vector<8x32xf32>
    %c0_80 = arith.constant 0 : index
    %c0_81 = arith.constant 0 : index
    %c0_82 = arith.constant 0 : index
    %231 = vector.load %arg3[%c0_80, %c0_81, %c0_82] : memref<2x64x128xf32, #tpu.memory_space<vmem>>, vector<1x64x128xf32>
    %232 = vector.shape_cast %231 : vector<1x64x128xf32> to vector<64x128xf32>
    %233 = vector.extract_strided_slice %232 {offsets = [0, 0], sizes = [32, 128], strides = [1, 1]} : vector<64x128xf32> to vector<32x128xf32>
    %cst_83 = arith.constant dense<0.000000e+00> : vector<8x128xf32>
    %234 = tpu.matmul %230, %233, %cst_83 {dimension_numbers = #tpu.dot_dimension_numbers<[1], [0], [0], [1], [0, 0, 1, 1], [], []>} : vector<8x32xf32>, vector<32x128xf32>, vector<8x128xf32> -> vector<8x128xf32>
    %235 = vector.extract_strided_slice %232 {offsets = [32, 0], sizes = [32, 128], strides = [1, 1]} : vector<64x128xf32> to vector<32x128xf32>
    %cst_84 = arith.constant dense<0.000000e+00> : vector<8x128xf32>
    %236 = tpu.matmul %201, %235, %cst_84 {dimension_numbers = #tpu.dot_dimension_numbers<[1], [0], [0], [1], [0, 0, 1, 1], [], []>} : vector<8x32xf32>, vector<32x128xf32>, vector<8x128xf32> -> vector<8x128xf32>
    %237 = arith.addf %234, %236 : vector<8x128xf32>
    %238 = vector.broadcast %2 : vector<1x128xf32> to vector<8x128xf32>
    %239 = arith.addf %237, %238 : vector<8x128xf32>
    %240 = arith.negf %239 : vector<8x128xf32>
    %241 = math.exp %240 : vector<8x128xf32>
    %cst_85 = arith.constant 1.000000e+00 : f32
    %242 = vector.broadcast %cst_85 : f32 to vector<8x128xf32>
    %243 = arith.addf %242, %241 : vector<8x128xf32>
    %244 = arith.divf %242, %243 : vector<8x128xf32>
    %245 = vector.extract_strided_slice %244 {offsets = [0, 0], sizes = [8, 32], strides = [1, 1]} : vector<8x128xf32> to vector<8x32xf32>
    %246 = vector.extract_strided_slice %244 {offsets = [0, 32], sizes = [8, 32], strides = [1, 1]} : vector<8x128xf32> to vector<8x32xf32>
    %247 = vector.extract_strided_slice %244 {offsets = [0, 64], sizes = [8, 32], strides = [1, 1]} : vector<8x128xf32> to vector<8x32xf32>
    %cst_86 = arith.constant 2.000000e+00 : f32
    %248 = vector.broadcast %cst_86 : f32 to vector<8x32xf32>
    %249 = arith.mulf %248, %247 : vector<8x32xf32>
    %cst_87 = arith.constant 1.000000e+00 : f32
    %250 = vector.broadcast %cst_87 : f32 to vector<8x32xf32>
    %251 = arith.subf %249, %250 : vector<8x32xf32>
    %252 = vector.extract_strided_slice %244 {offsets = [0, 96], sizes = [8, 32], strides = [1, 1]} : vector<8x128xf32> to vector<8x32xf32>
    %253 = arith.mulf %246, %199 : vector<8x32xf32>
    %254 = arith.mulf %245, %251 : vector<8x32xf32>
    %255 = arith.addf %253, %254 : vector<8x32xf32>
    %256 = math.tanh %255 : vector<8x32xf32>
    %257 = arith.mulf %252, %256 : vector<8x32xf32>
    %c1_88 = arith.constant 1 : index
    %c0_89 = arith.constant 0 : index
    %c0_90 = arith.constant 0 : index
    %258 = vector.load %arg3[%c1_88, %c0_89, %c0_90] : memref<2x64x128xf32, #tpu.memory_space<vmem>>, vector<1x64x128xf32>
    %259 = vector.shape_cast %258 : vector<1x64x128xf32> to vector<64x128xf32>
    %260 = vector.extract_strided_slice %259 {offsets = [0, 0], sizes = [32, 128], strides = [1, 1]} : vector<64x128xf32> to vector<32x128xf32>
    %cst_91 = arith.constant dense<0.000000e+00> : vector<8x128xf32>
    %261 = tpu.matmul %257, %260, %cst_91 {dimension_numbers = #tpu.dot_dimension_numbers<[1], [0], [0], [1], [0, 0, 1, 1], [], []>} : vector<8x32xf32>, vector<32x128xf32>, vector<8x128xf32> -> vector<8x128xf32>
    %262 = vector.extract_strided_slice %259 {offsets = [32, 0], sizes = [32, 128], strides = [1, 1]} : vector<64x128xf32> to vector<32x128xf32>
    %cst_92 = arith.constant dense<0.000000e+00> : vector<8x128xf32>
    %263 = tpu.matmul %228, %262, %cst_92 {dimension_numbers = #tpu.dot_dimension_numbers<[1], [0], [0], [1], [0, 0, 1, 1], [], []>} : vector<8x32xf32>, vector<32x128xf32>, vector<8x128xf32> -> vector<8x128xf32>
    %264 = arith.addf %261, %263 : vector<8x128xf32>
    %265 = vector.broadcast %4 : vector<1x128xf32> to vector<8x128xf32>
    %266 = arith.addf %264, %265 : vector<8x128xf32>
    %267 = arith.negf %266 : vector<8x128xf32>
    %268 = math.exp %267 : vector<8x128xf32>
    %cst_93 = arith.constant 1.000000e+00 : f32
    %269 = vector.broadcast %cst_93 : f32 to vector<8x128xf32>
    %270 = arith.addf %269, %268 : vector<8x128xf32>
    %271 = arith.divf %269, %270 : vector<8x128xf32>
    %272 = vector.extract_strided_slice %271 {offsets = [0, 0], sizes = [8, 32], strides = [1, 1]} : vector<8x128xf32> to vector<8x32xf32>
    %273 = vector.extract_strided_slice %271 {offsets = [0, 32], sizes = [8, 32], strides = [1, 1]} : vector<8x128xf32> to vector<8x32xf32>
    %274 = vector.extract_strided_slice %271 {offsets = [0, 64], sizes = [8, 32], strides = [1, 1]} : vector<8x128xf32> to vector<8x32xf32>
    %cst_94 = arith.constant 2.000000e+00 : f32
    %275 = vector.broadcast %cst_94 : f32 to vector<8x32xf32>
    %276 = arith.mulf %275, %274 : vector<8x32xf32>
    %cst_95 = arith.constant 1.000000e+00 : f32
    %277 = vector.broadcast %cst_95 : f32 to vector<8x32xf32>
    %278 = arith.subf %276, %277 : vector<8x32xf32>
    %279 = vector.extract_strided_slice %271 {offsets = [0, 96], sizes = [8, 32], strides = [1, 1]} : vector<8x128xf32> to vector<8x32xf32>
    %280 = arith.mulf %273, %226 : vector<8x32xf32>
    %281 = arith.mulf %272, %278 : vector<8x32xf32>
    %282 = arith.addf %280, %281 : vector<8x32xf32>
    %283 = math.tanh %282 : vector<8x32xf32>
    %284 = arith.mulf %279, %283 : vector<8x32xf32>
    %c5 = arith.constant 5 : index
    %c0_96 = arith.constant 0 : index
    %c0_97 = arith.constant 0 : index
    %285 = vector.load %arg0[%c5, %c0_96, %c0_97] : memref<6x8x32xf32, #tpu.memory_space<vmem>>, vector<1x8x32xf32>
    %286 = vector.shape_cast %285 : vector<1x8x32xf32> to vector<8x32xf32>
    %c0_98 = arith.constant 0 : index
    %c0_99 = arith.constant 0 : index
    %c0_100 = arith.constant 0 : index
    %287 = vector.load %arg3[%c0_98, %c0_99, %c0_100] : memref<2x64x128xf32, #tpu.memory_space<vmem>>, vector<1x64x128xf32>
    %288 = vector.shape_cast %287 : vector<1x64x128xf32> to vector<64x128xf32>
    %289 = vector.extract_strided_slice %288 {offsets = [0, 0], sizes = [32, 128], strides = [1, 1]} : vector<64x128xf32> to vector<32x128xf32>
    %cst_101 = arith.constant dense<0.000000e+00> : vector<8x128xf32>
    %290 = tpu.matmul %286, %289, %cst_101 {dimension_numbers = #tpu.dot_dimension_numbers<[1], [0], [0], [1], [0, 0, 1, 1], [], []>} : vector<8x32xf32>, vector<32x128xf32>, vector<8x128xf32> -> vector<8x128xf32>
    %291 = vector.extract_strided_slice %288 {offsets = [32, 0], sizes = [32, 128], strides = [1, 1]} : vector<64x128xf32> to vector<32x128xf32>
    %cst_102 = arith.constant dense<0.000000e+00> : vector<8x128xf32>
    %292 = tpu.matmul %257, %291, %cst_102 {dimension_numbers = #tpu.dot_dimension_numbers<[1], [0], [0], [1], [0, 0, 1, 1], [], []>} : vector<8x32xf32>, vector<32x128xf32>, vector<8x128xf32> -> vector<8x128xf32>
    %293 = arith.addf %290, %292 : vector<8x128xf32>
    %294 = vector.broadcast %2 : vector<1x128xf32> to vector<8x128xf32>
    %295 = arith.addf %293, %294 : vector<8x128xf32>
    %296 = arith.negf %295 : vector<8x128xf32>
    %297 = math.exp %296 : vector<8x128xf32>
    %cst_103 = arith.constant 1.000000e+00 : f32
    %298 = vector.broadcast %cst_103 : f32 to vector<8x128xf32>
    %299 = arith.addf %298, %297 : vector<8x128xf32>
    %300 = arith.divf %298, %299 : vector<8x128xf32>
    %301 = vector.extract_strided_slice %300 {offsets = [0, 0], sizes = [8, 32], strides = [1, 1]} : vector<8x128xf32> to vector<8x32xf32>
    %302 = vector.extract_strided_slice %300 {offsets = [0, 32], sizes = [8, 32], strides = [1, 1]} : vector<8x128xf32> to vector<8x32xf32>
    %303 = vector.extract_strided_slice %300 {offsets = [0, 64], sizes = [8, 32], strides = [1, 1]} : vector<8x128xf32> to vector<8x32xf32>
    %cst_104 = arith.constant 2.000000e+00 : f32
    %304 = vector.broadcast %cst_104 : f32 to vector<8x32xf32>
    %305 = arith.mulf %304, %303 : vector<8x32xf32>
    %cst_105 = arith.constant 1.000000e+00 : f32
    %306 = vector.broadcast %cst_105 : f32 to vector<8x32xf32>
    %307 = arith.subf %305, %306 : vector<8x32xf32>
    %308 = vector.extract_strided_slice %300 {offsets = [0, 96], sizes = [8, 32], strides = [1, 1]} : vector<8x128xf32> to vector<8x32xf32>
    %309 = arith.mulf %302, %255 : vector<8x32xf32>
    %310 = arith.mulf %301, %307 : vector<8x32xf32>
    %311 = arith.addf %309, %310 : vector<8x32xf32>
    %312 = math.tanh %311 : vector<8x32xf32>
    %313 = arith.mulf %308, %312 : vector<8x32xf32>
    %c1_106 = arith.constant 1 : index
    %c0_107 = arith.constant 0 : index
    %c0_108 = arith.constant 0 : index
    %314 = vector.load %arg3[%c1_106, %c0_107, %c0_108] : memref<2x64x128xf32, #tpu.memory_space<vmem>>, vector<1x64x128xf32>
    %315 = vector.shape_cast %314 : vector<1x64x128xf32> to vector<64x128xf32>
    %316 = vector.extract_strided_slice %315 {offsets = [0, 0], sizes = [32, 128], strides = [1, 1]} : vector<64x128xf32> to vector<32x128xf32>
    %cst_109 = arith.constant dense<0.000000e+00> : vector<8x128xf32>
    %317 = tpu.matmul %313, %316, %cst_109 {dimension_numbers = #tpu.dot_dimension_numbers<[1], [0], [0], [1], [0, 0, 1, 1], [], []>} : vector<8x32xf32>, vector<32x128xf32>, vector<8x128xf32> -> vector<8x128xf32>
    %318 = vector.extract_strided_slice %315 {offsets = [32, 0], sizes = [32, 128], strides = [1, 1]} : vector<64x128xf32> to vector<32x128xf32>
    %cst_110 = arith.constant dense<0.000000e+00> : vector<8x128xf32>
    %319 = tpu.matmul %284, %318, %cst_110 {dimension_numbers = #tpu.dot_dimension_numbers<[1], [0], [0], [1], [0, 0, 1, 1], [], []>} : vector<8x32xf32>, vector<32x128xf32>, vector<8x128xf32> -> vector<8x128xf32>
    %320 = arith.addf %317, %319 : vector<8x128xf32>
    %321 = vector.broadcast %4 : vector<1x128xf32> to vector<8x128xf32>
    %322 = arith.addf %320, %321 : vector<8x128xf32>
    %323 = arith.negf %322 : vector<8x128xf32>
    %324 = math.exp %323 : vector<8x128xf32>
    %cst_111 = arith.constant 1.000000e+00 : f32
    %325 = vector.broadcast %cst_111 : f32 to vector<8x128xf32>
    %326 = arith.addf %325, %324 : vector<8x128xf32>
    %327 = arith.divf %325, %326 : vector<8x128xf32>
    %328 = vector.extract_strided_slice %327 {offsets = [0, 0], sizes = [8, 32], strides = [1, 1]} : vector<8x128xf32> to vector<8x32xf32>
    %329 = vector.extract_strided_slice %327 {offsets = [0, 32], sizes = [8, 32], strides = [1, 1]} : vector<8x128xf32> to vector<8x32xf32>
    %330 = vector.extract_strided_slice %327 {offsets = [0, 64], sizes = [8, 32], strides = [1, 1]} : vector<8x128xf32> to vector<8x32xf32>
    %cst_112 = arith.constant 2.000000e+00 : f32
    %331 = vector.broadcast %cst_112 : f32 to vector<8x32xf32>
    %332 = arith.mulf %331, %330 : vector<8x32xf32>
    %cst_113 = arith.constant 1.000000e+00 : f32
    %333 = vector.broadcast %cst_113 : f32 to vector<8x32xf32>
    %334 = arith.subf %332, %333 : vector<8x32xf32>
    %335 = vector.extract_strided_slice %327 {offsets = [0, 96], sizes = [8, 32], strides = [1, 1]} : vector<8x128xf32> to vector<8x32xf32>
    %336 = arith.mulf %329, %282 : vector<8x32xf32>
    %337 = arith.mulf %328, %334 : vector<8x32xf32>
    %338 = arith.addf %336, %337 : vector<8x32xf32>
    %339 = math.tanh %338 : vector<8x32xf32>
    %340 = arith.mulf %335, %339 : vector<8x32xf32>
    %c0_114 = arith.constant 0 : index
    %c0_115 = arith.constant 0 : index
    %c0_116 = arith.constant 0 : index
    %341 = vector.load %arg6[%c0_114, %c0_115, %c0_116] : memref<2x1x128xf32, #tpu.memory_space<vmem>>, vector<1x1x128xf32>
    %342 = vector.shape_cast %341 : vector<1x1x128xf32> to vector<1x128xf32>
    %c1_117 = arith.constant 1 : index
    %c0_118 = arith.constant 0 : index
    %c0_119 = arith.constant 0 : index
    %343 = vector.load %arg6[%c1_117, %c0_118, %c0_119] : memref<2x1x128xf32, #tpu.memory_space<vmem>>, vector<1x1x128xf32>
    %344 = vector.shape_cast %343 : vector<1x1x128xf32> to vector<1x128xf32>
    %c0_120 = arith.constant 0 : index
    %c0_121 = arith.constant 0 : index
    %345 = vector.load %arg7[%c0_120, %c0_121] : memref<32x128xf32, #tpu.memory_space<vmem>>, vector<32x128xf32>
    %c0_122 = arith.constant 0 : index
    %c0_123 = arith.constant 0 : index
    %346 = vector.load %arg8[%c0_122, %c0_123] : memref<1x128xf32, #tpu.memory_space<vmem>>, vector<1x128xf32>
    %cst_124 = arith.constant 0.000000e+00 : f32
    %347 = vector.broadcast %cst_124 : f32 to vector<8x128xf32>
    %c0_125 = arith.constant 0 : index
    %c0_126 = arith.constant 0 : index
    %c0_127 = arith.constant 0 : index
    %348 = vector.load %arg9[%c0_125, %c0_126, %c0_127] : memref<8x8x128xf32, #tpu.memory_space<vmem>>, vector<1x8x128xf32>
    %349 = vector.shape_cast %348 : vector<1x8x128xf32> to vector<8x128xf32>
    %350 = vector.shape_cast %347 : vector<8x128xf32> to vector<1x8x128xf32>
    tpu.vector_store %arg9[%c0_125, %c0_126, %c0_127], %350 {strides = array<i32>} : memref<8x8x128xf32, #tpu.memory_space<vmem>>, vector<1x8x128xf32>,
    %c0_128 = arith.constant 0 : index
    %c0_129 = arith.constant 0 : index
    %c0_130 = arith.constant 0 : index
    %351 = vector.load %arg1[%c0_128, %c0_129, %c0_130] : memref<8x8x32xf32, #tpu.memory_space<vmem>>, vector<1x8x32xf32>
    %352 = vector.shape_cast %351 : vector<1x8x32xf32> to vector<8x32xf32>
    %c0_131 = arith.constant 0 : index
    %c0_132 = arith.constant 0 : index
    %c0_133 = arith.constant 0 : index
    %353 = vector.load %arg5[%c0_131, %c0_132, %c0_133] : memref<2x64x128xf32, #tpu.memory_space<vmem>>, vector<1x64x128xf32>
    %354 = vector.shape_cast %353 : vector<1x64x128xf32> to vector<64x128xf32>
    %355 = vector.extract_strided_slice %354 {offsets = [0, 0], sizes = [32, 128], strides = [1, 1]} : vector<64x128xf32> to vector<32x128xf32>
    %cst_134 = arith.constant dense<0.000000e+00> : vector<8x128xf32>
    %356 = tpu.matmul %352, %355, %cst_134 {dimension_numbers = #tpu.dot_dimension_numbers<[1], [0], [0], [1], [0, 0, 1, 1], [], []>} : vector<8x32xf32>, vector<32x128xf32>, vector<8x128xf32> -> vector<8x128xf32>
    %357 = vector.extract_strided_slice %354 {offsets = [32, 0], sizes = [32, 128], strides = [1, 1]} : vector<64x128xf32> to vector<32x128xf32>
    %cst_135 = arith.constant dense<0.000000e+00> : vector<8x128xf32>
    %358 = tpu.matmul %313, %357, %cst_135 {dimension_numbers = #tpu.dot_dimension_numbers<[1], [0], [0], [1], [0, 0, 1, 1], [], []>} : vector<8x32xf32>, vector<32x128xf32>, vector<8x128xf32> -> vector<8x128xf32>
    %359 = arith.addf %356, %358 : vector<8x128xf32>
    %360 = vector.broadcast %342 : vector<1x128xf32> to vector<8x128xf32>
    %361 = arith.addf %359, %360 : vector<8x128xf32>
    %362 = arith.negf %361 : vector<8x128xf32>
    %363 = math.exp %362 : vector<8x128xf32>
    %cst_136 = arith.constant 1.000000e+00 : f32
    %364 = vector.broadcast %cst_136 : f32 to vector<8x128xf32>
    %365 = arith.addf %364, %363 : vector<8x128xf32>
    %366 = arith.divf %364, %365 : vector<8x128xf32>
    %367 = vector.extract_strided_slice %366 {offsets = [0, 0], sizes = [8, 32], strides = [1, 1]} : vector<8x128xf32> to vector<8x32xf32>
    %368 = vector.extract_strided_slice %366 {offsets = [0, 32], sizes = [8, 32], strides = [1, 1]} : vector<8x128xf32> to vector<8x32xf32>
    %369 = vector.extract_strided_slice %366 {offsets = [0, 64], sizes = [8, 32], strides = [1, 1]} : vector<8x128xf32> to vector<8x32xf32>
    %cst_137 = arith.constant 2.000000e+00 : f32
    %370 = vector.broadcast %cst_137 : f32 to vector<8x32xf32>
    %371 = arith.mulf %370, %369 : vector<8x32xf32>
    %cst_138 = arith.constant 1.000000e+00 : f32
    %372 = vector.broadcast %cst_138 : f32 to vector<8x32xf32>
    %373 = arith.subf %371, %372 : vector<8x32xf32>
    %374 = vector.extract_strided_slice %366 {offsets = [0, 96], sizes = [8, 32], strides = [1, 1]} : vector<8x128xf32> to vector<8x32xf32>
    %375 = arith.mulf %368, %311 : vector<8x32xf32>
    %376 = arith.mulf %367, %373 : vector<8x32xf32>
    %377 = arith.addf %375, %376 : vector<8x32xf32>
    %378 = math.tanh %377 : vector<8x32xf32>
    %379 = arith.mulf %374, %378 : vector<8x32xf32>
    %c1_139 = arith.constant 1 : index
    %c0_140 = arith.constant 0 : index
    %c0_141 = arith.constant 0 : index
    %380 = vector.load %arg5[%c1_139, %c0_140, %c0_141] : memref<2x64x128xf32, #tpu.memory_space<vmem>>, vector<1x64x128xf32>
    %381 = vector.shape_cast %380 : vector<1x64x128xf32> to vector<64x128xf32>
    %382 = vector.extract_strided_slice %381 {offsets = [0, 0], sizes = [32, 128], strides = [1, 1]} : vector<64x128xf32> to vector<32x128xf32>
    %cst_142 = arith.constant dense<0.000000e+00> : vector<8x128xf32>
    %383 = tpu.matmul %379, %382, %cst_142 {dimension_numbers = #tpu.dot_dimension_numbers<[1], [0], [0], [1], [0, 0, 1, 1], [], []>} : vector<8x32xf32>, vector<32x128xf32>, vector<8x128xf32> -> vector<8x128xf32>
    %384 = vector.extract_strided_slice %381 {offsets = [32, 0], sizes = [32, 128], strides = [1, 1]} : vector<64x128xf32> to vector<32x128xf32>
    %cst_143 = arith.constant dense<0.000000e+00> : vector<8x128xf32>
    %385 = tpu.matmul %340, %384, %cst_143 {dimension_numbers = #tpu.dot_dimension_numbers<[1], [0], [0], [1], [0, 0, 1, 1], [], []>} : vector<8x32xf32>, vector<32x128xf32>, vector<8x128xf32> -> vector<8x128xf32>
    %386 = arith.addf %383, %385 : vector<8x128xf32>
    %387 = vector.broadcast %344 : vector<1x128xf32> to vector<8x128xf32>
    %388 = arith.addf %386, %387 : vector<8x128xf32>
    %389 = arith.negf %388 : vector<8x128xf32>
    %390 = math.exp %389 : vector<8x128xf32>
    %cst_144 = arith.constant 1.000000e+00 : f32
    %391 = vector.broadcast %cst_144 : f32 to vector<8x128xf32>
    %392 = arith.addf %391, %390 : vector<8x128xf32>
    %393 = arith.divf %391, %392 : vector<8x128xf32>
    %394 = vector.extract_strided_slice %393 {offsets = [0, 0], sizes = [8, 32], strides = [1, 1]} : vector<8x128xf32> to vector<8x32xf32>
    %395 = vector.extract_strided_slice %393 {offsets = [0, 32], sizes = [8, 32], strides = [1, 1]} : vector<8x128xf32> to vector<8x32xf32>
    %396 = vector.extract_strided_slice %393 {offsets = [0, 64], sizes = [8, 32], strides = [1, 1]} : vector<8x128xf32> to vector<8x32xf32>
    %cst_145 = arith.constant 2.000000e+00 : f32
    %397 = vector.broadcast %cst_145 : f32 to vector<8x32xf32>
    %398 = arith.mulf %397, %396 : vector<8x32xf32>
    %cst_146 = arith.constant 1.000000e+00 : f32
    %399 = vector.broadcast %cst_146 : f32 to vector<8x32xf32>
    %400 = arith.subf %398, %399 : vector<8x32xf32>
    %401 = vector.extract_strided_slice %393 {offsets = [0, 96], sizes = [8, 32], strides = [1, 1]} : vector<8x128xf32> to vector<8x32xf32>
    %402 = arith.mulf %395, %338 : vector<8x32xf32>
    %403 = arith.mulf %394, %400 : vector<8x32xf32>
    %404 = arith.addf %402, %403 : vector<8x32xf32>
    %405 = math.tanh %404 : vector<8x32xf32>
    %406 = arith.mulf %401, %405 : vector<8x32xf32>
    %cst_147 = arith.constant dense<0.000000e+00> : vector<8x128xf32>
    %407 = tpu.matmul %406, %345, %cst_147 {dimension_numbers = #tpu.dot_dimension_numbers<[1], [0], [0], [1], [0, 0, 1, 1], [], []>} : vector<8x32xf32>, vector<32x128xf32>, vector<8x128xf32> -> vector<8x128xf32>
    %408 = vector.broadcast %346 : vector<1x128xf32> to vector<8x128xf32>
    %409 = arith.addf %407, %408 : vector<8x128xf32>
    %c1_148 = arith.constant 1 : index
    %c0_149 = arith.constant 0 : index
    %c0_150 = arith.constant 0 : index
    %410 = vector.load %arg9[%c1_148, %c0_149, %c0_150] : memref<8x8x128xf32, #tpu.memory_space<vmem>>, vector<1x8x128xf32>
    %411 = vector.shape_cast %410 : vector<1x8x128xf32> to vector<8x128xf32>
    %412 = vector.shape_cast %409 : vector<8x128xf32> to vector<1x8x128xf32>
    tpu.vector_store %arg9[%c1_148, %c0_149, %c0_150], %412 {strides = array<i32>} : memref<8x8x128xf32, #tpu.memory_space<vmem>>, vector<1x8x128xf32>,
    %413 = tpu.iota {dimensions = array<i32: 1>} : vector<8x128xi32>
    %cst_151 = arith.constant dense<0xFF800000> : vector<8xf32>
    %414 = vector.multi_reduction <maximumf>, %409, %cst_151 [1] : vector<8x128xf32> to vector<8xf32>
    %415 = vector.shape_cast %414 : vector<8xf32> to vector<8x1xf32>
    %416 = vector.broadcast %415 : vector<8x1xf32> to vector<8x128xf32>
    %417 = arith.cmpf oeq, %409, %416 : vector<8x128xf32>
    %c128_i32 = arith.constant 128 : i32
    %418 = vector.broadcast %c128_i32 : i32 to vector<8x128xi32>
    %419 = arith.select %417, %413, %418 : vector<8x128xi1>, vector<8x128xi32>
    %cst_152 = arith.constant dense<2147483647> : vector<8xi32>
    %420 = vector.multi_reduction <minsi>, %419, %cst_152 [1] : vector<8x128xi32> to vector<8xi32>
    %421 = vector.shape_cast %420 : vector<8xi32> to vector<8x1xi32>
    %422 = vector.broadcast %421 : vector<8x1xi32> to vector<8x128xi32>
    %423 = arith.cmpi eq, %413, %422 : vector<8x128xi32>
    %424 = arith.extui %423 : vector<8x128xi1> to vector<8x128xi32>
    %425 = arith.sitofp %424 : vector<8x128xi32> to vector<8x128xf32>
    %c0_153 = arith.constant 0 : index
    %c0_154 = arith.constant 0 : index
    %426 = vector.load %arg2[%c0_153, %c0_154] : memref<128x32xf32, #tpu.memory_space<vmem>>, vector<128x32xf32>
    %cst_155 = arith.constant dense<0.000000e+00> : vector<8x32xf32>
    %427 = tpu.matmul %425, %426, %cst_155 {dimension_numbers = #tpu.dot_dimension_numbers<[1], [0], [0], [1], [0, 0, 1, 1], [], []>} : vector<8x128xf32>, vector<128x32xf32>, vector<8x32xf32> -> vector<8x32xf32>
    %c0_156 = arith.constant 0 : index
    %c0_157 = arith.constant 0 : index
    %c0_158 = arith.constant 0 : index
    %428 = vector.load %arg5[%c0_156, %c0_157, %c0_158] : memref<2x64x128xf32, #tpu.memory_space<vmem>>, vector<1x64x128xf32>
    %429 = vector.shape_cast %428 : vector<1x64x128xf32> to vector<64x128xf32>
    %430 = vector.extract_strided_slice %429 {offsets = [0, 0], sizes = [32, 128], strides = [1, 1]} : vector<64x128xf32> to vector<32x128xf32>
    %cst_159 = arith.constant dense<0.000000e+00> : vector<8x128xf32>
    %431 = tpu.matmul %427, %430, %cst_159 {dimension_numbers = #tpu.dot_dimension_numbers<[1], [0], [0], [1], [0, 0, 1, 1], [], []>} : vector<8x32xf32>, vector<32x128xf32>, vector<8x128xf32> -> vector<8x128xf32>
    %432 = vector.extract_strided_slice %429 {offsets = [32, 0], sizes = [32, 128], strides = [1, 1]} : vector<64x128xf32> to vector<32x128xf32>
    %cst_160 = arith.constant dense<0.000000e+00> : vector<8x128xf32>
    %433 = tpu.matmul %379, %432, %cst_160 {dimension_numbers = #tpu.dot_dimension_numbers<[1], [0], [0], [1], [0, 0, 1, 1], [], []>} : vector<8x32xf32>, vector<32x128xf32>, vector<8x128xf32> -> vector<8x128xf32>
    %434 = arith.addf %431, %433 : vector<8x128xf32>
    %435 = vector.broadcast %342 : vector<1x128xf32> to vector<8x128xf32>
    %436 = arith.addf %434, %435 : vector<8x128xf32>
    %437 = arith.negf %436 : vector<8x128xf32>
    %438 = math.exp %437 : vector<8x128xf32>
    %cst_161 = arith.constant 1.000000e+00 : f32
    %439 = vector.broadcast %cst_161 : f32 to vector<8x128xf32>
    %440 = arith.addf %439, %438 : vector<8x128xf32>
    %441 = arith.divf %439, %440 : vector<8x128xf32>
    %442 = vector.extract_strided_slice %441 {offsets = [0, 0], sizes = [8, 32], strides = [1, 1]} : vector<8x128xf32> to vector<8x32xf32>
    %443 = vector.extract_strided_slice %441 {offsets = [0, 32], sizes = [8, 32], strides = [1, 1]} : vector<8x128xf32> to vector<8x32xf32>
    %444 = vector.extract_strided_slice %441 {offsets = [0, 64], sizes = [8, 32], strides = [1, 1]} : vector<8x128xf32> to vector<8x32xf32>
    %cst_162 = arith.constant 2.000000e+00 : f32
    %445 = vector.broadcast %cst_162 : f32 to vector<8x32xf32>
    %446 = arith.mulf %445, %444 : vector<8x32xf32>
    %cst_163 = arith.constant 1.000000e+00 : f32
    %447 = vector.broadcast %cst_163 : f32 to vector<8x32xf32>
    %448 = arith.subf %446, %447 : vector<8x32xf32>
    %449 = vector.extract_strided_slice %441 {offsets = [0, 96], sizes = [8, 32], strides = [1, 1]} : vector<8x128xf32> to vector<8x32xf32>
    %450 = arith.mulf %443, %377 : vector<8x32xf32>
    %451 = arith.mulf %442, %448 : vector<8x32xf32>
    %452 = arith.addf %450, %451 : vector<8x32xf32>
    %453 = math.tanh %452 : vector<8x32xf32>
    %454 = arith.mulf %449, %453 : vector<8x32xf32>
    %c1_164 = arith.constant 1 : index
    %c0_165 = arith.constant 0 : index
    %c0_166 = arith.constant 0 : index
    %455 = vector.load %arg5[%c1_164, %c0_165, %c0_166] : memref<2x64x128xf32, #tpu.memory_space<vmem>>, vector<1x64x128xf32>
    %456 = vector.shape_cast %455 : vector<1x64x128xf32> to vector<64x128xf32>
    %457 = vector.extract_strided_slice %456 {offsets = [0, 0], sizes = [32, 128], strides = [1, 1]} : vector<64x128xf32> to vector<32x128xf32>
    %cst_167 = arith.constant dense<0.000000e+00> : vector<8x128xf32>
    %458 = tpu.matmul %454, %457, %cst_167 {dimension_numbers = #tpu.dot_dimension_numbers<[1], [0], [0], [1], [0, 0, 1, 1], [], []>} : vector<8x32xf32>, vector<32x128xf32>, vector<8x128xf32> -> vector<8x128xf32>
    %459 = vector.extract_strided_slice %456 {offsets = [32, 0], sizes = [32, 128], strides = [1, 1]} : vector<64x128xf32> to vector<32x128xf32>
    %cst_168 = arith.constant dense<0.000000e+00> : vector<8x128xf32>
    %460 = tpu.matmul %406, %459, %cst_168 {dimension_numbers = #tpu.dot_dimension_numbers<[1], [0], [0], [1], [0, 0, 1, 1], [], []>} : vector<8x32xf32>, vector<32x128xf32>, vector<8x128xf32> -> vector<8x128xf32>
    %461 = arith.addf %458, %460 : vector<8x128xf32>
    %462 = vector.broadcast %344 : vector<1x128xf32> to vector<8x128xf32>
    %463 = arith.addf %461, %462 : vector<8x128xf32>
    %464 = arith.negf %463 : vector<8x128xf32>
    %465 = math.exp %464 : vector<8x128xf32>
    %cst_169 = arith.constant 1.000000e+00 : f32
    %466 = vector.broadcast %cst_169 : f32 to vector<8x128xf32>
    %467 = arith.addf %466, %465 : vector<8x128xf32>
    %468 = arith.divf %466, %467 : vector<8x128xf32>
    %469 = vector.extract_strided_slice %468 {offsets = [0, 0], sizes = [8, 32], strides = [1, 1]} : vector<8x128xf32> to vector<8x32xf32>
    %470 = vector.extract_strided_slice %468 {offsets = [0, 32], sizes = [8, 32], strides = [1, 1]} : vector<8x128xf32> to vector<8x32xf32>
    %471 = vector.extract_strided_slice %468 {offsets = [0, 64], sizes = [8, 32], strides = [1, 1]} : vector<8x128xf32> to vector<8x32xf32>
    %cst_170 = arith.constant 2.000000e+00 : f32
    %472 = vector.broadcast %cst_170 : f32 to vector<8x32xf32>
    %473 = arith.mulf %472, %471 : vector<8x32xf32>
    %cst_171 = arith.constant 1.000000e+00 : f32
    %474 = vector.broadcast %cst_171 : f32 to vector<8x32xf32>
    %475 = arith.subf %473, %474 : vector<8x32xf32>
    %476 = vector.extract_strided_slice %468 {offsets = [0, 96], sizes = [8, 32], strides = [1, 1]} : vector<8x128xf32> to vector<8x32xf32>
    %477 = arith.mulf %470, %404 : vector<8x32xf32>
    %478 = arith.mulf %469, %475 : vector<8x32xf32>
    %479 = arith.addf %477, %478 : vector<8x32xf32>
    %480 = math.tanh %479 : vector<8x32xf32>
    %481 = arith.mulf %476, %480 : vector<8x32xf32>
    %cst_172 = arith.constant dense<0.000000e+00> : vector<8x128xf32>
    %482 = tpu.matmul %481, %345, %cst_172 {dimension_numbers = #tpu.dot_dimension_numbers<[1], [0], [0], [1], [0, 0, 1, 1], [], []>} : vector<8x32xf32>, vector<32x128xf32>, vector<8x128xf32> -> vector<8x128xf32>
    %483 = vector.broadcast %346 : vector<1x128xf32> to vector<8x128xf32>
    %484 = arith.addf %482, %483 : vector<8x128xf32>
    %c2_173 = arith.constant 2 : index
    %c0_174 = arith.constant 0 : index
    %c0_175 = arith.constant 0 : index
    %485 = vector.load %arg9[%c2_173, %c0_174, %c0_175] : memref<8x8x128xf32, #tpu.memory_space<vmem>>, vector<1x8x128xf32>
    %486 = vector.shape_cast %485 : vector<1x8x128xf32> to vector<8x128xf32>
    %487 = vector.shape_cast %484 : vector<8x128xf32> to vector<1x8x128xf32>
    tpu.vector_store %arg9[%c2_173, %c0_174, %c0_175], %487 {strides = array<i32>} : memref<8x8x128xf32, #tpu.memory_space<vmem>>, vector<1x8x128xf32>,
    %488 = tpu.iota {dimensions = array<i32: 1>} : vector<8x128xi32>
    %cst_176 = arith.constant dense<0xFF800000> : vector<8xf32>
    %489 = vector.multi_reduction <maximumf>, %484, %cst_176 [1] : vector<8x128xf32> to vector<8xf32>
    %490 = vector.shape_cast %489 : vector<8xf32> to vector<8x1xf32>
    %491 = vector.broadcast %490 : vector<8x1xf32> to vector<8x128xf32>
    %492 = arith.cmpf oeq, %484, %491 : vector<8x128xf32>
    %c128_i32_177 = arith.constant 128 : i32
    %493 = vector.broadcast %c128_i32_177 : i32 to vector<8x128xi32>
    %494 = arith.select %492, %488, %493 : vector<8x128xi1>, vector<8x128xi32>
    %cst_178 = arith.constant dense<2147483647> : vector<8xi32>
    %495 = vector.multi_reduction <minsi>, %494, %cst_178 [1] : vector<8x128xi32> to vector<8xi32>
    %496 = vector.shape_cast %495 : vector<8xi32> to vector<8x1xi32>
    %497 = vector.broadcast %496 : vector<8x1xi32> to vector<8x128xi32>
    %498 = arith.cmpi eq, %488, %497 : vector<8x128xi32>
    %499 = arith.extui %498 : vector<8x128xi1> to vector<8x128xi32>
    %500 = arith.sitofp %499 : vector<8x128xi32> to vector<8x128xf32>
    %c0_179 = arith.constant 0 : index
    %c0_180 = arith.constant 0 : index
    %501 = vector.load %arg2[%c0_179, %c0_180] : memref<128x32xf32, #tpu.memory_space<vmem>>, vector<128x32xf32>
    %cst_181 = arith.constant dense<0.000000e+00> : vector<8x32xf32>
    %502 = tpu.matmul %500, %501, %cst_181 {dimension_numbers = #tpu.dot_dimension_numbers<[1], [0], [0], [1], [0, 0, 1, 1], [], []>} : vector<8x128xf32>, vector<128x32xf32>, vector<8x32xf32> -> vector<8x32xf32>
    %c0_182 = arith.constant 0 : index
    %c0_183 = arith.constant 0 : index
    %c0_184 = arith.constant 0 : index
    %503 = vector.load %arg5[%c0_182, %c0_183, %c0_184] : memref<2x64x128xf32, #tpu.memory_space<vmem>>, vector<1x64x128xf32>
    %504 = vector.shape_cast %503 : vector<1x64x128xf32> to vector<64x128xf32>
    %505 = vector.extract_strided_slice %504 {offsets = [0, 0], sizes = [32, 128], strides = [1, 1]} : vector<64x128xf32> to vector<32x128xf32>
    %cst_185 = arith.constant dense<0.000000e+00> : vector<8x128xf32>
    %506 = tpu.matmul %502, %505, %cst_185 {dimension_numbers = #tpu.dot_dimension_numbers<[1], [0], [0], [1], [0, 0, 1, 1], [], []>} : vector<8x32xf32>, vector<32x128xf32>, vector<8x128xf32> -> vector<8x128xf32>
    %507 = vector.extract_strided_slice %504 {offsets = [32, 0], sizes = [32, 128], strides = [1, 1]} : vector<64x128xf32> to vector<32x128xf32>
    %cst_186 = arith.constant dense<0.000000e+00> : vector<8x128xf32>
    %508 = tpu.matmul %454, %507, %cst_186 {dimension_numbers = #tpu.dot_dimension_numbers<[1], [0], [0], [1], [0, 0, 1, 1], [], []>} : vector<8x32xf32>, vector<32x128xf32>, vector<8x128xf32> -> vector<8x128xf32>
    %509 = arith.addf %506, %508 : vector<8x128xf32>
    %510 = vector.broadcast %342 : vector<1x128xf32> to vector<8x128xf32>
    %511 = arith.addf %509, %510 : vector<8x128xf32>
    %512 = arith.negf %511 : vector<8x128xf32>
    %513 = math.exp %512 : vector<8x128xf32>
    %cst_187 = arith.constant 1.000000e+00 : f32
    %514 = vector.broadcast %cst_187 : f32 to vector<8x128xf32>
    %515 = arith.addf %514, %513 : vector<8x128xf32>
    %516 = arith.divf %514, %515 : vector<8x128xf32>
    %517 = vector.extract_strided_slice %516 {offsets = [0, 0], sizes = [8, 32], strides = [1, 1]} : vector<8x128xf32> to vector<8x32xf32>
    %518 = vector.extract_strided_slice %516 {offsets = [0, 32], sizes = [8, 32], strides = [1, 1]} : vector<8x128xf32> to vector<8x32xf32>
    %519 = vector.extract_strided_slice %516 {offsets = [0, 64], sizes = [8, 32], strides = [1, 1]} : vector<8x128xf32> to vector<8x32xf32>
    %cst_188 = arith.constant 2.000000e+00 : f32
    %520 = vector.broadcast %cst_188 : f32 to vector<8x32xf32>
    %521 = arith.mulf %520, %519 : vector<8x32xf32>
    %cst_189 = arith.constant 1.000000e+00 : f32
    %522 = vector.broadcast %cst_189 : f32 to vector<8x32xf32>
    %523 = arith.subf %521, %522 : vector<8x32xf32>
    %524 = vector.extract_strided_slice %516 {offsets = [0, 96], sizes = [8, 32], strides = [1, 1]} : vector<8x128xf32> to vector<8x32xf32>
    %525 = arith.mulf %518, %452 : vector<8x32xf32>
    %526 = arith.mulf %517, %523 : vector<8x32xf32>
    %527 = arith.addf %525, %526 : vector<8x32xf32>
    %528 = math.tanh %527 : vector<8x32xf32>
    %529 = arith.mulf %524, %528 : vector<8x32xf32>
    %c1_190 = arith.constant 1 : index
    %c0_191 = arith.constant 0 : index
    %c0_192 = arith.constant 0 : index
    %530 = vector.load %arg5[%c1_190, %c0_191, %c0_192] : memref<2x64x128xf32, #tpu.memory_space<vmem>>, vector<1x64x128xf32>
    %531 = vector.shape_cast %530 : vector<1x64x128xf32> to vector<64x128xf32>
    %532 = vector.extract_strided_slice %531 {offsets = [0, 0], sizes = [32, 128], strides = [1, 1]} : vector<64x128xf32> to vector<32x128xf32>
    %cst_193 = arith.constant dense<0.000000e+00> : vector<8x128xf32>
    %533 = tpu.matmul %529, %532, %cst_193 {dimension_numbers = #tpu.dot_dimension_numbers<[1], [0], [0], [1], [0, 0, 1, 1], [], []>} : vector<8x32xf32>, vector<32x128xf32>, vector<8x128xf32> -> vector<8x128xf32>
    %534 = vector.extract_strided_slice %531 {offsets = [32, 0], sizes = [32, 128], strides = [1, 1]} : vector<64x128xf32> to vector<32x128xf32>
    %cst_194 = arith.constant dense<0.000000e+00> : vector<8x128xf32>
    %535 = tpu.matmul %481, %534, %cst_194 {dimension_numbers = #tpu.dot_dimension_numbers<[1], [0], [0], [1], [0, 0, 1, 1], [], []>} : vector<8x32xf32>, vector<32x128xf32>, vector<8x128xf32> -> vector<8x128xf32>
    %536 = arith.addf %533, %535 : vector<8x128xf32>
    %537 = vector.broadcast %344 : vector<1x128xf32> to vector<8x128xf32>
    %538 = arith.addf %536, %537 : vector<8x128xf32>
    %539 = arith.negf %538 : vector<8x128xf32>
    %540 = math.exp %539 : vector<8x128xf32>
    %cst_195 = arith.constant 1.000000e+00 : f32
    %541 = vector.broadcast %cst_195 : f32 to vector<8x128xf32>
    %542 = arith.addf %541, %540 : vector<8x128xf32>
    %543 = arith.divf %541, %542 : vector<8x128xf32>
    %544 = vector.extract_strided_slice %543 {offsets = [0, 0], sizes = [8, 32], strides = [1, 1]} : vector<8x128xf32> to vector<8x32xf32>
    %545 = vector.extract_strided_slice %543 {offsets = [0, 32], sizes = [8, 32], strides = [1, 1]} : vector<8x128xf32> to vector<8x32xf32>
    %546 = vector.extract_strided_slice %543 {offsets = [0, 64], sizes = [8, 32], strides = [1, 1]} : vector<8x128xf32> to vector<8x32xf32>
    %cst_196 = arith.constant 2.000000e+00 : f32
    %547 = vector.broadcast %cst_196 : f32 to vector<8x32xf32>
    %548 = arith.mulf %547, %546 : vector<8x32xf32>
    %cst_197 = arith.constant 1.000000e+00 : f32
    %549 = vector.broadcast %cst_197 : f32 to vector<8x32xf32>
    %550 = arith.subf %548, %549 : vector<8x32xf32>
    %551 = vector.extract_strided_slice %543 {offsets = [0, 96], sizes = [8, 32], strides = [1, 1]} : vector<8x128xf32> to vector<8x32xf32>
    %552 = arith.mulf %545, %479 : vector<8x32xf32>
    %553 = arith.mulf %544, %550 : vector<8x32xf32>
    %554 = arith.addf %552, %553 : vector<8x32xf32>
    %555 = math.tanh %554 : vector<8x32xf32>
    %556 = arith.mulf %551, %555 : vector<8x32xf32>
    %cst_198 = arith.constant dense<0.000000e+00> : vector<8x128xf32>
    %557 = tpu.matmul %556, %345, %cst_198 {dimension_numbers = #tpu.dot_dimension_numbers<[1], [0], [0], [1], [0, 0, 1, 1], [], []>} : vector<8x32xf32>, vector<32x128xf32>, vector<8x128xf32> -> vector<8x128xf32>
    %558 = vector.broadcast %346 : vector<1x128xf32> to vector<8x128xf32>
    %559 = arith.addf %557, %558 : vector<8x128xf32>
    %c3_199 = arith.constant 3 : index
    %c0_200 = arith.constant 0 : index
    %c0_201 = arith.constant 0 : index
    %560 = vector.load %arg9[%c3_199, %c0_200, %c0_201] : memref<8x8x128xf32, #tpu.memory_space<vmem>>, vector<1x8x128xf32>
    %561 = vector.shape_cast %560 : vector<1x8x128xf32> to vector<8x128xf32>
    %562 = vector.shape_cast %559 : vector<8x128xf32> to vector<1x8x128xf32>
    tpu.vector_store %arg9[%c3_199, %c0_200, %c0_201], %562 {strides = array<i32>} : memref<8x8x128xf32, #tpu.memory_space<vmem>>, vector<1x8x128xf32>,
    %c3_202 = arith.constant 3 : index
    %c0_203 = arith.constant 0 : index
    %c0_204 = arith.constant 0 : index
    %563 = vector.load %arg1[%c3_202, %c0_203, %c0_204] : memref<8x8x32xf32, #tpu.memory_space<vmem>>, vector<1x8x32xf32>
    %564 = vector.shape_cast %563 : vector<1x8x32xf32> to vector<8x32xf32>
    %c0_205 = arith.constant 0 : index
    %c0_206 = arith.constant 0 : index
    %c0_207 = arith.constant 0 : index
    %565 = vector.load %arg5[%c0_205, %c0_206, %c0_207] : memref<2x64x128xf32, #tpu.memory_space<vmem>>, vector<1x64x128xf32>
    %566 = vector.shape_cast %565 : vector<1x64x128xf32> to vector<64x128xf32>
    %567 = vector.extract_strided_slice %566 {offsets = [0, 0], sizes = [32, 128], strides = [1, 1]} : vector<64x128xf32> to vector<32x128xf32>
    %cst_208 = arith.constant dense<0.000000e+00> : vector<8x128xf32>
    %568 = tpu.matmul %564, %567, %cst_208 {dimension_numbers = #tpu.dot_dimension_numbers<[1], [0], [0], [1], [0, 0, 1, 1], [], []>} : vector<8x32xf32>, vector<32x128xf32>, vector<8x128xf32> -> vector<8x128xf32>
    %569 = vector.extract_strided_slice %566 {offsets = [32, 0], sizes = [32, 128], strides = [1, 1]} : vector<64x128xf32> to vector<32x128xf32>
    %cst_209 = arith.constant dense<0.000000e+00> : vector<8x128xf32>
    %570 = tpu.matmul %529, %569, %cst_209 {dimension_numbers = #tpu.dot_dimension_numbers<[1], [0], [0], [1], [0, 0, 1, 1], [], []>} : vector<8x32xf32>, vector<32x128xf32>, vector<8x128xf32> -> vector<8x128xf32>
    %571 = arith.addf %568, %570 : vector<8x128xf32>
    %572 = vector.broadcast %342 : vector<1x128xf32> to vector<8x128xf32>
    %573 = arith.addf %571, %572 : vector<8x128xf32>
    %574 = arith.negf %573 : vector<8x128xf32>
    %575 = math.exp %574 : vector<8x128xf32>
    %cst_210 = arith.constant 1.000000e+00 : f32
    %576 = vector.broadcast %cst_210 : f32 to vector<8x128xf32>
    %577 = arith.addf %576, %575 : vector<8x128xf32>
    %578 = arith.divf %576, %577 : vector<8x128xf32>
    %579 = vector.extract_strided_slice %578 {offsets = [0, 0], sizes = [8, 32], strides = [1, 1]} : vector<8x128xf32> to vector<8x32xf32>
    %580 = vector.extract_strided_slice %578 {offsets = [0, 32], sizes = [8, 32], strides = [1, 1]} : vector<8x128xf32> to vector<8x32xf32>
    %581 = vector.extract_strided_slice %578 {offsets = [0, 64], sizes = [8, 32], strides = [1, 1]} : vector<8x128xf32> to vector<8x32xf32>
    %cst_211 = arith.constant 2.000000e+00 : f32
    %582 = vector.broadcast %cst_211 : f32 to vector<8x32xf32>
    %583 = arith.mulf %582, %581 : vector<8x32xf32>
    %cst_212 = arith.constant 1.000000e+00 : f32
    %584 = vector.broadcast %cst_212 : f32 to vector<8x32xf32>
    %585 = arith.subf %583, %584 : vector<8x32xf32>
    %586 = vector.extract_strided_slice %578 {offsets = [0, 96], sizes = [8, 32], strides = [1, 1]} : vector<8x128xf32> to vector<8x32xf32>
    %587 = arith.mulf %580, %527 : vector<8x32xf32>
    %588 = arith.mulf %579, %585 : vector<8x32xf32>
    %589 = arith.addf %587, %588 : vector<8x32xf32>
    %590 = math.tanh %589 : vector<8x32xf32>
    %591 = arith.mulf %586, %590 : vector<8x32xf32>
    %c1_213 = arith.constant 1 : index
    %c0_214 = arith.constant 0 : index
    %c0_215 = arith.constant 0 : index
    %592 = vector.load %arg5[%c1_213, %c0_214, %c0_215] : memref<2x64x128xf32, #tpu.memory_space<vmem>>, vector<1x64x128xf32>
    %593 = vector.shape_cast %592 : vector<1x64x128xf32> to vector<64x128xf32>
    %594 = vector.extract_strided_slice %593 {offsets = [0, 0], sizes = [32, 128], strides = [1, 1]} : vector<64x128xf32> to vector<32x128xf32>
    %cst_216 = arith.constant dense<0.000000e+00> : vector<8x128xf32>
    %595 = tpu.matmul %591, %594, %cst_216 {dimension_numbers = #tpu.dot_dimension_numbers<[1], [0], [0], [1], [0, 0, 1, 1], [], []>} : vector<8x32xf32>, vector<32x128xf32>, vector<8x128xf32> -> vector<8x128xf32>
    %596 = vector.extract_strided_slice %593 {offsets = [32, 0], sizes = [32, 128], strides = [1, 1]} : vector<64x128xf32> to vector<32x128xf32>
    %cst_217 = arith.constant dense<0.000000e+00> : vector<8x128xf32>
    %597 = tpu.matmul %556, %596, %cst_217 {dimension_numbers = #tpu.dot_dimension_numbers<[1], [0], [0], [1], [0, 0, 1, 1], [], []>} : vector<8x32xf32>, vector<32x128xf32>, vector<8x128xf32> -> vector<8x128xf32>
    %598 = arith.addf %595, %597 : vector<8x128xf32>
    %599 = vector.broadcast %344 : vector<1x128xf32> to vector<8x128xf32>
    %600 = arith.addf %598, %599 : vector<8x128xf32>
    %601 = arith.negf %600 : vector<8x128xf32>
    %602 = math.exp %601 : vector<8x128xf32>
    %cst_218 = arith.constant 1.000000e+00 : f32
    %603 = vector.broadcast %cst_218 : f32 to vector<8x128xf32>
    %604 = arith.addf %603, %602 : vector<8x128xf32>
    %605 = arith.divf %603, %604 : vector<8x128xf32>
    %606 = vector.extract_strided_slice %605 {offsets = [0, 0], sizes = [8, 32], strides = [1, 1]} : vector<8x128xf32> to vector<8x32xf32>
    %607 = vector.extract_strided_slice %605 {offsets = [0, 32], sizes = [8, 32], strides = [1, 1]} : vector<8x128xf32> to vector<8x32xf32>
    %608 = vector.extract_strided_slice %605 {offsets = [0, 64], sizes = [8, 32], strides = [1, 1]} : vector<8x128xf32> to vector<8x32xf32>
    %cst_219 = arith.constant 2.000000e+00 : f32
    %609 = vector.broadcast %cst_219 : f32 to vector<8x32xf32>
    %610 = arith.mulf %609, %608 : vector<8x32xf32>
    %cst_220 = arith.constant 1.000000e+00 : f32
    %611 = vector.broadcast %cst_220 : f32 to vector<8x32xf32>
    %612 = arith.subf %610, %611 : vector<8x32xf32>
    %613 = vector.extract_strided_slice %605 {offsets = [0, 96], sizes = [8, 32], strides = [1, 1]} : vector<8x128xf32> to vector<8x32xf32>
    %614 = arith.mulf %607, %554 : vector<8x32xf32>
    %615 = arith.mulf %606, %612 : vector<8x32xf32>
    %616 = arith.addf %614, %615 : vector<8x32xf32>
    %617 = math.tanh %616 : vector<8x32xf32>
    %618 = arith.mulf %613, %617 : vector<8x32xf32>
    %cst_221 = arith.constant dense<0.000000e+00> : vector<8x128xf32>
    %619 = tpu.matmul %618, %345, %cst_221 {dimension_numbers = #tpu.dot_dimension_numbers<[1], [0], [0], [1], [0, 0, 1, 1], [], []>} : vector<8x32xf32>, vector<32x128xf32>, vector<8x128xf32> -> vector<8x128xf32>
    %620 = vector.broadcast %346 : vector<1x128xf32> to vector<8x128xf32>
    %621 = arith.addf %619, %620 : vector<8x128xf32>
    %c4_222 = arith.constant 4 : index
    %c0_223 = arith.constant 0 : index
    %c0_224 = arith.constant 0 : index
    %622 = vector.load %arg9[%c4_222, %c0_223, %c0_224] : memref<8x8x128xf32, #tpu.memory_space<vmem>>, vector<1x8x128xf32>
    %623 = vector.shape_cast %622 : vector<1x8x128xf32> to vector<8x128xf32>
    %624 = vector.shape_cast %621 : vector<8x128xf32> to vector<1x8x128xf32>
    tpu.vector_store %arg9[%c4_222, %c0_223, %c0_224], %624 {strides = array<i32>} : memref<8x8x128xf32, #tpu.memory_space<vmem>>, vector<1x8x128xf32>,
    %c4_225 = arith.constant 4 : index
    %c0_226 = arith.constant 0 : index
    %c0_227 = arith.constant 0 : index
    %625 = vector.load %arg1[%c4_225, %c0_226, %c0_227] : memref<8x8x32xf32, #tpu.memory_space<vmem>>, vector<1x8x32xf32>
    %626 = vector.shape_cast %625 : vector<1x8x32xf32> to vector<8x32xf32>
    %c0_228 = arith.constant 0 : index
    %c0_229 = arith.constant 0 : index
    %c0_230 = arith.constant 0 : index
    %627 = vector.load %arg5[%c0_228, %c0_229, %c0_230] : memref<2x64x128xf32, #tpu.memory_space<vmem>>, vector<1x64x128xf32>
    %628 = vector.shape_cast %627 : vector<1x64x128xf32> to vector<64x128xf32>
    %629 = vector.extract_strided_slice %628 {offsets = [0, 0], sizes = [32, 128], strides = [1, 1]} : vector<64x128xf32> to vector<32x128xf32>
    %cst_231 = arith.constant dense<0.000000e+00> : vector<8x128xf32>
    %630 = tpu.matmul %626, %629, %cst_231 {dimension_numbers = #tpu.dot_dimension_numbers<[1], [0], [0], [1], [0, 0, 1, 1], [], []>} : vector<8x32xf32>, vector<32x128xf32>, vector<8x128xf32> -> vector<8x128xf32>
    %631 = vector.extract_strided_slice %628 {offsets = [32, 0], sizes = [32, 128], strides = [1, 1]} : vector<64x128xf32> to vector<32x128xf32>
    %cst_232 = arith.constant dense<0.000000e+00> : vector<8x128xf32>
    %632 = tpu.matmul %591, %631, %cst_232 {dimension_numbers = #tpu.dot_dimension_numbers<[1], [0], [0], [1], [0, 0, 1, 1], [], []>} : vector<8x32xf32>, vector<32x128xf32>, vector<8x128xf32> -> vector<8x128xf32>
    %633 = arith.addf %630, %632 : vector<8x128xf32>
    %634 = vector.broadcast %342 : vector<1x128xf32> to vector<8x128xf32>
    %635 = arith.addf %633, %634 : vector<8x128xf32>
    %636 = arith.negf %635 : vector<8x128xf32>
    %637 = math.exp %636 : vector<8x128xf32>
    %cst_233 = arith.constant 1.000000e+00 : f32
    %638 = vector.broadcast %cst_233 : f32 to vector<8x128xf32>
    %639 = arith.addf %638, %637 : vector<8x128xf32>
    %640 = arith.divf %638, %639 : vector<8x128xf32>
    %641 = vector.extract_strided_slice %640 {offsets = [0, 0], sizes = [8, 32], strides = [1, 1]} : vector<8x128xf32> to vector<8x32xf32>
    %642 = vector.extract_strided_slice %640 {offsets = [0, 32], sizes = [8, 32], strides = [1, 1]} : vector<8x128xf32> to vector<8x32xf32>
    %643 = vector.extract_strided_slice %640 {offsets = [0, 64], sizes = [8, 32], strides = [1, 1]} : vector<8x128xf32> to vector<8x32xf32>
    %cst_234 = arith.constant 2.000000e+00 : f32
    %644 = vector.broadcast %cst_234 : f32 to vector<8x32xf32>
    %645 = arith.mulf %644, %643 : vector<8x32xf32>
    %cst_235 = arith.constant 1.000000e+00 : f32
    %646 = vector.broadcast %cst_235 : f32 to vector<8x32xf32>
    %647 = arith.subf %645, %646 : vector<8x32xf32>
    %648 = vector.extract_strided_slice %640 {offsets = [0, 96], sizes = [8, 32], strides = [1, 1]} : vector<8x128xf32> to vector<8x32xf32>
    %649 = arith.mulf %642, %589 : vector<8x32xf32>
    %650 = arith.mulf %641, %647 : vector<8x32xf32>
    %651 = arith.addf %649, %650 : vector<8x32xf32>
    %652 = math.tanh %651 : vector<8x32xf32>
    %653 = arith.mulf %648, %652 : vector<8x32xf32>
    %c1_236 = arith.constant 1 : index
    %c0_237 = arith.constant 0 : index
    %c0_238 = arith.constant 0 : index
    %654 = vector.load %arg5[%c1_236, %c0_237, %c0_238] : memref<2x64x128xf32, #tpu.memory_space<vmem>>, vector<1x64x128xf32>
    %655 = vector.shape_cast %654 : vector<1x64x128xf32> to vector<64x128xf32>
    %656 = vector.extract_strided_slice %655 {offsets = [0, 0], sizes = [32, 128], strides = [1, 1]} : vector<64x128xf32> to vector<32x128xf32>
    %cst_239 = arith.constant dense<0.000000e+00> : vector<8x128xf32>
    %657 = tpu.matmul %653, %656, %cst_239 {dimension_numbers = #tpu.dot_dimension_numbers<[1], [0], [0], [1], [0, 0, 1, 1], [], []>} : vector<8x32xf32>, vector<32x128xf32>, vector<8x128xf32> -> vector<8x128xf32>
    %658 = vector.extract_strided_slice %655 {offsets = [32, 0], sizes = [32, 128], strides = [1, 1]} : vector<64x128xf32> to vector<32x128xf32>
    %cst_240 = arith.constant dense<0.000000e+00> : vector<8x128xf32>
    %659 = tpu.matmul %618, %658, %cst_240 {dimension_numbers = #tpu.dot_dimension_numbers<[1], [0], [0], [1], [0, 0, 1, 1], [], []>} : vector<8x32xf32>, vector<32x128xf32>, vector<8x128xf32> -> vector<8x128xf32>
    %660 = arith.addf %657, %659 : vector<8x128xf32>
    %661 = vector.broadcast %344 : vector<1x128xf32> to vector<8x128xf32>
    %662 = arith.addf %660, %661 : vector<8x128xf32>
    %663 = arith.negf %662 : vector<8x128xf32>
    %664 = math.exp %663 : vector<8x128xf32>
    %cst_241 = arith.constant 1.000000e+00 : f32
    %665 = vector.broadcast %cst_241 : f32 to vector<8x128xf32>
    %666 = arith.addf %665, %664 : vector<8x128xf32>
    %667 = arith.divf %665, %666 : vector<8x128xf32>
    %668 = vector.extract_strided_slice %667 {offsets = [0, 0], sizes = [8, 32], strides = [1, 1]} : vector<8x128xf32> to vector<8x32xf32>
    %669 = vector.extract_strided_slice %667 {offsets = [0, 32], sizes = [8, 32], strides = [1, 1]} : vector<8x128xf32> to vector<8x32xf32>
    %670 = vector.extract_strided_slice %667 {offsets = [0, 64], sizes = [8, 32], strides = [1, 1]} : vector<8x128xf32> to vector<8x32xf32>
    %cst_242 = arith.constant 2.000000e+00 : f32
    %671 = vector.broadcast %cst_242 : f32 to vector<8x32xf32>
    %672 = arith.mulf %671, %670 : vector<8x32xf32>
    %cst_243 = arith.constant 1.000000e+00 : f32
    %673 = vector.broadcast %cst_243 : f32 to vector<8x32xf32>
    %674 = arith.subf %672, %673 : vector<8x32xf32>
    %675 = vector.extract_strided_slice %667 {offsets = [0, 96], sizes = [8, 32], strides = [1, 1]} : vector<8x128xf32> to vector<8x32xf32>
    %676 = arith.mulf %669, %616 : vector<8x32xf32>
    %677 = arith.mulf %668, %674 : vector<8x32xf32>
    %678 = arith.addf %676, %677 : vector<8x32xf32>
    %679 = math.tanh %678 : vector<8x32xf32>
    %680 = arith.mulf %675, %679 : vector<8x32xf32>
    %cst_244 = arith.constant dense<0.000000e+00> : vector<8x128xf32>
    %681 = tpu.matmul %680, %345, %cst_244 {dimension_numbers = #tpu.dot_dimension_numbers<[1], [0], [0], [1], [0, 0, 1, 1], [], []>} : vector<8x32xf32>, vector<32x128xf32>, vector<8x128xf32> -> vector<8x128xf32>
    %682 = vector.broadcast %346 : vector<1x128xf32> to vector<8x128xf32>
    %683 = arith.addf %681, %682 : vector<8x128xf32>
    %c5_245 = arith.constant 5 : index
    %c0_246 = arith.constant 0 : index
    %c0_247 = arith.constant 0 : index
    %684 = vector.load %arg9[%c5_245, %c0_246, %c0_247] : memref<8x8x128xf32, #tpu.memory_space<vmem>>, vector<1x8x128xf32>
    %685 = vector.shape_cast %684 : vector<1x8x128xf32> to vector<8x128xf32>
    %686 = vector.shape_cast %683 : vector<8x128xf32> to vector<1x8x128xf32>
    tpu.vector_store %arg9[%c5_245, %c0_246, %c0_247], %686 {strides = array<i32>} : memref<8x8x128xf32, #tpu.memory_space<vmem>>, vector<1x8x128xf32>,
    %687 = tpu.iota {dimensions = array<i32: 1>} : vector<8x128xi32>
    %cst_248 = arith.constant dense<0xFF800000> : vector<8xf32>
    %688 = vector.multi_reduction <maximumf>, %683, %cst_248 [1] : vector<8x128xf32> to vector<8xf32>
    %689 = vector.shape_cast %688 : vector<8xf32> to vector<8x1xf32>
    %690 = vector.broadcast %689 : vector<8x1xf32> to vector<8x128xf32>
    %691 = arith.cmpf oeq, %683, %690 : vector<8x128xf32>
    %c128_i32_249 = arith.constant 128 : i32
    %692 = vector.broadcast %c128_i32_249 : i32 to vector<8x128xi32>
    %693 = arith.select %691, %687, %692 : vector<8x128xi1>, vector<8x128xi32>
    %cst_250 = arith.constant dense<2147483647> : vector<8xi32>
    %694 = vector.multi_reduction <minsi>, %693, %cst_250 [1] : vector<8x128xi32> to vector<8xi32>
    %695 = vector.shape_cast %694 : vector<8xi32> to vector<8x1xi32>
    %696 = vector.broadcast %695 : vector<8x1xi32> to vector<8x128xi32>
    %697 = arith.cmpi eq, %687, %696 : vector<8x128xi32>
    %698 = arith.extui %697 : vector<8x128xi1> to vector<8x128xi32>
    %699 = arith.sitofp %698 : vector<8x128xi32> to vector<8x128xf32>
    %c0_251 = arith.constant 0 : index
    %c0_252 = arith.constant 0 : index
    %700 = vector.load %arg2[%c0_251, %c0_252] : memref<128x32xf32, #tpu.memory_space<vmem>>, vector<128x32xf32>
    %cst_253 = arith.constant dense<0.000000e+00> : vector<8x32xf32>
    %701 = tpu.matmul %699, %700, %cst_253 {dimension_numbers = #tpu.dot_dimension_numbers<[1], [0], [0], [1], [0, 0, 1, 1], [], []>} : vector<8x128xf32>, vector<128x32xf32>, vector<8x32xf32> -> vector<8x32xf32>
    %c0_254 = arith.constant 0 : index
    %c0_255 = arith.constant 0 : index
    %c0_256 = arith.constant 0 : index
    %702 = vector.load %arg5[%c0_254, %c0_255, %c0_256] : memref<2x64x128xf32, #tpu.memory_space<vmem>>, vector<1x64x128xf32>
    %703 = vector.shape_cast %702 : vector<1x64x128xf32> to vector<64x128xf32>
    %704 = vector.extract_strided_slice %703 {offsets = [0, 0], sizes = [32, 128], strides = [1, 1]} : vector<64x128xf32> to vector<32x128xf32>
    %cst_257 = arith.constant dense<0.000000e+00> : vector<8x128xf32>
    %705 = tpu.matmul %701, %704, %cst_257 {dimension_numbers = #tpu.dot_dimension_numbers<[1], [0], [0], [1], [0, 0, 1, 1], [], []>} : vector<8x32xf32>, vector<32x128xf32>, vector<8x128xf32> -> vector<8x128xf32>
    %706 = vector.extract_strided_slice %703 {offsets = [32, 0], sizes = [32, 128], strides = [1, 1]} : vector<64x128xf32> to vector<32x128xf32>
    %cst_258 = arith.constant dense<0.000000e+00> : vector<8x128xf32>
    %707 = tpu.matmul %653, %706, %cst_258 {dimension_numbers = #tpu.dot_dimension_numbers<[1], [0], [0], [1], [0, 0, 1, 1], [], []>} : vector<8x32xf32>, vector<32x128xf32>, vector<8x128xf32> -> vector<8x128xf32>
    %708 = arith.addf %705, %707 : vector<8x128xf32>
    %709 = vector.broadcast %342 : vector<1x128xf32> to vector<8x128xf32>
    %710 = arith.addf %708, %709 : vector<8x128xf32>
    %711 = arith.negf %710 : vector<8x128xf32>
    %712 = math.exp %711 : vector<8x128xf32>
    %cst_259 = arith.constant 1.000000e+00 : f32
    %713 = vector.broadcast %cst_259 : f32 to vector<8x128xf32>
    %714 = arith.addf %713, %712 : vector<8x128xf32>
    %715 = arith.divf %713, %714 : vector<8x128xf32>
    %716 = vector.extract_strided_slice %715 {offsets = [0, 0], sizes = [8, 32], strides = [1, 1]} : vector<8x128xf32> to vector<8x32xf32>
    %717 = vector.extract_strided_slice %715 {offsets = [0, 32], sizes = [8, 32], strides = [1, 1]} : vector<8x128xf32> to vector<8x32xf32>
    %718 = vector.extract_strided_slice %715 {offsets = [0, 64], sizes = [8, 32], strides = [1, 1]} : vector<8x128xf32> to vector<8x32xf32>
    %cst_260 = arith.constant 2.000000e+00 : f32
    %719 = vector.broadcast %cst_260 : f32 to vector<8x32xf32>
    %720 = arith.mulf %719, %718 : vector<8x32xf32>
    %cst_261 = arith.constant 1.000000e+00 : f32
    %721 = vector.broadcast %cst_261 : f32 to vector<8x32xf32>
    %722 = arith.subf %720, %721 : vector<8x32xf32>
    %723 = vector.extract_strided_slice %715 {offsets = [0, 96], sizes = [8, 32], strides = [1, 1]} : vector<8x128xf32> to vector<8x32xf32>
    %724 = arith.mulf %717, %651 : vector<8x32xf32>
    %725 = arith.mulf %716, %722 : vector<8x32xf32>
    %726 = arith.addf %724, %725 : vector<8x32xf32>
    %727 = math.tanh %726 : vector<8x32xf32>
    %728 = arith.mulf %723, %727 : vector<8x32xf32>
    %c1_262 = arith.constant 1 : index
    %c0_263 = arith.constant 0 : index
    %c0_264 = arith.constant 0 : index
    %729 = vector.load %arg5[%c1_262, %c0_263, %c0_264] : memref<2x64x128xf32, #tpu.memory_space<vmem>>, vector<1x64x128xf32>
    %730 = vector.shape_cast %729 : vector<1x64x128xf32> to vector<64x128xf32>
    %731 = vector.extract_strided_slice %730 {offsets = [0, 0], sizes = [32, 128], strides = [1, 1]} : vector<64x128xf32> to vector<32x128xf32>
    %cst_265 = arith.constant dense<0.000000e+00> : vector<8x128xf32>
    %732 = tpu.matmul %728, %731, %cst_265 {dimension_numbers = #tpu.dot_dimension_numbers<[1], [0], [0], [1], [0, 0, 1, 1], [], []>} : vector<8x32xf32>, vector<32x128xf32>, vector<8x128xf32> -> vector<8x128xf32>
    %733 = vector.extract_strided_slice %730 {offsets = [32, 0], sizes = [32, 128], strides = [1, 1]} : vector<64x128xf32> to vector<32x128xf32>
    %cst_266 = arith.constant dense<0.000000e+00> : vector<8x128xf32>
    %734 = tpu.matmul %680, %733, %cst_266 {dimension_numbers = #tpu.dot_dimension_numbers<[1], [0], [0], [1], [0, 0, 1, 1], [], []>} : vector<8x32xf32>, vector<32x128xf32>, vector<8x128xf32> -> vector<8x128xf32>
    %735 = arith.addf %732, %734 : vector<8x128xf32>
    %736 = vector.broadcast %344 : vector<1x128xf32> to vector<8x128xf32>
    %737 = arith.addf %735, %736 : vector<8x128xf32>
    %738 = arith.negf %737 : vector<8x128xf32>
    %739 = math.exp %738 : vector<8x128xf32>
    %cst_267 = arith.constant 1.000000e+00 : f32
    %740 = vector.broadcast %cst_267 : f32 to vector<8x128xf32>
    %741 = arith.addf %740, %739 : vector<8x128xf32>
    %742 = arith.divf %740, %741 : vector<8x128xf32>
    %743 = vector.extract_strided_slice %742 {offsets = [0, 0], sizes = [8, 32], strides = [1, 1]} : vector<8x128xf32> to vector<8x32xf32>
    %744 = vector.extract_strided_slice %742 {offsets = [0, 32], sizes = [8, 32], strides = [1, 1]} : vector<8x128xf32> to vector<8x32xf32>
    %745 = vector.extract_strided_slice %742 {offsets = [0, 64], sizes = [8, 32], strides = [1, 1]} : vector<8x128xf32> to vector<8x32xf32>
    %cst_268 = arith.constant 2.000000e+00 : f32
    %746 = vector.broadcast %cst_268 : f32 to vector<8x32xf32>
    %747 = arith.mulf %746, %745 : vector<8x32xf32>
    %cst_269 = arith.constant 1.000000e+00 : f32
    %748 = vector.broadcast %cst_269 : f32 to vector<8x32xf32>
    %749 = arith.subf %747, %748 : vector<8x32xf32>
    %750 = vector.extract_strided_slice %742 {offsets = [0, 96], sizes = [8, 32], strides = [1, 1]} : vector<8x128xf32> to vector<8x32xf32>
    %751 = arith.mulf %744, %678 : vector<8x32xf32>
    %752 = arith.mulf %743, %749 : vector<8x32xf32>
    %753 = arith.addf %751, %752 : vector<8x32xf32>
    %754 = math.tanh %753 : vector<8x32xf32>
    %755 = arith.mulf %750, %754 : vector<8x32xf32>
    %cst_270 = arith.constant dense<0.000000e+00> : vector<8x128xf32>
    %756 = tpu.matmul %755, %345, %cst_270 {dimension_numbers = #tpu.dot_dimension_numbers<[1], [0], [0], [1], [0, 0, 1, 1], [], []>} : vector<8x32xf32>, vector<32x128xf32>, vector<8x128xf32> -> vector<8x128xf32>
    %757 = vector.broadcast %346 : vector<1x128xf32> to vector<8x128xf32>
    %758 = arith.addf %756, %757 : vector<8x128xf32>
    %c6 = arith.constant 6 : index
    %c0_271 = arith.constant 0 : index
    %c0_272 = arith.constant 0 : index
    %759 = vector.load %arg9[%c6, %c0_271, %c0_272] : memref<8x8x128xf32, #tpu.memory_space<vmem>>, vector<1x8x128xf32>
    %760 = vector.shape_cast %759 : vector<1x8x128xf32> to vector<8x128xf32>
    %761 = vector.shape_cast %758 : vector<8x128xf32> to vector<1x8x128xf32>
    tpu.vector_store %arg9[%c6, %c0_271, %c0_272], %761 {strides = array<i32>} : memref<8x8x128xf32, #tpu.memory_space<vmem>>, vector<1x8x128xf32>,
    %c6_273 = arith.constant 6 : index
    %c0_274 = arith.constant 0 : index
    %c0_275 = arith.constant 0 : index
    %762 = vector.load %arg1[%c6_273, %c0_274, %c0_275] : memref<8x8x32xf32, #tpu.memory_space<vmem>>, vector<1x8x32xf32>
    %763 = vector.shape_cast %762 : vector<1x8x32xf32> to vector<8x32xf32>
    %c0_276 = arith.constant 0 : index
    %c0_277 = arith.constant 0 : index
    %c0_278 = arith.constant 0 : index
    %764 = vector.load %arg5[%c0_276, %c0_277, %c0_278] : memref<2x64x128xf32, #tpu.memory_space<vmem>>, vector<1x64x128xf32>
    %765 = vector.shape_cast %764 : vector<1x64x128xf32> to vector<64x128xf32>
    %766 = vector.extract_strided_slice %765 {offsets = [0, 0], sizes = [32, 128], strides = [1, 1]} : vector<64x128xf32> to vector<32x128xf32>
    %cst_279 = arith.constant dense<0.000000e+00> : vector<8x128xf32>
    %767 = tpu.matmul %763, %766, %cst_279 {dimension_numbers = #tpu.dot_dimension_numbers<[1], [0], [0], [1], [0, 0, 1, 1], [], []>} : vector<8x32xf32>, vector<32x128xf32>, vector<8x128xf32> -> vector<8x128xf32>
    %768 = vector.extract_strided_slice %765 {offsets = [32, 0], sizes = [32, 128], strides = [1, 1]} : vector<64x128xf32> to vector<32x128xf32>
    %cst_280 = arith.constant dense<0.000000e+00> : vector<8x128xf32>
    %769 = tpu.matmul %728, %768, %cst_280 {dimension_numbers = #tpu.dot_dimension_numbers<[1], [0], [0], [1], [0, 0, 1, 1], [], []>} : vector<8x32xf32>, vector<32x128xf32>, vector<8x128xf32> -> vector<8x128xf32>
    %770 = arith.addf %767, %769 : vector<8x128xf32>
    %771 = vector.broadcast %342 : vector<1x128xf32> to vector<8x128xf32>
    %772 = arith.addf %770, %771 : vector<8x128xf32>
    %773 = arith.negf %772 : vector<8x128xf32>
    %774 = math.exp %773 : vector<8x128xf32>
    %cst_281 = arith.constant 1.000000e+00 : f32
    %775 = vector.broadcast %cst_281 : f32 to vector<8x128xf32>
    %776 = arith.addf %775, %774 : vector<8x128xf32>
    %777 = arith.divf %775, %776 : vector<8x128xf32>
    %778 = vector.extract_strided_slice %777 {offsets = [0, 0], sizes = [8, 32], strides = [1, 1]} : vector<8x128xf32> to vector<8x32xf32>
    %779 = vector.extract_strided_slice %777 {offsets = [0, 32], sizes = [8, 32], strides = [1, 1]} : vector<8x128xf32> to vector<8x32xf32>
    %780 = vector.extract_strided_slice %777 {offsets = [0, 64], sizes = [8, 32], strides = [1, 1]} : vector<8x128xf32> to vector<8x32xf32>
    %cst_282 = arith.constant 2.000000e+00 : f32
    %781 = vector.broadcast %cst_282 : f32 to vector<8x32xf32>
    %782 = arith.mulf %781, %780 : vector<8x32xf32>
    %cst_283 = arith.constant 1.000000e+00 : f32
    %783 = vector.broadcast %cst_283 : f32 to vector<8x32xf32>
    %784 = arith.subf %782, %783 : vector<8x32xf32>
    %785 = vector.extract_strided_slice %777 {offsets = [0, 96], sizes = [8, 32], strides = [1, 1]} : vector<8x128xf32> to vector<8x32xf32>
    %786 = arith.mulf %779, %726 : vector<8x32xf32>
    %787 = arith.mulf %778, %784 : vector<8x32xf32>
    %788 = arith.addf %786, %787 : vector<8x32xf32>
    %789 = math.tanh %788 : vector<8x32xf32>
    %790 = arith.mulf %785, %789 : vector<8x32xf32>
    %c1_284 = arith.constant 1 : index
    %c0_285 = arith.constant 0 : index
    %c0_286 = arith.constant 0 : index
    %791 = vector.load %arg5[%c1_284, %c0_285, %c0_286] : memref<2x64x128xf32, #tpu.memory_space<vmem>>, vector<1x64x128xf32>
    %792 = vector.shape_cast %791 : vector<1x64x128xf32> to vector<64x128xf32>
    %793 = vector.extract_strided_slice %792 {offsets = [0, 0], sizes = [32, 128], strides = [1, 1]} : vector<64x128xf32> to vector<32x128xf32>
    %cst_287 = arith.constant dense<0.000000e+00> : vector<8x128xf32>
    %794 = tpu.matmul %790, %793, %cst_287 {dimension_numbers = #tpu.dot_dimension_numbers<[1], [0], [0], [1], [0, 0, 1, 1], [], []>} : vector<8x32xf32>, vector<32x128xf32>, vector<8x128xf32> -> vector<8x128xf32>
    %795 = vector.extract_strided_slice %792 {offsets = [32, 0], sizes = [32, 128], strides = [1, 1]} : vector<64x128xf32> to vector<32x128xf32>
    %cst_288 = arith.constant dense<0.000000e+00> : vector<8x128xf32>
    %796 = tpu.matmul %755, %795, %cst_288 {dimension_numbers = #tpu.dot_dimension_numbers<[1], [0], [0], [1], [0, 0, 1, 1], [], []>} : vector<8x32xf32>, vector<32x128xf32>, vector<8x128xf32> -> vector<8x128xf32>
    %797 = arith.addf %794, %796 : vector<8x128xf32>
    %798 = vector.broadcast %344 : vector<1x128xf32> to vector<8x128xf32>
    %799 = arith.addf %797, %798 : vector<8x128xf32>
    %800 = arith.negf %799 : vector<8x128xf32>
    %801 = math.exp %800 : vector<8x128xf32>
    %cst_289 = arith.constant 1.000000e+00 : f32
    %802 = vector.broadcast %cst_289 : f32 to vector<8x128xf32>
    %803 = arith.addf %802, %801 : vector<8x128xf32>
    %804 = arith.divf %802, %803 : vector<8x128xf32>
    %805 = vector.extract_strided_slice %804 {offsets = [0, 0], sizes = [8, 32], strides = [1, 1]} : vector<8x128xf32> to vector<8x32xf32>
    %806 = vector.extract_strided_slice %804 {offsets = [0, 32], sizes = [8, 32], strides = [1, 1]} : vector<8x128xf32> to vector<8x32xf32>
    %807 = vector.extract_strided_slice %804 {offsets = [0, 64], sizes = [8, 32], strides = [1, 1]} : vector<8x128xf32> to vector<8x32xf32>
    %cst_290 = arith.constant 2.000000e+00 : f32
    %808 = vector.broadcast %cst_290 : f32 to vector<8x32xf32>
    %809 = arith.mulf %808, %807 : vector<8x32xf32>
    %cst_291 = arith.constant 1.000000e+00 : f32
    %810 = vector.broadcast %cst_291 : f32 to vector<8x32xf32>
    %811 = arith.subf %809, %810 : vector<8x32xf32>
    %812 = vector.extract_strided_slice %804 {offsets = [0, 96], sizes = [8, 32], strides = [1, 1]} : vector<8x128xf32> to vector<8x32xf32>
    %813 = arith.mulf %806, %753 : vector<8x32xf32>
    %814 = arith.mulf %805, %811 : vector<8x32xf32>
    %815 = arith.addf %813, %814 : vector<8x32xf32>
    %816 = math.tanh %815 : vector<8x32xf32>
    %817 = arith.mulf %812, %816 : vector<8x32xf32>
    %cst_292 = arith.constant dense<0.000000e+00> : vector<8x128xf32>
    %818 = tpu.matmul %817, %345, %cst_292 {dimension_numbers = #tpu.dot_dimension_numbers<[1], [0], [0], [1], [0, 0, 1, 1], [], []>} : vector<8x32xf32>, vector<32x128xf32>, vector<8x128xf32> -> vector<8x128xf32>
    %819 = vector.broadcast %346 : vector<1x128xf32> to vector<8x128xf32>
    %820 = arith.addf %818, %819 : vector<8x128xf32>
    %c7 = arith.constant 7 : index
    %c0_293 = arith.constant 0 : index
    %c0_294 = arith.constant 0 : index
    %821 = vector.load %arg9[%c7, %c0_293, %c0_294] : memref<8x8x128xf32, #tpu.memory_space<vmem>>, vector<1x8x128xf32>
    %822 = vector.shape_cast %821 : vector<1x8x128xf32> to vector<8x128xf32>
    %823 = vector.shape_cast %820 : vector<8x128xf32> to vector<1x8x128xf32>
    tpu.vector_store %arg9[%c7, %c0_293, %c0_294], %823 {strides = array<i32>} : memref<8x8x128xf32, #tpu.memory_space<vmem>>, vector<1x8x128xf32>,
    return
  }
}

</mosaic_0001>

<llo_original>
// kernel: seq2seq_forward.1
$region0: #{seq2seq_forward.1}
  #allocation0 [shape = 'u32[]', space=smem, size = 0x4, offset = 0x4, fixed_abs, tag = 'smem constant byte address 0x4 - core index']
  #allocation1 [shape = 'u32[72,128]{1,0:T(1,128)}', space=vmem, size = 0x9000, scoped, tag = 'internal scratch']
  %s0 = inlined_call_operand.vmem [shape: f32[6,8,32], index: 0, kind: input, shape index: {}]
  %s1 = inlined_call_operand.vmem [shape: f32[8,8,32], index: 1, kind: input, shape index: {}]
  %s2 = inlined_call_operand.vmem [shape: f32[128,32], index: 2, kind: input, shape index: {}]
  %s3 = inlined_call_operand.vmem [shape: f32[2,64,128], index: 3, kind: input, shape index: {}]
  %s4 = inlined_call_operand.vmem [shape: f32[2,1,128], index: 4, kind: input, shape index: {}]
  %s5 = inlined_call_operand.vmem [shape: f32[2,64,128], index: 5, kind: input, shape index: {}]
  %s6 = inlined_call_operand.vmem [shape: f32[2,1,128], index: 6, kind: input, shape index: {}]
  %s7 = inlined_call_operand.vmem [shape: f32[32,128], index: 7, kind: input, shape index: {}]
  %s8 = inlined_call_operand.vmem [shape: f32[1,128], index: 8, kind: input, shape index: {}]
  %s9 = inlined_call_operand.vmem [shape: f32[8,8,128], index: 9, kind: output, shape index: {}]
  %s10 = sld [smem:[#allocation0]]
  $region46: #{seq2seq_forward.1} parent=0
    _
  %s12 = ssub.s32 1, %s10
  %s13 = scalar_select 0, %s12, %s10
  // Predicated region
  $region2: #{seq2seq_forward.1} parent=0 // pred_check
    _
  $region3: #{seq2seq_forward.1} parent=0 // pred_check_branch
    %15 = sbr.rel (0) target = $region5
  $region4: #{seq2seq_forward.1} parent=0 // pred_region
    _
  $region5: #{seq2seq_forward.1} parent=0 // pred_fallthru
    _
  // Predicated region
  $region6: #{seq2seq_forward.1} parent=0 // pred_check
    _
  $region7: #{seq2seq_forward.1} parent=0 // pred_check_branch
    %17 = sbr.rel (0) target = $region9
  $region8: #{seq2seq_forward.1} parent=0 // pred_region
    _
  $region9: #{seq2seq_forward.1} parent=0 // pred_fallthru
    _
  // Predicated region
  $region10: #{seq2seq_forward.1} parent=0 // pred_check
    _
  $region11: #{seq2seq_forward.1} parent=0 // pred_check_branch
    %19 = sbr.rel (0) target = $region13
  $region12: #{seq2seq_forward.1} parent=0 // pred_region
    _
  $region13: #{seq2seq_forward.1} parent=0 // pred_fallthru
    _
  // Predicated region
  $region14: #{seq2seq_forward.1} parent=0 // pred_check
    _
  $region15: #{seq2seq_forward.1} parent=0 // pred_check_branch
    %21 = sbr.rel (0) target = $region17
  $region16: #{seq2seq_forward.1} parent=0 // pred_region
    _
  $region17: #{seq2seq_forward.1} parent=0 // pred_fallthru
    _
  // Predicated region
  $region18: #{seq2seq_forward.1} parent=0 // pred_check
    _
  $region19: #{seq2seq_forward.1} parent=0 // pred_check_branch
    %23 = sbr.rel (0) target = $region21
  $region20: #{seq2seq_forward.1} parent=0 // pred_region
    _
  $region21: #{seq2seq_forward.1} parent=0 // pred_fallthru
    _
  // Predicated region
  $region22: #{seq2seq_forward.1} parent=0 // pred_check
    _
  $region23: #{seq2seq_forward.1} parent=0 // pred_check_branch
    %25 = sbr.rel (0) target = $region25
  $region24: #{seq2seq_forward.1} parent=0 // pred_region
    _
  $region25: #{seq2seq_forward.1} parent=0 // pred_fallthru
    _
  // Predicated region
  $region26: #{seq2seq_forward.1} parent=0 // pred_check
    _
  $region27: #{seq2seq_forward.1} parent=0 // pred_check_branch
    %27 = sbr.rel (0) target = $region29
  $region28: #{seq2seq_forward.1} parent=0 // pred_region
    _
  $region29: #{seq2seq_forward.1} parent=0 // pred_fallthru
    _
  // Predicated region
  $region30: #{seq2seq_forward.1} parent=0 // pred_check
    _
  $region31: #{seq2seq_forward.1} parent=0 // pred_check_branch
    %29 = sbr.rel (0) target = $region33
  $region32: #{seq2seq_forward.1} parent=0 // pred_region
    _
  $region33: #{seq2seq_forward.1} parent=0 // pred_fallthru
    _
  // Predicated region
  $region34: #{seq2seq_forward.1} parent=0 // pred_check
    _
  $region35: #{seq2seq_forward.1} parent=0 // pred_check_branch
    %31 = sbr.rel (0) target = $region37
  $region36: #{seq2seq_forward.1} parent=0 // pred_region
    _
  $region37: #{seq2seq_forward.1} parent=0 // pred_fallthru
    _
  %v32 = vld [vmem:[%s4] sm:$0x1]
  %s33 = scalar_lea.vmem %s4, 1
  %v34 = vld [vmem:[%s33] sm:$0x1]
  %v35 = vld [vmem:[%s0] sm:$0xff]
  %v36 = vld [vmem:[%s3] sm:$0xff]
  %v37 = vld [vmem:[%s3 + $0x8] sm:$0xff]
  %v38 = vld [vmem:[%s3 + $0x10] sm:$0xff]
  %v39 = vld [vmem:[%s3 + $0x18] sm:$0xff]
  %v40 = vld [vmem:[%s3 + $0x20] sm:$0xff]
  %v41 = vld [vmem:[%s3 + $0x28] sm:$0xff]
  %v42 = vld [vmem:[%s3 + $0x30] sm:$0xff]
  %v43 = vld [vmem:[%s3 + $0x38] sm:$0xff]
  %vm44 = vcmask 261120
  %v46 = vsel %vm44, 0.0, 0
  %48 = vmatpush.msra.mxu0 0.0
  %49 = vmatpush.msra.mxu0 0.0
  %50 = vmatpush.msra.mxu0 0.0
  %51 = vmatpush.msra.mxu0 0.0
  %52 = vmatpush.msra.mxu0 0.0
  %53 = vmatpush.msra.mxu0 0.0
  %54 = vmatpush.msra.mxu0 0.0
  %55 = vmatpush.msra.mxu0 0.0
  %56 = vmatpush.msra.mxu0 0.0
  %57 = vmatpush.msra.mxu0 0.0
  %58 = vmatpush.msra.mxu0 0.0
  %59 = vmatpush.msra.mxu0 0.0
  %60 = vmatpush.msra.mxu0 %v43
  %61 = vmatpush.msra.mxu0 %v42
  %62 = vmatpush.msra.mxu0 %v41
  %63 = vmatpush.msra.mxu0 %v40
  %64 = vmatmul.f32.gmra.mxu0 %v46
  %v65 = vpop.f32.mrf.mxu0
  %v66 = vadd.f32 0.0, %v65
  %67 = vdwg.mxu0
  %v69 = vsel %vm44, %v35, 0
  %71 = vmatpush.msra.mxu0 0.0
  %72 = vmatpush.msra.mxu0 0.0
  %73 = vmatpush.msra.mxu0 0.0
  %74 = vmatpush.msra.mxu0 0.0
  %75 = vmatpush.msra.mxu0 0.0
  %76 = vmatpush.msra.mxu0 0.0
  %77 = vmatpush.msra.mxu0 0.0
  %78 = vmatpush.msra.mxu0 0.0
  %79 = vmatpush.msra.mxu0 0.0
  %80 = vmatpush.msra.mxu0 0.0
  %81 = vmatpush.msra.mxu0 0.0
  %82 = vmatpush.msra.mxu0 0.0
  %83 = vmatpush.msra.mxu0 %v39
  %84 = vmatpush.msra.mxu0 %v38
  %85 = vmatpush.msra.mxu0 %v37
  %86 = vmatpush.msra.mxu0 %v36
  %87 = vmatmul.f32.gmra.mxu0 %v69
  %v88 = vpop.f32.mrf.mxu0
  %v89 = vadd.f32 %v66, %v88
  %90 = vdwg.mxu0
  %v92 = vperm.slane %v32, 0
  %v94 = vadd.f32 %v89, %v92
  %v95 = vxor.u32 %v94, 2147483648
  %v96 = vmul.f32 %v95, 1.442695
  %v97 = vpow.pop %v96
  %v98 = vadd.f32 %v97, 1.0
  %v99 = vrcp.pop %v98
  %v100 = vmul.f32 %v98, %v99
  %v101 = vsub.f32 1.0, %v100
  %v102 = vmul.f32 %v99, %v101
  %v103 = vadd.f32 %v99, %v102
  %vm104 = vweird.f32 %v98
  %vm105 = vweird.f32 %v99
  %vm106 = vmor %vm104, %vm105
  %v107 = vsel %vm106, %v99, %v103
  %v108 = vand.u32 2147483647, %v98
  %vm109 = vcmp.eq.f32.partialorder %v108, 8.507059e+37
  %v110 = vand.u32 %v98, 2147483648
  %v111 = vor.u32 1.1754944e-38, %v110
  %v112 = vsel %vm109, %v111, %v107
  %v113 = vmul.f32 1.0, %v112
  %v114 = vmul.f32 %v113, 2.0
  %v115 = vsub.f32 %v114, 1.0
  %v116 = vmul.f32 %v113, 0.0
  %118 = vrot.lane.b32.xlu0 %v115, 64
  %v119 = vpop.permute.xlu0 %118
  %v121 = vmul.f32 %v113, %v119
  %123 = vrot.lane.b32.xlu0 %v121, 32
  %v124 = vpop.permute.xlu0 %123
  %v126 = vadd.f32 %v116, %v124
  %v127 = vtanh.pop %v126
  %129 = vrot.lane.b32.xlu0 %v127, 64
  %v130 = vpop.permute.xlu0 %129
  %v132 = vmul.f32 %v113, %v130
  %s133 = scalar_lea.vmem %s3, 64
  %v134 = vld [vmem:[%s133] sm:$0xff]
  %v135 = vld [vmem:[%s133 + $0x8] sm:$0xff]
  %v136 = vld [vmem:[%s133 + $0x10] sm:$0xff]
  %v137 = vld [vmem:[%s133 + $0x18] sm:$0xff]
  %v138 = vld [vmem:[%s133 + $0x20] sm:$0xff]
  %v139 = vld [vmem:[%s133 + $0x28] sm:$0xff]
  %v140 = vld [vmem:[%s133 + $0x30] sm:$0xff]
  %v141 = vld [vmem:[%s133 + $0x38] sm:$0xff]
  %142 = vmatpush.msra.mxu0 0.0
  %143 = vmatpush.msra.mxu0 0.0
  %144 = vmatpush.msra.mxu0 0.0
  %145 = vmatpush.msra.mxu0 0.0
  %146 = vmatpush.msra.mxu0 0.0
  %147 = vmatpush.msra.mxu0 0.0
  %148 = vmatpush.msra.mxu0 0.0
  %149 = vmatpush.msra.mxu0 0.0
  %150 = vmatpush.msra.mxu0 0.0
  %151 = vmatpush.msra.mxu0 0.0
  %152 = vmatpush.msra.mxu0 0.0
  %153 = vmatpush.msra.mxu0 0.0
  %154 = vmatpush.msra.mxu0 %v141
  %155 = vmatpush.msra.mxu0 %v140
  %156 = vmatpush.msra.mxu0 %v139
  %157 = vmatpush.msra.mxu0 %v138
  %158 = vmatmul.f32.gmra.mxu0 %v46
  %v159 = vpop.f32.mrf.mxu0
  %v160 = vadd.f32 0.0, %v159
  %161 = vdwg.mxu0
  %163 = vrot.lane.b32.xlu0 %v132, 32
  %v164 = vpop.permute.xlu0 %163
  %v165 = vsel %vm44, %v164, 0
  %167 = vmatpush.msra.mxu0 0.0
  %168 = vmatpush.msra.mxu0 0.0
  %169 = vmatpush.msra.mxu0 0.0
  %170 = vmatpush.msra.mxu0 0.0
  %171 = vmatpush.msra.mxu0 0.0
  %172 = vmatpush.msra.mxu0 0.0
  %173 = vmatpush.msra.mxu0 0.0
  %174 = vmatpush.msra.mxu0 0.0
  %175 = vmatpush.msra.mxu0 0.0
  %176 = vmatpush.msra.mxu0 0.0
  %177 = vmatpush.msra.mxu0 0.0
  %178 = vmatpush.msra.mxu0 0.0
  %179 = vmatpush.msra.mxu0 %v137
  %180 = vmatpush.msra.mxu0 %v136
  %181 = vmatpush.msra.mxu0 %v135
  %182 = vmatpush.msra.mxu0 %v134
  %183 = vmatmul.f32.gmra.mxu0 %v165
  %v184 = vpop.f32.mrf.mxu0
  %v185 = vadd.f32 %v160, %v184
  %186 = vdwg.mxu0
  %v188 = vperm.slane %v34, 0
  %v190 = vadd.f32 %v185, %v188
  %v191 = vxor.u32 %v190, 2147483648
  %v192 = vmul.f32 %v191, 1.442695
  %v193 = vpow.pop %v192
  %v194 = vadd.f32 %v193, 1.0
  %v195 = vrcp.pop %v194
  %v196 = vmul.f32 %v194, %v195
  %v197 = vsub.f32 1.0, %v196
  %v198 = vmul.f32 %v195, %v197
  %v199 = vadd.f32 %v195, %v198
  %vm200 = vweird.f32 %v194
  %vm201 = vweird.f32 %v195
  %vm202 = vmor %vm200, %vm201
  %v203 = vsel %vm202, %v195, %v199
  %v204 = vand.u32 2147483647, %v194
  %vm205 = vcmp.eq.f32.partialorder %v204, 8.507059e+37
  %v206 = vand.u32 %v194, 2147483648
  %v207 = vor.u32 1.1754944e-38, %v206
  %v208 = vsel %vm205, %v207, %v203
  %v209 = vmul.f32 1.0, %v208
  %v210 = vmul.f32 %v209, 2.0
  %v211 = vsub.f32 %v210, 1.0
  %v212 = vmul.f32 %v209, 0.0
  %214 = vrot.lane.b32.xlu0 %v211, 64
  %v215 = vpop.permute.xlu0 %214
  %v217 = vmul.f32 %v209, %v215
  %219 = vrot.lane.b32.xlu0 %v217, 32
  %v220 = vpop.permute.xlu0 %219
  %v222 = vadd.f32 %v212, %v220
  %v223 = vtanh.pop %v222
  %225 = vrot.lane.b32.xlu0 %v223, 64
  %v226 = vpop.permute.xlu0 %225
  %v228 = vmul.f32 %v209, %v226
  %s229 = scalar_lea.vmem %s0, 8
  %v230 = vld [vmem:[%s229] sm:$0xff]
  %231 = vmatpush.msra.mxu0 0.0
  %232 = vmatpush.msra.mxu0 0.0
  %233 = vmatpush.msra.mxu0 0.0
  %234 = vmatpush.msra.mxu0 0.0
  %235 = vmatpush.msra.mxu0 0.0
  %236 = vmatpush.msra.mxu0 0.0
  %237 = vmatpush.msra.mxu0 0.0
  %238 = vmatpush.msra.mxu0 0.0
  %239 = vmatpush.msra.mxu0 0.0
  %240 = vmatpush.msra.mxu0 0.0
  %241 = vmatpush.msra.mxu0 0.0
  %242 = vmatpush.msra.mxu0 0.0
  %243 = vmatpush.msra.mxu0 %v43
  %244 = vmatpush.msra.mxu0 %v42
  %245 = vmatpush.msra.mxu0 %v41
  %246 = vmatpush.msra.mxu0 %v40
  %247 = vmatmul.f32.gmra.mxu0 %v165
  %v248 = vpop.f32.mrf.mxu0
  %v249 = vadd.f32 0.0, %v248
  %250 = vdwg.mxu0
  %v252 = vsel %vm44, %v230, 0
  %254 = vmatpush.msra.mxu0 0.0
  %255 = vmatpush.msra.mxu0 0.0
  %256 = vmatpush.msra.mxu0 0.0
  %257 = vmatpush.msra.mxu0 0.0
  %258 = vmatpush.msra.mxu0 0.0
  %259 = vmatpush.msra.mxu0 0.0
  %260 = vmatpush.msra.mxu0 0.0
  %261 = vmatpush.msra.mxu0 0.0
  %262 = vmatpush.msra.mxu0 0.0
  %263 = vmatpush.msra.mxu0 0.0
  %264 = vmatpush.msra.mxu0 0.0
  %265 = vmatpush.msra.mxu0 0.0
  %266 = vmatpush.msra.mxu0 %v39
  %267 = vmatpush.msra.mxu0 %v38
  %268 = vmatpush.msra.mxu0 %v37
  %269 = vmatpush.msra.mxu0 %v36
  %270 = vmatmul.f32.gmra.mxu0 %v252
  %v271 = vpop.f32.mrf.mxu0
  %v272 = vadd.f32 %v249, %v271
  %273 = vdwg.mxu0
  %v274 = vadd.f32 %v272, %v92
  %v275 = vxor.u32 %v274, 2147483648
  %v276 = vmul.f32 %v275, 1.442695
  %v277 = vpow.pop %v276
  %v278 = vadd.f32 %v277, 1.0
  %v279 = vrcp.pop %v278
  %v280 = vmul.f32 %v278, %v279
  %v281 = vsub.f32 1.0, %v280
  %v282 = vmul.f32 %v279, %v281
  %v283 = vadd.f32 %v279, %v282
  %vm284 = vweird.f32 %v278
  %vm285 = vweird.f32 %v279
  %vm286 = vmor %vm284, %vm285
  %v287 = vsel %vm286, %v279, %v283
  %v288 = vand.u32 2147483647, %v278
  %vm289 = vcmp.eq.f32.partialorder %v288, 8.507059e+37
  %v290 = vand.u32 %v278, 2147483648
  %v291 = vor.u32 1.1754944e-38, %v290
  %v292 = vsel %vm289, %v291, %v287
  %v293 = vmul.f32 1.0, %v292
  %v294 = vmul.f32 %v293, 2.0
  %v295 = vsub.f32 %v294, 1.0
  %v296 = vmul.f32 %v293, %v126
  %298 = vrot.lane.b32.xlu0 %v295, 64
  %v299 = vpop.permute.xlu0 %298
  %v301 = vmul.f32 %v293, %v299
  %303 = vrot.lane.b32.xlu0 %v301, 32
  %v304 = vpop.permute.xlu0 %303
  %v306 = vadd.f32 %v296, %v304
  %v307 = vtanh.pop %v306
  %309 = vrot.lane.b32.xlu0 %v307, 64
  %v310 = vpop.permute.xlu0 %309
  %v312 = vmul.f32 %v293, %v310
  %314 = vrot.lane.b32.xlu0 %v228, 32
  %v315 = vpop.permute.xlu0 %314
  %v316 = vsel %vm44, %v315, 0
  %318 = vmatpush.msra.mxu0 0.0
  %319 = vmatpush.msra.mxu0 0.0
  %320 = vmatpush.msra.mxu0 0.0
  %321 = vmatpush.msra.mxu0 0.0
  %322 = vmatpush.msra.mxu0 0.0
  %323 = vmatpush.msra.mxu0 0.0
  %324 = vmatpush.msra.mxu0 0.0
  %325 = vmatpush.msra.mxu0 0.0
  %326 = vmatpush.msra.mxu0 0.0
  %327 = vmatpush.msra.mxu0 0.0
  %328 = vmatpush.msra.mxu0 0.0
  %329 = vmatpush.msra.mxu0 0.0
  %330 = vmatpush.msra.mxu0 %v141
  %331 = vmatpush.msra.mxu0 %v140
  %332 = vmatpush.msra.mxu0 %v139
  %333 = vmatpush.msra.mxu0 %v138
  %334 = vmatmul.f32.gmra.mxu0 %v316
  %v335 = vpop.f32.mrf.mxu0
  %v336 = vadd.f32 0.0, %v335
  %337 = vdwg.mxu0
  %339 = vrot.lane.b32.xlu0 %v312, 32
  %v340 = vpop.permute.xlu0 %339
  %v341 = vsel %vm44, %v340, 0
  %343 = vmatpush.msra.mxu0 0.0
  %344 = vmatpush.msra.mxu0 0.0
  %345 = vmatpush.msra.mxu0 0.0
  %346 = vmatpush.msra.mxu0 0.0
  %347 = vmatpush.msra.mxu0 0.0
  %348 = vmatpush.msra.mxu0 0.0
  %349 = vmatpush.msra.mxu0 0.0
  %350 = vmatpush.msra.mxu0 0.0
  %351 = vmatpush.msra.mxu0 0.0
  %352 = vmatpush.msra.mxu0 0.0
  %353 = vmatpush.msra.mxu0 0.0
  %354 = vmatpush.msra.mxu0 0.0
  %355 = vmatpush.msra.mxu0 %v137
  %356 = vmatpush.msra.mxu0 %v136
  %357 = vmatpush.msra.mxu0 %v135
  %358 = vmatpush.msra.mxu0 %v134
  %359 = vmatmul.f32.gmra.mxu0 %v341
  %v360 = vpop.f32.mrf.mxu0
  %v361 = vadd.f32 %v336, %v360
  %362 = vdwg.mxu0
  %v363 = vadd.f32 %v361, %v188
  %v364 = vxor.u32 %v363, 2147483648
  %v365 = vmul.f32 %v364, 1.442695
  %v366 = vpow.pop %v365
  %v367 = vadd.f32 %v366, 1.0
  %v368 = vrcp.pop %v367
  %v369 = vmul.f32 %v367, %v368
  %v370 = vsub.f32 1.0, %v369
  %v371 = vmul.f32 %v368, %v370
  %v372 = vadd.f32 %v368, %v371
  %vm373 = vweird.f32 %v367
  %vm374 = vweird.f32 %v368
  %vm375 = vmor %vm373, %vm374
  %v376 = vsel %vm375, %v368, %v372
  %v377 = vand.u32 2147483647, %v367
  %vm378 = vcmp.eq.f32.partialorder %v377, 8.507059e+37
  %v379 = vand.u32 %v367, 2147483648
  %v380 = vor.u32 1.1754944e-38, %v379
  %v381 = vsel %vm378, %v380, %v376
  %v382 = vmul.f32 1.0, %v381
  %v383 = vmul.f32 %v382, 2.0
  %v384 = vsub.f32 %v383, 1.0
  %v385 = vmul.f32 %v382, %v222
  %387 = vrot.lane.b32.xlu0 %v384, 64
  %v388 = vpop.permute.xlu0 %387
  %v390 = vmul.f32 %v382, %v388
  %392 = vrot.lane.b32.xlu0 %v390, 32
  %v393 = vpop.permute.xlu0 %392
  %v395 = vadd.f32 %v385, %v393
  %v396 = vtanh.pop %v395
  %398 = vrot.lane.b32.xlu0 %v396, 64
  %v399 = vpop.permute.xlu0 %398
  %v401 = vmul.f32 %v382, %v399
  %s402 = scalar_lea.vmem %s0, 16
  %v403 = vld [vmem:[%s402] sm:$0xff]
  %404 = vmatpush.msra.mxu0 0.0
  %405 = vmatpush.msra.mxu0 0.0
  %406 = vmatpush.msra.mxu0 0.0
  %407 = vmatpush.msra.mxu0 0.0
  %408 = vmatpush.msra.mxu0 0.0
  %409 = vmatpush.msra.mxu0 0.0
  %410 = vmatpush.msra.mxu0 0.0
  %411 = vmatpush.msra.mxu0 0.0
  %412 = vmatpush.msra.mxu0 0.0
  %413 = vmatpush.msra.mxu0 0.0
  %414 = vmatpush.msra.mxu0 0.0
  %415 = vmatpush.msra.mxu0 0.0
  %416 = vmatpush.msra.mxu0 %v43
  %417 = vmatpush.msra.mxu0 %v42
  %418 = vmatpush.msra.mxu0 %v41
  %419 = vmatpush.msra.mxu0 %v40
  %420 = vmatmul.f32.gmra.mxu0 %v341
  %v421 = vpop.f32.mrf.mxu0
  %v422 = vadd.f32 0.0, %v421
  %423 = vdwg.mxu0
  %v425 = vsel %vm44, %v403, 0
  %427 = vmatpush.msra.mxu0 0.0
  %428 = vmatpush.msra.mxu0 0.0
  %429 = vmatpush.msra.mxu0 0.0
  %430 = vmatpush.msra.mxu0 0.0
  %431 = vmatpush.msra.mxu0 0.0
  %432 = vmatpush.msra.mxu0 0.0
  %433 = vmatpush.msra.mxu0 0.0
  %434 = vmatpush.msra.mxu0 0.0
  %435 = vmatpush.msra.mxu0 0.0
  %436 = vmatpush.msra.mxu0 0.0
  %437 = vmatpush.msra.mxu0 0.0
  %438 = vmatpush.msra.mxu0 0.0
  %439 = vmatpush.msra.mxu0 %v39
  %440 = vmatpush.msra.mxu0 %v38
  %441 = vmatpush.msra.mxu0 %v37
  %442 = vmatpush.msra.mxu0 %v36
  %443 = vmatmul.f32.gmra.mxu0 %v425
  %v444 = vpop.f32.mrf.mxu0
  %v445 = vadd.f32 %v422, %v444
  %446 = vdwg.mxu0
  %v447 = vadd.f32 %v445, %v92
  %v448 = vxor.u32 %v447, 2147483648
  %v449 = vmul.f32 %v448, 1.442695
  %v450 = vpow.pop %v449
  %v451 = vadd.f32 %v450, 1.0
  %v452 = vrcp.pop %v451
  %v453 = vmul.f32 %v451, %v452
  %v454 = vsub.f32 1.0, %v453
  %v455 = vmul.f32 %v452, %v454
  %v456 = vadd.f32 %v452, %v455
  %vm457 = vweird.f32 %v451
  %vm458 = vweird.f32 %v452
  %vm459 = vmor %vm457, %vm458
  %v460 = vsel %vm459, %v452, %v456
  %v461 = vand.u32 2147483647, %v451
  %vm462 = vcmp.eq.f32.partialorder %v461, 8.507059e+37
  %v463 = vand.u32 %v451, 2147483648
  %v464 = vor.u32 1.1754944e-38, %v463
  %v465 = vsel %vm462, %v464, %v460
  %v466 = vmul.f32 1.0, %v465
  %v467 = vmul.f32 %v466, 2.0
  %v468 = vsub.f32 %v467, 1.0
  %v469 = vmul.f32 %v466, %v306
  %471 = vrot.lane.b32.xlu0 %v468, 64
  %v472 = vpop.permute.xlu0 %471
  %v474 = vmul.f32 %v466, %v472
  %476 = vrot.lane.b32.xlu0 %v474, 32
  %v477 = vpop.permute.xlu0 %476
  %v479 = vadd.f32 %v469, %v477
  %v480 = vtanh.pop %v479
  %482 = vrot.lane.b32.xlu0 %v480, 64
  %v483 = vpop.permute.xlu0 %482
  %v485 = vmul.f32 %v466, %v483
  %487 = vrot.lane.b32.xlu0 %v401, 32
  %v488 = vpop.permute.xlu0 %487
  %v489 = vsel %vm44, %v488, 0
  %491 = vmatpush.msra.mxu0 0.0
  %492 = vmatpush.msra.mxu0 0.0
  %493 = vmatpush.msra.mxu0 0.0
  %494 = vmatpush.msra.mxu0 0.0
  %495 = vmatpush.msra.mxu0 0.0
  %496 = vmatpush.msra.mxu0 0.0
  %497 = vmatpush.msra.mxu0 0.0
  %498 = vmatpush.msra.mxu0 0.0
  %499 = vmatpush.msra.mxu0 0.0
  %500 = vmatpush.msra.mxu0 0.0
  %501 = vmatpush.msra.mxu0 0.0
  %502 = vmatpush.msra.mxu0 0.0
  %503 = vmatpush.msra.mxu0 %v141
  %504 = vmatpush.msra.mxu0 %v140
  %505 = vmatpush.msra.mxu0 %v139
  %506 = vmatpush.msra.mxu0 %v138
  %507 = vmatmul.f32.gmra.mxu0 %v489
  %v508 = vpop.f32.mrf.mxu0
  %v509 = vadd.f32 0.0, %v508
  %510 = vdwg.mxu0
  %512 = vrot.lane.b32.xlu0 %v485, 32
  %v513 = vpop.permute.xlu0 %512
  %v514 = vsel %vm44, %v513, 0
  %516 = vmatpush.msra.mxu0 0.0
  %517 = vmatpush.msra.mxu0 0.0
  %518 = vmatpush.msra.mxu0 0.0
  %519 = vmatpush.msra.mxu0 0.0
  %520 = vmatpush.msra.mxu0 0.0
  %521 = vmatpush.msra.mxu0 0.0
  %522 = vmatpush.msra.mxu0 0.0
  %523 = vmatpush.msra.mxu0 0.0
  %524 = vmatpush.msra.mxu0 0.0
  %525 = vmatpush.msra.mxu0 0.0
  %526 = vmatpush.msra.mxu0 0.0
  %527 = vmatpush.msra.mxu0 0.0
  %528 = vmatpush.msra.mxu0 %v137
  %529 = vmatpush.msra.mxu0 %v136
  %530 = vmatpush.msra.mxu0 %v135
  %531 = vmatpush.msra.mxu0 %v134
  %532 = vmatmul.f32.gmra.mxu0 %v514
  %v533 = vpop.f32.mrf.mxu0
  %v534 = vadd.f32 %v509, %v533
  %535 = vdwg.mxu0
  %v536 = vadd.f32 %v534, %v188
  %v537 = vxor.u32 %v536, 2147483648
  %v538 = vmul.f32 %v537, 1.442695
  %v539 = vpow.pop %v538
  %v540 = vadd.f32 %v539, 1.0
  %v541 = vrcp.pop %v540
  %v542 = vmul.f32 %v540, %v541
  %v543 = vsub.f32 1.0, %v542
  %v544 = vmul.f32 %v541, %v543
  %v545 = vadd.f32 %v541, %v544
  %vm546 = vweird.f32 %v540
  %vm547 = vweird.f32 %v541
  %vm548 = vmor %vm546, %vm547
  %v549 = vsel %vm548, %v541, %v545
  %v550 = vand.u32 2147483647, %v540
  %vm551 = vcmp.eq.f32.partialorder %v550, 8.507059e+37
  %v552 = vand.u32 %v540, 2147483648
  %v553 = vor.u32 1.1754944e-38, %v552
  %v554 = vsel %vm551, %v553, %v549
  %v555 = vmul.f32 1.0, %v554
  %v556 = vmul.f32 %v555, 2.0
  %v557 = vsub.f32 %v556, 1.0
  %v558 = vmul.f32 %v555, %v395
  %560 = vrot.lane.b32.xlu0 %v557, 64
  %v561 = vpop.permute.xlu0 %560
  %v563 = vmul.f32 %v555, %v561
  %565 = vrot.lane.b32.xlu0 %v563, 32
  %v566 = vpop.permute.xlu0 %565
  %v568 = vadd.f32 %v558, %v566
  %v569 = vtanh.pop %v568
  %571 = vrot.lane.b32.xlu0 %v569, 64
  %v572 = vpop.permute.xlu0 %571
  %v574 = vmul.f32 %v555, %v572
  %s575 = scalar_lea.vmem %s0, 24
  %v576 = vld [vmem:[%s575] sm:$0xff]
  %577 = vmatpush.msra.mxu0 0.0
  %578 = vmatpush.msra.mxu0 0.0
  %579 = vmatpush.msra.mxu0 0.0
  %580 = vmatpush.msra.mxu0 0.0
  %581 = vmatpush.msra.mxu0 0.0
  %582 = vmatpush.msra.mxu0 0.0
  %583 = vmatpush.msra.mxu0 0.0
  %584 = vmatpush.msra.mxu0 0.0
  %585 = vmatpush.msra.mxu0 0.0
  %586 = vmatpush.msra.mxu0 0.0
  %587 = vmatpush.msra.mxu0 0.0
  %588 = vmatpush.msra.mxu0 0.0
  %589 = vmatpush.msra.mxu0 %v43
  %590 = vmatpush.msra.mxu0 %v42
  %591 = vmatpush.msra.mxu0 %v41
  %592 = vmatpush.msra.mxu0 %v40
  %593 = vmatmul.f32.gmra.mxu0 %v514
  %v594 = vpop.f32.mrf.mxu0
  %v595 = vadd.f32 0.0, %v594
  %596 = vdwg.mxu0
  %v598 = vsel %vm44, %v576, 0
  %600 = vmatpush.msra.mxu0 0.0
  %601 = vmatpush.msra.mxu0 0.0
  %602 = vmatpush.msra.mxu0 0.0
  %603 = vmatpush.msra.mxu0 0.0
  %604 = vmatpush.msra.mxu0 0.0
  %605 = vmatpush.msra.mxu0 0.0
  %606 = vmatpush.msra.mxu0 0.0
  %607 = vmatpush.msra.mxu0 0.0
  %608 = vmatpush.msra.mxu0 0.0
  %609 = vmatpush.msra.mxu0 0.0
  %610 = vmatpush.msra.mxu0 0.0
  %611 = vmatpush.msra.mxu0 0.0
  %612 = vmatpush.msra.mxu0 %v39
  %613 = vmatpush.msra.mxu0 %v38
  %614 = vmatpush.msra.mxu0 %v37
  %615 = vmatpush.msra.mxu0 %v36
  %616 = vmatmul.f32.gmra.mxu0 %v598
  %v617 = vpop.f32.mrf.mxu0
  %v618 = vadd.f32 %v595, %v617
  %619 = vdwg.mxu0
  %v620 = vadd.f32 %v618, %v92
  %v621 = vxor.u32 %v620, 2147483648
  %v622 = vmul.f32 %v621, 1.442695
  %v623 = vpow.pop %v622
  %v624 = vadd.f32 %v623, 1.0
  %v625 = vrcp.pop %v624
  %v626 = vmul.f32 %v624, %v625
  %v627 = vsub.f32 1.0, %v626
  %v628 = vmul.f32 %v625, %v627
  %v629 = vadd.f32 %v625, %v628
  %vm630 = vweird.f32 %v624
  %vm631 = vweird.f32 %v625
  %vm632 = vmor %vm630, %vm631
  %v633 = vsel %vm632, %v625, %v629
  %v634 = vand.u32 2147483647, %v624
  %vm635 = vcmp.eq.f32.partialorder %v634, 8.507059e+37
  %v636 = vand.u32 %v624, 2147483648
  %v637 = vor.u32 1.1754944e-38, %v636
  %v638 = vsel %vm635, %v637, %v633
  %v639 = vmul.f32 1.0, %v638
  %v640 = vmul.f32 %v639, 2.0
  %v641 = vsub.f32 %v640, 1.0
  %v642 = vmul.f32 %v639, %v479
  %644 = vrot.lane.b32.xlu0 %v641, 64
  %v645 = vpop.permute.xlu0 %644
  %v647 = vmul.f32 %v639, %v645
  %649 = vrot.lane.b32.xlu0 %v647, 32
  %v650 = vpop.permute.xlu0 %649
  %v652 = vadd.f32 %v642, %v650
  %v653 = vtanh.pop %v652
  %655 = vrot.lane.b32.xlu0 %v653, 64
  %v656 = vpop.permute.xlu0 %655
  %v658 = vmul.f32 %v639, %v656
  %660 = vrot.lane.b32.xlu0 %v574, 32
  %v661 = vpop.permute.xlu0 %660
  %v662 = vsel %vm44, %v661, 0
  %664 = vmatpush.msra.mxu0 0.0
  %665 = vmatpush.msra.mxu0 0.0
  %666 = vmatpush.msra.mxu0 0.0
  %667 = vmatpush.msra.mxu0 0.0
  %668 = vmatpush.msra.mxu0 0.0
  %669 = vmatpush.msra.mxu0 0.0
  %670 = vmatpush.msra.mxu0 0.0
  %671 = vmatpush.msra.mxu0 0.0
  %672 = vmatpush.msra.mxu0 0.0
  %673 = vmatpush.msra.mxu0 0.0
  %674 = vmatpush.msra.mxu0 0.0
  %675 = vmatpush.msra.mxu0 0.0
  %676 = vmatpush.msra.mxu0 %v141
  %677 = vmatpush.msra.mxu0 %v140
  %678 = vmatpush.msra.mxu0 %v139
  %679 = vmatpush.msra.mxu0 %v138
  %680 = vmatmul.f32.gmra.mxu0 %v662
  %v681 = vpop.f32.mrf.mxu0
  %v682 = vadd.f32 0.0, %v681
  %683 = vdwg.mxu0
  %685 = vrot.lane.b32.xlu0 %v658, 32
  %v686 = vpop.permute.xlu0 %685
  %v687 = vsel %vm44, %v686, 0
  %689 = vmatpush.msra.mxu0 0.0
  %690 = vmatpush.msra.mxu0 0.0
  %691 = vmatpush.msra.mxu0 0.0
  %692 = vmatpush.msra.mxu0 0.0
  %693 = vmatpush.msra.mxu0 0.0
  %694 = vmatpush.msra.mxu0 0.0
  %695 = vmatpush.msra.mxu0 0.0
  %696 = vmatpush.msra.mxu0 0.0
  %697 = vmatpush.msra.mxu0 0.0
  %698 = vmatpush.msra.mxu0 0.0
  %699 = vmatpush.msra.mxu0 0.0
  %700 = vmatpush.msra.mxu0 0.0
  %701 = vmatpush.msra.mxu0 %v137
  %702 = vmatpush.msra.mxu0 %v136
  %703 = vmatpush.msra.mxu0 %v135
  %704 = vmatpush.msra.mxu0 %v134
  %705 = vmatmul.f32.gmra.mxu0 %v687
  %v706 = vpop.f32.mrf.mxu0
  %v707 = vadd.f32 %v682, %v706
  %708 = vdwg.mxu0
  %v709 = vadd.f32 %v707, %v188
  %v710 = vxor.u32 %v709, 2147483648
  %v711 = vmul.f32 %v710, 1.442695
  %v712 = vpow.pop %v711
  %v713 = vadd.f32 %v712, 1.0
  %v714 = vrcp.pop %v713
  %v715 = vmul.f32 %v713, %v714
  %v716 = vsub.f32 1.0, %v715
  %v717 = vmul.f32 %v714, %v716
  %v718 = vadd.f32 %v714, %v717
  %vm719 = vweird.f32 %v713
  %vm720 = vweird.f32 %v714
  %vm721 = vmor %vm719, %vm720
  %v722 = vsel %vm721, %v714, %v718
  %v723 = vand.u32 2147483647, %v713
  %vm724 = vcmp.eq.f32.partialorder %v723, 8.507059e+37
  %v725 = vand.u32 %v713, 2147483648
  %v726 = vor.u32 1.1754944e-38, %v725
  %v727 = vsel %vm724, %v726, %v722
  %v728 = vmul.f32 1.0, %v727
  %v729 = vmul.f32 %v728, 2.0
  %v730 = vsub.f32 %v729, 1.0
  %v731 = vmul.f32 %v728, %v568
  %733 = vrot.lane.b32.xlu0 %v730, 64
  %v734 = vpop.permute.xlu0 %733
  %v736 = vmul.f32 %v728, %v734
  %738 = vrot.lane.b32.xlu0 %v736, 32
  %v739 = vpop.permute.xlu0 %738
  %v741 = vadd.f32 %v731, %v739
  %v742 = vtanh.pop %v741
  %744 = vrot.lane.b32.xlu0 %v742, 64
  %v745 = vpop.permute.xlu0 %744
  %v747 = vmul.f32 %v728, %v745
  %s748 = scalar_lea.vmem %s0, 32
  %v749 = vld [vmem:[%s748] sm:$0xff]
  %750 = vmatpush.msra.mxu0 0.0
  %751 = vmatpush.msra.mxu0 0.0
  %752 = vmatpush.msra.mxu0 0.0
  %753 = vmatpush.msra.mxu0 0.0
  %754 = vmatpush.msra.mxu0 0.0
  %755 = vmatpush.msra.mxu0 0.0
  %756 = vmatpush.msra.mxu0 0.0
  %757 = vmatpush.msra.mxu0 0.0
  %758 = vmatpush.msra.mxu0 0.0
  %759 = vmatpush.msra.mxu0 0.0
  %760 = vmatpush.msra.mxu0 0.0
  %761 = vmatpush.msra.mxu0 0.0
  %762 = vmatpush.msra.mxu0 %v43
  %763 = vmatpush.msra.mxu0 %v42
  %764 = vmatpush.msra.mxu0 %v41
  %765 = vmatpush.msra.mxu0 %v40
  %766 = vmatmul.f32.gmra.mxu0 %v687
  %v767 = vpop.f32.mrf.mxu0
  %v768 = vadd.f32 0.0, %v767
  %769 = vdwg.mxu0
  %v771 = vsel %vm44, %v749, 0
  %773 = vmatpush.msra.mxu0 0.0
  %774 = vmatpush.msra.mxu0 0.0
  %775 = vmatpush.msra.mxu0 0.0
  %776 = vmatpush.msra.mxu0 0.0
  %777 = vmatpush.msra.mxu0 0.0
  %778 = vmatpush.msra.mxu0 0.0
  %779 = vmatpush.msra.mxu0 0.0
  %780 = vmatpush.msra.mxu0 0.0
  %781 = vmatpush.msra.mxu0 0.0
  %782 = vmatpush.msra.mxu0 0.0
  %783 = vmatpush.msra.mxu0 0.0
  %784 = vmatpush.msra.mxu0 0.0
  %785 = vmatpush.msra.mxu0 %v39
  %786 = vmatpush.msra.mxu0 %v38
  %787 = vmatpush.msra.mxu0 %v37
  %788 = vmatpush.msra.mxu0 %v36
  %789 = vmatmul.f32.gmra.mxu0 %v771
  %v790 = vpop.f32.mrf.mxu0
  %v791 = vadd.f32 %v768, %v790
  %792 = vdwg.mxu0
  %v793 = vadd.f32 %v791, %v92
  %v794 = vxor.u32 %v793, 2147483648
  %v795 = vmul.f32 %v794, 1.442695
  %v796 = vpow.pop %v795
  %v797 = vadd.f32 %v796, 1.0
  %v798 = vrcp.pop %v797
  %v799 = vmul.f32 %v797, %v798
  %v800 = vsub.f32 1.0, %v799
  %v801 = vmul.f32 %v798, %v800
  %v802 = vadd.f32 %v798, %v801
  %vm803 = vweird.f32 %v797
  %vm804 = vweird.f32 %v798
  %vm805 = vmor %vm803, %vm804
  %v806 = vsel %vm805, %v798, %v802
  %v807 = vand.u32 2147483647, %v797
  %vm808 = vcmp.eq.f32.partialorder %v807, 8.507059e+37
  %v809 = vand.u32 %v797, 2147483648
  %v810 = vor.u32 1.1754944e-38, %v809
  %v811 = vsel %vm808, %v810, %v806
  %v812 = vmul.f32 1.0, %v811
  %v813 = vmul.f32 %v812, 2.0
  %v814 = vsub.f32 %v813, 1.0
  %v815 = vmul.f32 %v812, %v652
  %817 = vrot.lane.b32.xlu0 %v814, 64
  %v818 = vpop.permute.xlu0 %817
  %v820 = vmul.f32 %v812, %v818
  %822 = vrot.lane.b32.xlu0 %v820, 32
  %v823 = vpop.permute.xlu0 %822
  %v825 = vadd.f32 %v815, %v823
  %v826 = vtanh.pop %v825
  %828 = vrot.lane.b32.xlu0 %v826, 64
  %v829 = vpop.permute.xlu0 %828
  %v831 = vmul.f32 %v812, %v829
  %833 = vrot.lane.b32.xlu0 %v747, 32
  %v834 = vpop.permute.xlu0 %833
  %v835 = vsel %vm44, %v834, 0
  %837 = vmatpush.msra.mxu0 0.0
  %838 = vmatpush.msra.mxu0 0.0
  %839 = vmatpush.msra.mxu0 0.0
  %840 = vmatpush.msra.mxu0 0.0
  %841 = vmatpush.msra.mxu0 0.0
  %842 = vmatpush.msra.mxu0 0.0
  %843 = vmatpush.msra.mxu0 0.0
  %844 = vmatpush.msra.mxu0 0.0
  %845 = vmatpush.msra.mxu0 0.0
  %846 = vmatpush.msra.mxu0 0.0
  %847 = vmatpush.msra.mxu0 0.0
  %848 = vmatpush.msra.mxu0 0.0
  %849 = vmatpush.msra.mxu0 %v141
  %850 = vmatpush.msra.mxu0 %v140
  %851 = vmatpush.msra.mxu0 %v139
  %852 = vmatpush.msra.mxu0 %v138
  %853 = vmatmul.f32.gmra.mxu0 %v835
  %v854 = vpop.f32.mrf.mxu0
  %v855 = vadd.f32 0.0, %v854
  %856 = vdwg.mxu0
  %858 = vrot.lane.b32.xlu0 %v831, 32
  %v859 = vpop.permute.xlu0 %858
  %v860 = vsel %vm44, %v859, 0
  %862 = vmatpush.msra.mxu0 0.0
  %863 = vmatpush.msra.mxu0 0.0
  %864 = vmatpush.msra.mxu0 0.0
  %865 = vmatpush.msra.mxu0 0.0
  %866 = vmatpush.msra.mxu0 0.0
  %867 = vmatpush.msra.mxu0 0.0
  %868 = vmatpush.msra.mxu0 0.0
  %869 = vmatpush.msra.mxu0 0.0
  %870 = vmatpush.msra.mxu0 0.0
  %871 = vmatpush.msra.mxu0 0.0
  %872 = vmatpush.msra.mxu0 0.0
  %873 = vmatpush.msra.mxu0 0.0
  %874 = vmatpush.msra.mxu0 %v137
  %875 = vmatpush.msra.mxu0 %v136
  %876 = vmatpush.msra.mxu0 %v135
  %877 = vmatpush.msra.mxu0 %v134
  %878 = vmatmul.f32.gmra.mxu0 %v860
  %v879 = vpop.f32.mrf.mxu0
  %v880 = vadd.f32 %v855, %v879
  %881 = vdwg.mxu0
  %v882 = vadd.f32 %v880, %v188
  %v883 = vxor.u32 %v882, 2147483648
  %v884 = vmul.f32 %v883, 1.442695
  %v885 = vpow.pop %v884
  %v886 = vadd.f32 %v885, 1.0
  %v887 = vrcp.pop %v886
  %v888 = vmul.f32 %v886, %v887
  %v889 = vsub.f32 1.0, %v888
  %v890 = vmul.f32 %v887, %v889
  %v891 = vadd.f32 %v887, %v890
  %vm892 = vweird.f32 %v886
  %vm893 = vweird.f32 %v887
  %vm894 = vmor %vm892, %vm893
  %v895 = vsel %vm894, %v887, %v891
  %v896 = vand.u32 2147483647, %v886
  %vm897 = vcmp.eq.f32.partialorder %v896, 8.507059e+37
  %v898 = vand.u32 %v886, 2147483648
  %v899 = vor.u32 1.1754944e-38, %v898
  %v900 = vsel %vm897, %v899, %v895
  %v901 = vmul.f32 1.0, %v900
  %v902 = vmul.f32 %v901, 2.0
  %v903 = vsub.f32 %v902, 1.0
  %v904 = vmul.f32 %v901, %v741
  %906 = vrot.lane.b32.xlu0 %v903, 64
  %v907 = vpop.permute.xlu0 %906
  %v909 = vmul.f32 %v901, %v907
  %911 = vrot.lane.b32.xlu0 %v909, 32
  %v912 = vpop.permute.xlu0 %911
  %v914 = vadd.f32 %v904, %v912
  %v915 = vtanh.pop %v914
  %917 = vrot.lane.b32.xlu0 %v915, 64
  %v918 = vpop.permute.xlu0 %917
  %v920 = vmul.f32 %v901, %v918
  %s921 = scalar_lea.vmem %s0, 40
  %v922 = vld [vmem:[%s921] sm:$0xff]
  %923 = vmatpush.msra.mxu0 0.0
  %924 = vmatpush.msra.mxu0 0.0
  %925 = vmatpush.msra.mxu0 0.0
  %926 = vmatpush.msra.mxu0 0.0
  %927 = vmatpush.msra.mxu0 0.0
  %928 = vmatpush.msra.mxu0 0.0
  %929 = vmatpush.msra.mxu0 0.0
  %930 = vmatpush.msra.mxu0 0.0
  %931 = vmatpush.msra.mxu0 0.0
  %932 = vmatpush.msra.mxu0 0.0
  %933 = vmatpush.msra.mxu0 0.0
  %934 = vmatpush.msra.mxu0 0.0
  %935 = vmatpush.msra.mxu0 %v43
  %936 = vmatpush.msra.mxu0 %v42
  %937 = vmatpush.msra.mxu0 %v41
  %938 = vmatpush.msra.mxu0 %v40
  %939 = vmatmul.f32.gmra.mxu0 %v860
  %v940 = vpop.f32.mrf.mxu0
  %v941 = vadd.f32 0.0, %v940
  %942 = vdwg.mxu0
  %v944 = vsel %vm44, %v922, 0
  %946 = vmatpush.msra.mxu0 0.0
  %947 = vmatpush.msra.mxu0 0.0
  %948 = vmatpush.msra.mxu0 0.0
  %949 = vmatpush.msra.mxu0 0.0
  %950 = vmatpush.msra.mxu0 0.0
  %951 = vmatpush.msra.mxu0 0.0
  %952 = vmatpush.msra.mxu0 0.0
  %953 = vmatpush.msra.mxu0 0.0
  %954 = vmatpush.msra.mxu0 0.0
  %955 = vmatpush.msra.mxu0 0.0
  %956 = vmatpush.msra.mxu0 0.0
  %957 = vmatpush.msra.mxu0 0.0
  %958 = vmatpush.msra.mxu0 %v39
  %959 = vmatpush.msra.mxu0 %v38
  %960 = vmatpush.msra.mxu0 %v37
  %961 = vmatpush.msra.mxu0 %v36
  %962 = vmatmul.f32.gmra.mxu0 %v944
  %v963 = vpop.f32.mrf.mxu0
  %v964 = vadd.f32 %v941, %v963
  %965 = vdwg.mxu0
  %v966 = vadd.f32 %v964, %v92
  %v967 = vxor.u32 %v966, 2147483648
  %v968 = vmul.f32 %v967, 1.442695
  %v969 = vpow.pop %v968
  %v970 = vadd.f32 %v969, 1.0
  %v971 = vrcp.pop %v970
  %v972 = vmul.f32 %v970, %v971
  %v973 = vsub.f32 1.0, %v972
  %v974 = vmul.f32 %v971, %v973
  %v975 = vadd.f32 %v971, %v974
  %vm976 = vweird.f32 %v970
  %vm977 = vweird.f32 %v971
  %vm978 = vmor %vm976, %vm977
  %v979 = vsel %vm978, %v971, %v975
  %v980 = vand.u32 2147483647, %v970
  %vm981 = vcmp.eq.f32.partialorder %v980, 8.507059e+37
  %v982 = vand.u32 %v970, 2147483648
  %v983 = vor.u32 1.1754944e-38, %v982
  %v984 = vsel %vm981, %v983, %v979
  %v985 = vmul.f32 1.0, %v984
  %v986 = vmul.f32 %v985, 2.0
  %v987 = vsub.f32 %v986, 1.0
  %v988 = vmul.f32 %v985, %v825
  %990 = vrot.lane.b32.xlu0 %v987, 64
  %v991 = vpop.permute.xlu0 %990
  %v993 = vmul.f32 %v985, %v991
  %995 = vrot.lane.b32.xlu0 %v993, 32
  %v996 = vpop.permute.xlu0 %995
  %v998 = vadd.f32 %v988, %v996
  %v999 = vtanh.pop %v998
  %1001 = vrot.lane.b32.xlu0 %v999, 64
  %v1002 = vpop.permute.xlu0 %1001
  %v1004 = vmul.f32 %v985, %v1002
  %1006 = vrot.lane.b32.xlu0 %v920, 32
  %v1007 = vpop.permute.xlu0 %1006
  %v1008 = vsel %vm44, %v1007, 0
  %1010 = vmatpush.msra.mxu0 0.0
  %1011 = vmatpush.msra.mxu0 0.0
  %1012 = vmatpush.msra.mxu0 0.0
  %1013 = vmatpush.msra.mxu0 0.0
  %1014 = vmatpush.msra.mxu0 0.0
  %1015 = vmatpush.msra.mxu0 0.0
  %1016 = vmatpush.msra.mxu0 0.0
  %1017 = vmatpush.msra.mxu0 0.0
  %1018 = vmatpush.msra.mxu0 0.0
  %1019 = vmatpush.msra.mxu0 0.0
  %1020 = vmatpush.msra.mxu0 0.0
  %1021 = vmatpush.msra.mxu0 0.0
  %1022 = vmatpush.msra.mxu0 %v141
  %1023 = vmatpush.msra.mxu0 %v140
  %1024 = vmatpush.msra.mxu0 %v139
  %1025 = vmatpush.msra.mxu0 %v138
  %1026 = vmatmul.f32.gmra.mxu0 %v1008
  %v1027 = vpop.f32.mrf.mxu0
  %v1028 = vadd.f32 0.0, %v1027
  %1029 = vdwg.mxu0
  %1031 = vrot.lane.b32.xlu0 %v1004, 32
  %v1032 = vpop.permute.xlu0 %1031
  %v1033 = vsel %vm44, %v1032, 0
  %1035 = vmatpush.msra.mxu0 0.0
  %1036 = vmatpush.msra.mxu0 0.0
  %1037 = vmatpush.msra.mxu0 0.0
  %1038 = vmatpush.msra.mxu0 0.0
  %1039 = vmatpush.msra.mxu0 0.0
  %1040 = vmatpush.msra.mxu0 0.0
  %1041 = vmatpush.msra.mxu0 0.0
  %1042 = vmatpush.msra.mxu0 0.0
  %1043 = vmatpush.msra.mxu0 0.0
  %1044 = vmatpush.msra.mxu0 0.0
  %1045 = vmatpush.msra.mxu0 0.0
  %1046 = vmatpush.msra.mxu0 0.0
  %1047 = vmatpush.msra.mxu0 %v137
  %1048 = vmatpush.msra.mxu0 %v136
  %1049 = vmatpush.msra.mxu0 %v135
  %1050 = vmatpush.msra.mxu0 %v134
  %1051 = vmatmul.f32.gmra.mxu0 %v1033
  %v1052 = vpop.f32.mrf.mxu0
  %v1053 = vadd.f32 %v1028, %v1052
  %1054 = vdwg.mxu0
  %v1055 = vadd.f32 %v1053, %v188
  %v1056 = vxor.u32 %v1055, 2147483648
  %v1057 = vmul.f32 %v1056, 1.442695
  %v1058 = vpow.pop %v1057
  %v1059 = vadd.f32 %v1058, 1.0
  %v1060 = vrcp.pop %v1059
  %v1061 = vmul.f32 %v1059, %v1060
  %v1062 = vsub.f32 1.0, %v1061
  %v1063 = vmul.f32 %v1060, %v1062
  %v1064 = vadd.f32 %v1060, %v1063
  %vm1065 = vweird.f32 %v1059
  %vm1066 = vweird.f32 %v1060
  %vm1067 = vmor %vm1065, %vm1066
  %v1068 = vsel %vm1067, %v1060, %v1064
  %v1069 = vand.u32 2147483647, %v1059
  %vm1070 = vcmp.eq.f32.partialorder %v1069, 8.507059e+37
  %v1071 = vand.u32 %v1059, 2147483648
  %v1072 = vor.u32 1.1754944e-38, %v1071
  %v1073 = vsel %vm1070, %v1072, %v1068
  %v1074 = vmul.f32 1.0, %v1073
  %v1075 = vmul.f32 %v1074, 2.0
  %v1076 = vsub.f32 %v1075, 1.0
  %v1077 = vmul.f32 %v1074, %v914
  %1079 = vrot.lane.b32.xlu0 %v1076, 64
  %v1080 = vpop.permute.xlu0 %1079
  %v1082 = vmul.f32 %v1074, %v1080
  %1084 = vrot.lane.b32.xlu0 %v1082, 32
  %v1085 = vpop.permute.xlu0 %1084
  %v1087 = vadd.f32 %v1077, %v1085
  %v1088 = vtanh.pop %v1087
  %1090 = vrot.lane.b32.xlu0 %v1088, 64
  %v1091 = vpop.permute.xlu0 %1090
  %v1093 = vmul.f32 %v1074, %v1091
  %v1094 = vld [vmem:[%s6] sm:$0x1]
  %s1095 = scalar_lea.vmem %s6, 1
  %v1096 = vld [vmem:[%s1095] sm:$0x1]
  %v1097 = vld [vmem:[%s7] sm:$0xff]
  %v1098 = vld [vmem:[%s7 + $0x8] sm:$0xff]
  %v1099 = vld [vmem:[%s7 + $0x10] sm:$0xff]
  %v1100 = vld [vmem:[%s7 + $0x18] sm:$0xff]
  %v1101 = vld [vmem:[%s8] sm:$0x1]
  %1102 = vst [vmem:[%s9] sm:$0xff] 0.0
  %v1103 = vld [vmem:[%s1] sm:$0xff]
  %v1104 = vld [vmem:[%s5] sm:$0xff]
  %v1105 = vld [vmem:[%s5 + $0x8] sm:$0xff]
  %v1106 = vld [vmem:[%s5 + $0x10] sm:$0xff]
  %v1107 = vld [vmem:[%s5 + $0x18] sm:$0xff]
  %v1108 = vld [vmem:[%s5 + $0x20] sm:$0xff]
  %v1109 = vld [vmem:[%s5 + $0x28] sm:$0xff]
  %v1110 = vld [vmem:[%s5 + $0x30] sm:$0xff]
  %v1111 = vld [vmem:[%s5 + $0x38] sm:$0xff]
  %1112 = vmatpush.msra.mxu0 0.0
  %1113 = vmatpush.msra.mxu0 0.0
  %1114 = vmatpush.msra.mxu0 0.0
  %1115 = vmatpush.msra.mxu0 0.0
  %1116 = vmatpush.msra.mxu0 0.0
  %1117 = vmatpush.msra.mxu0 0.0
  %1118 = vmatpush.msra.mxu0 0.0
  %1119 = vmatpush.msra.mxu0 0.0
  %1120 = vmatpush.msra.mxu0 0.0
  %1121 = vmatpush.msra.mxu0 0.0
  %1122 = vmatpush.msra.mxu0 0.0
  %1123 = vmatpush.msra.mxu0 0.0
  %1124 = vmatpush.msra.mxu0 %v1111
  %1125 = vmatpush.msra.mxu0 %v1110
  %1126 = vmatpush.msra.mxu0 %v1109
  %1127 = vmatpush.msra.mxu0 %v1108
  %1128 = vmatmul.f32.gmra.mxu0 %v1033
  %v1129 = vpop.f32.mrf.mxu0
  %v1130 = vadd.f32 0.0, %v1129
  %1131 = vdwg.mxu0
  %v1133 = vsel %vm44, %v1103, 0
  %1135 = vmatpush.msra.mxu0 0.0
  %1136 = vmatpush.msra.mxu0 0.0
  %1137 = vmatpush.msra.mxu0 0.0
  %1138 = vmatpush.msra.mxu0 0.0
  %1139 = vmatpush.msra.mxu0 0.0
  %1140 = vmatpush.msra.mxu0 0.0
  %1141 = vmatpush.msra.mxu0 0.0
  %1142 = vmatpush.msra.mxu0 0.0
  %1143 = vmatpush.msra.mxu0 0.0
  %1144 = vmatpush.msra.mxu0 0.0
  %1145 = vmatpush.msra.mxu0 0.0
  %1146 = vmatpush.msra.mxu0 0.0
  %1147 = vmatpush.msra.mxu0 %v1107
  %1148 = vmatpush.msra.mxu0 %v1106
  %1149 = vmatpush.msra.mxu0 %v1105
  %1150 = vmatpush.msra.mxu0 %v1104
  %1151 = vmatmul.f32.gmra.mxu0 %v1133
  %v1152 = vpop.f32.mrf.mxu0
  %v1153 = vadd.f32 %v1130, %v1152
  %1154 = vdwg.mxu0
  %v1156 = vperm.slane %v1094, 0
  %v1158 = vadd.f32 %v1153, %v1156
  %v1159 = vxor.u32 %v1158, 2147483648
  %v1160 = vmul.f32 %v1159, 1.442695
  %v1161 = vpow.pop %v1160
  %v1162 = vadd.f32 %v1161, 1.0
  %v1163 = vrcp.pop %v1162
  %v1164 = vmul.f32 %v1162, %v1163
  %v1165 = vsub.f32 1.0, %v1164
  %v1166 = vmul.f32 %v1163, %v1165
  %v1167 = vadd.f32 %v1163, %v1166
  %vm1168 = vweird.f32 %v1162
  %vm1169 = vweird.f32 %v1163
  %vm1170 = vmor %vm1168, %vm1169
  %v1171 = vsel %vm1170, %v1163, %v1167
  %v1172 = vand.u32 2147483647, %v1162
  %vm1173 = vcmp.eq.f32.partialorder %v1172, 8.507059e+37
  %v1174 = vand.u32 %v1162, 2147483648
  %v1175 = vor.u32 1.1754944e-38, %v1174
  %v1176 = vsel %vm1173, %v1175, %v1171
  %v1177 = vmul.f32 1.0, %v1176
  %v1178 = vmul.f32 %v1177, 2.0
  %v1179 = vsub.f32 %v1178, 1.0
  %v1180 = vmul.f32 %v1177, %v998
  %1182 = vrot.lane.b32.xlu0 %v1179, 64
  %v1183 = vpop.permute.xlu0 %1182
  %v1185 = vmul.f32 %v1177, %v1183
  %1187 = vrot.lane.b32.xlu0 %v1185, 32
  %v1188 = vpop.permute.xlu0 %1187
  %v1190 = vadd.f32 %v1180, %v1188
  %v1191 = vtanh.pop %v1190
  %1193 = vrot.lane.b32.xlu0 %v1191, 64
  %v1194 = vpop.permute.xlu0 %1193
  %v1196 = vmul.f32 %v1177, %v1194
  %s1197 = scalar_lea.vmem %s5, 64
  %v1198 = vld [vmem:[%s1197] sm:$0xff]
  %v1199 = vld [vmem:[%s1197 + $0x8] sm:$0xff]
  %v1200 = vld [vmem:[%s1197 + $0x10] sm:$0xff]
  %v1201 = vld [vmem:[%s1197 + $0x18] sm:$0xff]
  %v1202 = vld [vmem:[%s1197 + $0x20] sm:$0xff]
  %v1203 = vld [vmem:[%s1197 + $0x28] sm:$0xff]
  %v1204 = vld [vmem:[%s1197 + $0x30] sm:$0xff]
  %v1205 = vld [vmem:[%s1197 + $0x38] sm:$0xff]
  %1207 = vrot.lane.b32.xlu0 %v1093, 32
  %v1208 = vpop.permute.xlu0 %1207
  %v1209 = vsel %vm44, %v1208, 0
  %1211 = vmatpush.msra.mxu0 0.0
  %1212 = vmatpush.msra.mxu0 0.0
  %1213 = vmatpush.msra.mxu0 0.0
  %1214 = vmatpush.msra.mxu0 0.0
  %1215 = vmatpush.msra.mxu0 0.0
  %1216 = vmatpush.msra.mxu0 0.0
  %1217 = vmatpush.msra.mxu0 0.0
  %1218 = vmatpush.msra.mxu0 0.0
  %1219 = vmatpush.msra.mxu0 0.0
  %1220 = vmatpush.msra.mxu0 0.0
  %1221 = vmatpush.msra.mxu0 0.0
  %1222 = vmatpush.msra.mxu0 0.0
  %1223 = vmatpush.msra.mxu0 %v1205
  %1224 = vmatpush.msra.mxu0 %v1204
  %1225 = vmatpush.msra.mxu0 %v1203
  %1226 = vmatpush.msra.mxu0 %v1202
  %1227 = vmatmul.f32.gmra.mxu0 %v1209
  %v1228 = vpop.f32.mrf.mxu0
  %v1229 = vadd.f32 0.0, %v1228
  %1230 = vdwg.mxu0
  %1232 = vrot.lane.b32.xlu0 %v1196, 32
  %v1233 = vpop.permute.xlu0 %1232
  %v1234 = vsel %vm44, %v1233, 0
  %1236 = vmatpush.msra.mxu0 0.0
  %1237 = vmatpush.msra.mxu0 0.0
  %1238 = vmatpush.msra.mxu0 0.0
  %1239 = vmatpush.msra.mxu0 0.0
  %1240 = vmatpush.msra.mxu0 0.0
  %1241 = vmatpush.msra.mxu0 0.0
  %1242 = vmatpush.msra.mxu0 0.0
  %1243 = vmatpush.msra.mxu0 0.0
  %1244 = vmatpush.msra.mxu0 0.0
  %1245 = vmatpush.msra.mxu0 0.0
  %1246 = vmatpush.msra.mxu0 0.0
  %1247 = vmatpush.msra.mxu0 0.0
  %1248 = vmatpush.msra.mxu0 %v1201
  %1249 = vmatpush.msra.mxu0 %v1200
  %1250 = vmatpush.msra.mxu0 %v1199
  %1251 = vmatpush.msra.mxu0 %v1198
  %1252 = vmatmul.f32.gmra.mxu0 %v1234
  %v1253 = vpop.f32.mrf.mxu0
  %v1254 = vadd.f32 %v1229, %v1253
  %1255 = vdwg.mxu0
  %v1257 = vperm.slane %v1096, 0
  %v1259 = vadd.f32 %v1254, %v1257
  %v1260 = vxor.u32 %v1259, 2147483648
  %v1261 = vmul.f32 %v1260, 1.442695
  %v1262 = vpow.pop %v1261
  %v1263 = vadd.f32 %v1262, 1.0
  %v1264 = vrcp.pop %v1263
  %v1265 = vmul.f32 %v1263, %v1264
  %v1266 = vsub.f32 1.0, %v1265
  %v1267 = vmul.f32 %v1264, %v1266
  %v1268 = vadd.f32 %v1264, %v1267
  %vm1269 = vweird.f32 %v1263
  %vm1270 = vweird.f32 %v1264
  %vm1271 = vmor %vm1269, %vm1270
  %v1272 = vsel %vm1271, %v1264, %v1268
  %v1273 = vand.u32 2147483647, %v1263
  %vm1274 = vcmp.eq.f32.partialorder %v1273, 8.507059e+37
  %v1275 = vand.u32 %v1263, 2147483648
  %v1276 = vor.u32 1.1754944e-38, %v1275
  %v1277 = vsel %vm1274, %v1276, %v1272
  %v1278 = vmul.f32 1.0, %v1277
  %v1279 = vmul.f32 %v1278, 2.0
  %v1280 = vsub.f32 %v1279, 1.0
  %v1281 = vmul.f32 %v1278, %v1087
  %1283 = vrot.lane.b32.xlu0 %v1280, 64
  %v1284 = vpop.permute.xlu0 %1283
  %v1286 = vmul.f32 %v1278, %v1284
  %1288 = vrot.lane.b32.xlu0 %v1286, 32
  %v1289 = vpop.permute.xlu0 %1288
  %v1291 = vadd.f32 %v1281, %v1289
  %v1292 = vtanh.pop %v1291
  %1294 = vrot.lane.b32.xlu0 %v1292, 64
  %v1295 = vpop.permute.xlu0 %1294
  %v1297 = vmul.f32 %v1278, %v1295
  %v1299 = vperm.slane %v1101, 0
  %1302 = vrot.lane.b32.xlu0 %v1297, 32
  %v1303 = vpop.permute.xlu0 %1302
  %v1304 = vsel %vm44, %v1303, 0
  %1306 = vmatpush.msra.mxu0 0.0
  %1307 = vmatpush.msra.mxu0 0.0
  %1308 = vmatpush.msra.mxu0 0.0
  %1309 = vmatpush.msra.mxu0 0.0
  %1310 = vmatpush.msra.mxu0 0.0
  %1311 = vmatpush.msra.mxu0 0.0
  %1312 = vmatpush.msra.mxu0 0.0
  %1313 = vmatpush.msra.mxu0 0.0
  %1314 = vmatpush.msra.mxu0 0.0
  %1315 = vmatpush.msra.mxu0 0.0
  %1316 = vmatpush.msra.mxu0 0.0
  %1317 = vmatpush.msra.mxu0 0.0
  %1318 = vmatpush.msra.mxu0 %v1100
  %1319 = vmatpush.msra.mxu0 %v1099
  %1320 = vmatpush.msra.mxu0 %v1098
  %1321 = vmatpush.msra.mxu0 %v1097
  %1322 = vmatmul.f32.gmra.mxu0 %v1304
  %v1323 = vpop.f32.mrf.mxu0
  %v1324 = vadd.f32 %v1299, %v1323
  %1325 = vdwg.mxu0
  %s1326 = scalar_lea.vmem %s9, 8
  %1327 = vst [vmem:[%s1326] sm:$0xff] %v1324
  %v1328 = vlaneseq
  %v1329 = vand.u32 %v1328, 127
  %1330 = vmax.xlane.f32.xlu0 %v1324
  %v1331 = vpop.xlane.xlu0 %1330
  %vm1332 = vcmp.eq.f32.partialorder %v1324, %v1331
  %v1333 = vsel %vm1332, %v1329, 128
  %v1334 = vand.u32 %v1333, 65535
  %v1335 = vshra.s32 %v1333, 16
  %v1336 = vcvt.s32.f32 %v1334
  %v1337 = vcvt.s32.f32 %v1335
  %1338 = vmin.xlane.f32.xlu0 %v1337
  %v1339 = vpop.xlane.xlu0 %1338
  %vm1340 = vcmp.eq.f32.partialorder %v1337, %v1339
  %v1341 = vsel %vm1340, %v1336, inf
  %1342 = vmin.xlane.f32.xlu0 %v1341
  %v1343 = vpop.xlane.xlu0 %1342
  %v1344 = vcvt.f32.s32 %v1343
  %v1345 = vcvt.f32.s32 %v1339
  %v1346 = vshll.u32 %v1345, 16
  %v1347 = vadd.s32 %v1346, %v1344
  %vm1348 = vcmp.eq.s32.totalorder %v1329, %v1347
  %v1349 = vsel %vm1348, 1, 0
  %v1350 = vcvt.s32.f32 %v1349
  %v1351 = vld [vmem:[%s2] sm:$0xff]
  %v1352 = vld [vmem:[%s2 + $0x8] sm:$0xff]
  %v1353 = vld [vmem:[%s2 + $0x10] sm:$0xff]
  %v1354 = vld [vmem:[%s2 + $0x18] sm:$0xff]
  %v1355 = vld [vmem:[%s2 + $0x20] sm:$0xff]
  %v1356 = vld [vmem:[%s2 + $0x28] sm:$0xff]
  %v1357 = vld [vmem:[%s2 + $0x30] sm:$0xff]
  %v1358 = vld [vmem:[%s2 + $0x38] sm:$0xff]
  %v1359 = vld [vmem:[%s2 + $0x40] sm:$0xff]
  %v1360 = vld [vmem:[%s2 + $0x48] sm:$0xff]
  %v1361 = vld [vmem:[%s2 + $0x50] sm:$0xff]
  %v1362 = vld [vmem:[%s2 + $0x58] sm:$0xff]
  %v1363 = vld [vmem:[%s2 + $0x60] sm:$0xff]
  %v1364 = vld [vmem:[%s2 + $0x68] sm:$0xff]
  %v1365 = vld [vmem:[%s2 + $0x70] sm:$0xff]
  %v1366 = vld [vmem:[%s2 + $0x78] sm:$0xff]
  %1367 = vmatpush.msra.mxu0 %v1366
  %1368 = vmatpush.msra.mxu0 %v1365
  %1369 = vmatpush.msra.mxu0 %v1364
  %1370 = vmatpush.msra.mxu0 %v1363
  %1371 = vmatpush.msra.mxu0 %v1362
  %1372 = vmatpush.msra.mxu0 %v1361
  %1373 = vmatpush.msra.mxu0 %v1360
  %1374 = vmatpush.msra.mxu0 %v1359
  %1375 = vmatpush.msra.mxu0 %v1358
  %1376 = vmatpush.msra.mxu0 %v1357
  %1377 = vmatpush.msra.mxu0 %v1356
  %1378 = vmatpush.msra.mxu0 %v1355
  %1379 = vmatpush.msra.mxu0 %v1354
  %1380 = vmatpush.msra.mxu0 %v1353
  %1381 = vmatpush.msra.mxu0 %v1352
  %1382 = vmatpush.msra.mxu0 %v1351
  %1383 = vmatmul.f32.gmra.mxu0 %v1350
  %v1384 = vpop.f32.mrf.mxu0
  %v1385 = vadd.f32 0.0, %v1384
  %1386 = vdwg.mxu0
  %v1387 = vld [vmem:[%s5] sm:$0xff]
  %v1388 = vld [vmem:[%s5 + $0x8] sm:$0xff]
  %v1389 = vld [vmem:[%s5 + $0x10] sm:$0xff]
  %v1390 = vld [vmem:[%s5 + $0x18] sm:$0xff]
  %v1391 = vld [vmem:[%s5 + $0x20] sm:$0xff]
  %v1392 = vld [vmem:[%s5 + $0x28] sm:$0xff]
  %v1393 = vld [vmem:[%s5 + $0x30] sm:$0xff]
  %v1394 = vld [vmem:[%s5 + $0x38] sm:$0xff]
  %1395 = vmatpush.msra.mxu0 0.0
  %1396 = vmatpush.msra.mxu0 0.0
  %1397 = vmatpush.msra.mxu0 0.0
  %1398 = vmatpush.msra.mxu0 0.0
  %1399 = vmatpush.msra.mxu0 0.0
  %1400 = vmatpush.msra.mxu0 0.0
  %1401 = vmatpush.msra.mxu0 0.0
  %1402 = vmatpush.msra.mxu0 0.0
  %1403 = vmatpush.msra.mxu0 0.0
  %1404 = vmatpush.msra.mxu0 0.0
  %1405 = vmatpush.msra.mxu0 0.0
  %1406 = vmatpush.msra.mxu0 0.0
  %1407 = vmatpush.msra.mxu0 %v1394
  %1408 = vmatpush.msra.mxu0 %v1393
  %1409 = vmatpush.msra.mxu0 %v1392
  %1410 = vmatpush.msra.mxu0 %v1391
  %1411 = vmatmul.f32.gmra.mxu0 %v1234
  %v1412 = vpop.f32.mrf.mxu0
  %v1413 = vadd.f32 0.0, %v1412
  %1414 = vdwg.mxu0
  %v1416 = vsel %vm44, %v1385, 0
  %1418 = vmatpush.msra.mxu0 0.0
  %1419 = vmatpush.msra.mxu0 0.0
  %1420 = vmatpush.msra.mxu0 0.0
  %1421 = vmatpush.msra.mxu0 0.0
  %1422 = vmatpush.msra.mxu0 0.0
  %1423 = vmatpush.msra.mxu0 0.0
  %1424 = vmatpush.msra.mxu0 0.0
  %1425 = vmatpush.msra.mxu0 0.0
  %1426 = vmatpush.msra.mxu0 0.0
  %1427 = vmatpush.msra.mxu0 0.0
  %1428 = vmatpush.msra.mxu0 0.0
  %1429 = vmatpush.msra.mxu0 0.0
  %1430 = vmatpush.msra.mxu0 %v1390
  %1431 = vmatpush.msra.mxu0 %v1389
  %1432 = vmatpush.msra.mxu0 %v1388
  %1433 = vmatpush.msra.mxu0 %v1387
  %1434 = vmatmul.f32.gmra.mxu0 %v1416
  %v1435 = vpop.f32.mrf.mxu0
  %v1436 = vadd.f32 %v1413, %v1435
  %1437 = vdwg.mxu0
  %v1438 = vadd.f32 %v1436, %v1156
  %v1439 = vxor.u32 %v1438, 2147483648
  %v1440 = vmul.f32 %v1439, 1.442695
  %v1441 = vpow.pop %v1440
  %v1442 = vadd.f32 %v1441, 1.0
  %v1443 = vrcp.pop %v1442
  %v1444 = vmul.f32 %v1442, %v1443
  %v1445 = vsub.f32 1.0, %v1444
  %v1446 = vmul.f32 %v1443, %v1445
  %v1447 = vadd.f32 %v1443, %v1446
  %vm1448 = vweird.f32 %v1442
  %vm1449 = vweird.f32 %v1443
  %vm1450 = vmor %vm1448, %vm1449
  %v1451 = vsel %vm1450, %v1443, %v1447
  %v1452 = vand.u32 2147483647, %v1442
  %vm1453 = vcmp.eq.f32.partialorder %v1452, 8.507059e+37
  %v1454 = vand.u32 %v1442, 2147483648
  %v1455 = vor.u32 1.1754944e-38, %v1454
  %v1456 = vsel %vm1453, %v1455, %v1451
  %v1457 = vmul.f32 1.0, %v1456
  %v1458 = vmul.f32 %v1457, 2.0
  %v1459 = vsub.f32 %v1458, 1.0
  %v1460 = vmul.f32 %v1457, %v1190
  %1462 = vrot.lane.b32.xlu0 %v1459, 64
  %v1463 = vpop.permute.xlu0 %1462
  %v1465 = vmul.f32 %v1457, %v1463
  %1467 = vrot.lane.b32.xlu0 %v1465, 32
  %v1468 = vpop.permute.xlu0 %1467
  %v1470 = vadd.f32 %v1460, %v1468
  %v1471 = vtanh.pop %v1470
  %1473 = vrot.lane.b32.xlu0 %v1471, 64
  %v1474 = vpop.permute.xlu0 %1473
  %v1476 = vmul.f32 %v1457, %v1474
  %v1477 = vld [vmem:[%s1197] sm:$0xff]
  %v1478 = vld [vmem:[%s1197 + $0x8] sm:$0xff]
  %v1479 = vld [vmem:[%s1197 + $0x10] sm:$0xff]
  %v1480 = vld [vmem:[%s1197 + $0x18] sm:$0xff]
  %v1481 = vld [vmem:[%s1197 + $0x20] sm:$0xff]
  %v1482 = vld [vmem:[%s1197 + $0x28] sm:$0xff]
  %v1483 = vld [vmem:[%s1197 + $0x30] sm:$0xff]
  %v1484 = vld [vmem:[%s1197 + $0x38] sm:$0xff]
  %1485 = vmatpush.msra.mxu0 0.0
  %1486 = vmatpush.msra.mxu0 0.0
  %1487 = vmatpush.msra.mxu0 0.0
  %1488 = vmatpush.msra.mxu0 0.0
  %1489 = vmatpush.msra.mxu0 0.0
  %1490 = vmatpush.msra.mxu0 0.0
  %1491 = vmatpush.msra.mxu0 0.0
  %1492 = vmatpush.msra.mxu0 0.0
  %1493 = vmatpush.msra.mxu0 0.0
  %1494 = vmatpush.msra.mxu0 0.0
  %1495 = vmatpush.msra.mxu0 0.0
  %1496 = vmatpush.msra.mxu0 0.0
  %1497 = vmatpush.msra.mxu0 %v1484
  %1498 = vmatpush.msra.mxu0 %v1483
  %1499 = vmatpush.msra.mxu0 %v1482
  %1500 = vmatpush.msra.mxu0 %v1481
  %1501 = vmatmul.f32.gmra.mxu0 %v1304
  %v1502 = vpop.f32.mrf.mxu0
  %v1503 = vadd.f32 0.0, %v1502
  %1504 = vdwg.mxu0
  %1506 = vrot.lane.b32.xlu0 %v1476, 32
  %v1507 = vpop.permute.xlu0 %1506
  %v1508 = vsel %vm44, %v1507, 0
  %1510 = vmatpush.msra.mxu0 0.0
  %1511 = vmatpush.msra.mxu0 0.0
  %1512 = vmatpush.msra.mxu0 0.0
  %1513 = vmatpush.msra.mxu0 0.0
  %1514 = vmatpush.msra.mxu0 0.0
  %1515 = vmatpush.msra.mxu0 0.0
  %1516 = vmatpush.msra.mxu0 0.0
  %1517 = vmatpush.msra.mxu0 0.0
  %1518 = vmatpush.msra.mxu0 0.0
  %1519 = vmatpush.msra.mxu0 0.0
  %1520 = vmatpush.msra.mxu0 0.0
  %1521 = vmatpush.msra.mxu0 0.0
  %1522 = vmatpush.msra.mxu0 %v1480
  %1523 = vmatpush.msra.mxu0 %v1479
  %1524 = vmatpush.msra.mxu0 %v1478
  %1525 = vmatpush.msra.mxu0 %v1477
  %1526 = vmatmul.f32.gmra.mxu0 %v1508
  %v1527 = vpop.f32.mrf.mxu0
  %v1528 = vadd.f32 %v1503, %v1527
  %1529 = vdwg.mxu0
  %v1530 = vadd.f32 %v1528, %v1257
  %v1531 = vxor.u32 %v1530, 2147483648
  %v1532 = vmul.f32 %v1531, 1.442695
  %v1533 = vpow.pop %v1532
  %v1534 = vadd.f32 %v1533, 1.0
  %v1535 = vrcp.pop %v1534
  %v1536 = vmul.f32 %v1534, %v1535
  %v1537 = vsub.f32 1.0, %v1536
  %v1538 = vmul.f32 %v1535, %v1537
  %v1539 = vadd.f32 %v1535, %v1538
  %vm1540 = vweird.f32 %v1534
  %vm1541 = vweird.f32 %v1535
  %vm1542 = vmor %vm1540, %vm1541
  %v1543 = vsel %vm1542, %v1535, %v1539
  %v1544 = vand.u32 2147483647, %v1534
  %vm1545 = vcmp.eq.f32.partialorder %v1544, 8.507059e+37
  %v1546 = vand.u32 %v1534, 2147483648
  %v1547 = vor.u32 1.1754944e-38, %v1546
  %v1548 = vsel %vm1545, %v1547, %v1543
  %v1549 = vmul.f32 1.0, %v1548
  %v1550 = vmul.f32 %v1549, 2.0
  %v1551 = vsub.f32 %v1550, 1.0
  %v1552 = vmul.f32 %v1549, %v1291
  %1554 = vrot.lane.b32.xlu0 %v1551, 64
  %v1555 = vpop.permute.xlu0 %1554
  %v1557 = vmul.f32 %v1549, %v1555
  %1559 = vrot.lane.b32.xlu0 %v1557, 32
  %v1560 = vpop.permute.xlu0 %1559
  %v1562 = vadd.f32 %v1552, %v1560
  %v1563 = vtanh.pop %v1562
  %1565 = vrot.lane.b32.xlu0 %v1563, 64
  %v1566 = vpop.permute.xlu0 %1565
  %v1568 = vmul.f32 %v1549, %v1566
  %1570 = vrot.lane.b32.xlu0 %v1568, 32
  %v1571 = vpop.permute.xlu0 %1570
  %v1572 = vsel %vm44, %v1571, 0
  %1574 = vmatpush.msra.mxu0 0.0
  %1575 = vmatpush.msra.mxu0 0.0
  %1576 = vmatpush.msra.mxu0 0.0
  %1577 = vmatpush.msra.mxu0 0.0
  %1578 = vmatpush.msra.mxu0 0.0
  %1579 = vmatpush.msra.mxu0 0.0
  %1580 = vmatpush.msra.mxu0 0.0
  %1581 = vmatpush.msra.mxu0 0.0
  %1582 = vmatpush.msra.mxu0 0.0
  %1583 = vmatpush.msra.mxu0 0.0
  %1584 = vmatpush.msra.mxu0 0.0
  %1585 = vmatpush.msra.mxu0 0.0
  %1586 = vmatpush.msra.mxu0 %v1100
  %1587 = vmatpush.msra.mxu0 %v1099
  %1588 = vmatpush.msra.mxu0 %v1098
  %1589 = vmatpush.msra.mxu0 %v1097
  %1590 = vmatmul.f32.gmra.mxu0 %v1572
  %v1591 = vpop.f32.mrf.mxu0
  %v1592 = vadd.f32 %v1299, %v1591
  %1593 = vdwg.mxu0
  %s1594 = scalar_lea.vmem %s9, 16
  %1595 = vst [vmem:[%s1594] sm:$0xff] %v1592
  %1596 = vmax.xlane.f32.xlu0 %v1592
  %v1597 = vpop.xlane.xlu0 %1596
  %vm1598 = vcmp.eq.f32.partialorder %v1592, %v1597
  %v1599 = vsel %vm1598, %v1329, 128
  %v1600 = vand.u32 %v1599, 65535
  %v1601 = vshra.s32 %v1599, 16
  %v1602 = vcvt.s32.f32 %v1600
  %v1603 = vcvt.s32.f32 %v1601
  %1604 = vmin.xlane.f32.xlu0 %v1603
  %v1605 = vpop.xlane.xlu0 %1604
  %vm1606 = vcmp.eq.f32.partialorder %v1603, %v1605
  %v1607 = vsel %vm1606, %v1602, inf
  %1608 = vmin.xlane.f32.xlu0 %v1607
  %v1609 = vpop.xlane.xlu0 %1608
  %v1610 = vcvt.f32.s32 %v1609
  %v1611 = vcvt.f32.s32 %v1605
  %v1612 = vshll.u32 %v1611, 16
  %v1613 = vadd.s32 %v1612, %v1610
  %vm1614 = vcmp.eq.s32.totalorder %v1329, %v1613
  %v1615 = vsel %vm1614, 1, 0
  %v1616 = vcvt.s32.f32 %v1615
  %v1617 = vld [vmem:[%s2] sm:$0xff]
  %v1618 = vld [vmem:[%s2 + $0x8] sm:$0xff]
  %v1619 = vld [vmem:[%s2 + $0x10] sm:$0xff]
  %v1620 = vld [vmem:[%s2 + $0x18] sm:$0xff]
  %v1621 = vld [vmem:[%s2 + $0x20] sm:$0xff]
  %v1622 = vld [vmem:[%s2 + $0x28] sm:$0xff]
  %v1623 = vld [vmem:[%s2 + $0x30] sm:$0xff]
  %v1624 = vld [vmem:[%s2 + $0x38] sm:$0xff]
  %v1625 = vld [vmem:[%s2 + $0x40] sm:$0xff]
  %v1626 = vld [vmem:[%s2 + $0x48] sm:$0xff]
  %v1627 = vld [vmem:[%s2 + $0x50] sm:$0xff]
  %v1628 = vld [vmem:[%s2 + $0x58] sm:$0xff]
  %v1629 = vld [vmem:[%s2 + $0x60] sm:$0xff]
  %v1630 = vld [vmem:[%s2 + $0x68] sm:$0xff]
  %v1631 = vld [vmem:[%s2 + $0x70] sm:$0xff]
  %v1632 = vld [vmem:[%s2 + $0x78] sm:$0xff]
  %1633 = vmatpush.msra.mxu0 %v1632
  %1634 = vmatpush.msra.mxu0 %v1631
  %1635 = vmatpush.msra.mxu0 %v1630
  %1636 = vmatpush.msra.mxu0 %v1629
  %1637 = vmatpush.msra.mxu0 %v1628
  %1638 = vmatpush.msra.mxu0 %v1627
  %1639 = vmatpush.msra.mxu0 %v1626
  %1640 = vmatpush.msra.mxu0 %v1625
  %1641 = vmatpush.msra.mxu0 %v1624
  %1642 = vmatpush.msra.mxu0 %v1623
  %1643 = vmatpush.msra.mxu0 %v1622
  %1644 = vmatpush.msra.mxu0 %v1621
  %1645 = vmatpush.msra.mxu0 %v1620
  %1646 = vmatpush.msra.mxu0 %v1619
  %1647 = vmatpush.msra.mxu0 %v1618
  %1648 = vmatpush.msra.mxu0 %v1617
  %1649 = vmatmul.f32.gmra.mxu0 %v1616
  %v1650 = vpop.f32.mrf.mxu0
  %v1651 = vadd.f32 0.0, %v1650
  %1652 = vdwg.mxu0
  %v1653 = vld [vmem:[%s5] sm:$0xff]
  %v1654 = vld [vmem:[%s5 + $0x8] sm:$0xff]
  %v1655 = vld [vmem:[%s5 + $0x10] sm:$0xff]
  %v1656 = vld [vmem:[%s5 + $0x18] sm:$0xff]
  %v1657 = vld [vmem:[%s5 + $0x20] sm:$0xff]
  %v1658 = vld [vmem:[%s5 + $0x28] sm:$0xff]
  %v1659 = vld [vmem:[%s5 + $0x30] sm:$0xff]
  %v1660 = vld [vmem:[%s5 + $0x38] sm:$0xff]
  %1661 = vmatpush.msra.mxu0 0.0
  %1662 = vmatpush.msra.mxu0 0.0
  %1663 = vmatpush.msra.mxu0 0.0
  %1664 = vmatpush.msra.mxu0 0.0
  %1665 = vmatpush.msra.mxu0 0.0
  %1666 = vmatpush.msra.mxu0 0.0
  %1667 = vmatpush.msra.mxu0 0.0
  %1668 = vmatpush.msra.mxu0 0.0
  %1669 = vmatpush.msra.mxu0 0.0
  %1670 = vmatpush.msra.mxu0 0.0
  %1671 = vmatpush.msra.mxu0 0.0
  %1672 = vmatpush.msra.mxu0 0.0
  %1673 = vmatpush.msra.mxu0 %v1660
  %1674 = vmatpush.msra.mxu0 %v1659
  %1675 = vmatpush.msra.mxu0 %v1658
  %1676 = vmatpush.msra.mxu0 %v1657
  %1677 = vmatmul.f32.gmra.mxu0 %v1508
  %v1678 = vpop.f32.mrf.mxu0
  %v1679 = vadd.f32 0.0, %v1678
  %1680 = vdwg.mxu0
  %v1682 = vsel %vm44, %v1651, 0
  %1684 = vmatpush.msra.mxu0 0.0
  %1685 = vmatpush.msra.mxu0 0.0
  %1686 = vmatpush.msra.mxu0 0.0
  %1687 = vmatpush.msra.mxu0 0.0
  %1688 = vmatpush.msra.mxu0 0.0
  %1689 = vmatpush.msra.mxu0 0.0
  %1690 = vmatpush.msra.mxu0 0.0
  %1691 = vmatpush.msra.mxu0 0.0
  %1692 = vmatpush.msra.mxu0 0.0
  %1693 = vmatpush.msra.mxu0 0.0
  %1694 = vmatpush.msra.mxu0 0.0
  %1695 = vmatpush.msra.mxu0 0.0
  %1696 = vmatpush.msra.mxu0 %v1656
  %1697 = vmatpush.msra.mxu0 %v1655
  %1698 = vmatpush.msra.mxu0 %v1654
  %1699 = vmatpush.msra.mxu0 %v1653
  %1700 = vmatmul.f32.gmra.mxu0 %v1682
  %v1701 = vpop.f32.mrf.mxu0
  %v1702 = vadd.f32 %v1679, %v1701
  %1703 = vdwg.mxu0
  %v1704 = vadd.f32 %v1702, %v1156
  %v1705 = vxor.u32 %v1704, 2147483648
  %v1706 = vmul.f32 %v1705, 1.442695
  %v1707 = vpow.pop %v1706
  %v1708 = vadd.f32 %v1707, 1.0
  %v1709 = vrcp.pop %v1708
  %v1710 = vmul.f32 %v1708, %v1709
  %v1711 = vsub.f32 1.0, %v1710
  %v1712 = vmul.f32 %v1709, %v1711
  %v1713 = vadd.f32 %v1709, %v1712
  %vm1714 = vweird.f32 %v1708
  %vm1715 = vweird.f32 %v1709
  %vm1716 = vmor %vm1714, %vm1715
  %v1717 = vsel %vm1716, %v1709, %v1713
  %v1718 = vand.u32 2147483647, %v1708
  %vm1719 = vcmp.eq.f32.partialorder %v1718, 8.507059e+37
  %v1720 = vand.u32 %v1708, 2147483648
  %v1721 = vor.u32 1.1754944e-38, %v1720
  %v1722 = vsel %vm1719, %v1721, %v1717
  %v1723 = vmul.f32 1.0, %v1722
  %v1724 = vmul.f32 %v1723, 2.0
  %v1725 = vsub.f32 %v1724, 1.0
  %v1726 = vmul.f32 %v1723, %v1470
  %1728 = vrot.lane.b32.xlu0 %v1725, 64
  %v1729 = vpop.permute.xlu0 %1728
  %v1731 = vmul.f32 %v1723, %v1729
  %1733 = vrot.lane.b32.xlu0 %v1731, 32
  %v1734 = vpop.permute.xlu0 %1733
  %v1736 = vadd.f32 %v1726, %v1734
  %v1737 = vtanh.pop %v1736
  %1739 = vrot.lane.b32.xlu0 %v1737, 64
  %v1740 = vpop.permute.xlu0 %1739
  %v1742 = vmul.f32 %v1723, %v1740
  %v1743 = vld [vmem:[%s1197] sm:$0xff]
  %v1744 = vld [vmem:[%s1197 + $0x8] sm:$0xff]
  %v1745 = vld [vmem:[%s1197 + $0x10] sm:$0xff]
  %v1746 = vld [vmem:[%s1197 + $0x18] sm:$0xff]
  %v1747 = vld [vmem:[%s1197 + $0x20] sm:$0xff]
  %v1748 = vld [vmem:[%s1197 + $0x28] sm:$0xff]
  %v1749 = vld [vmem:[%s1197 + $0x30] sm:$0xff]
  %v1750 = vld [vmem:[%s1197 + $0x38] sm:$0xff]
  %1751 = vmatpush.msra.mxu0 0.0
  %1752 = vmatpush.msra.mxu0 0.0
  %1753 = vmatpush.msra.mxu0 0.0
  %1754 = vmatpush.msra.mxu0 0.0
  %1755 = vmatpush.msra.mxu0 0.0
  %1756 = vmatpush.msra.mxu0 0.0
  %1757 = vmatpush.msra.mxu0 0.0
  %1758 = vmatpush.msra.mxu0 0.0
  %1759 = vmatpush.msra.mxu0 0.0
  %1760 = vmatpush.msra.mxu0 0.0
  %1761 = vmatpush.msra.mxu0 0.0
  %1762 = vmatpush.msra.mxu0 0.0
  %1763 = vmatpush.msra.mxu0 %v1750
  %1764 = vmatpush.msra.mxu0 %v1749
  %1765 = vmatpush.msra.mxu0 %v1748
  %1766 = vmatpush.msra.mxu0 %v1747
  %1767 = vmatmul.f32.gmra.mxu0 %v1572
  %v1768 = vpop.f32.mrf.mxu0
  %v1769 = vadd.f32 0.0, %v1768
  %1770 = vdwg.mxu0
  %1772 = vrot.lane.b32.xlu0 %v1742, 32
  %v1773 = vpop.permute.xlu0 %1772
  %v1774 = vsel %vm44, %v1773, 0
  %1776 = vmatpush.msra.mxu0 0.0
  %1777 = vmatpush.msra.mxu0 0.0
  %1778 = vmatpush.msra.mxu0 0.0
  %1779 = vmatpush.msra.mxu0 0.0
  %1780 = vmatpush.msra.mxu0 0.0
  %1781 = vmatpush.msra.mxu0 0.0
  %1782 = vmatpush.msra.mxu0 0.0
  %1783 = vmatpush.msra.mxu0 0.0
  %1784 = vmatpush.msra.mxu0 0.0
  %1785 = vmatpush.msra.mxu0 0.0
  %1786 = vmatpush.msra.mxu0 0.0
  %1787 = vmatpush.msra.mxu0 0.0
  %1788 = vmatpush.msra.mxu0 %v1746
  %1789 = vmatpush.msra.mxu0 %v1745
  %1790 = vmatpush.msra.mxu0 %v1744
  %1791 = vmatpush.msra.mxu0 %v1743
  %1792 = vmatmul.f32.gmra.mxu0 %v1774
  %v1793 = vpop.f32.mrf.mxu0
  %v1794 = vadd.f32 %v1769, %v1793
  %1795 = vdwg.mxu0
  %v1796 = vadd.f32 %v1794, %v1257
  %v1797 = vxor.u32 %v1796, 2147483648
  %v1798 = vmul.f32 %v1797, 1.442695
  %v1799 = vpow.pop %v1798
  %v1800 = vadd.f32 %v1799, 1.0
  %v1801 = vrcp.pop %v1800
  %v1802 = vmul.f32 %v1800, %v1801
  %v1803 = vsub.f32 1.0, %v1802
  %v1804 = vmul.f32 %v1801, %v1803
  %v1805 = vadd.f32 %v1801, %v1804
  %vm1806 = vweird.f32 %v1800
  %vm1807 = vweird.f32 %v1801
  %vm1808 = vmor %vm1806, %vm1807
  %v1809 = vsel %vm1808, %v1801, %v1805
  %v1810 = vand.u32 2147483647, %v1800
  %vm1811 = vcmp.eq.f32.partialorder %v1810, 8.507059e+37
  %v1812 = vand.u32 %v1800, 2147483648
  %v1813 = vor.u32 1.1754944e-38, %v1812
  %v1814 = vsel %vm1811, %v1813, %v1809
  %v1815 = vmul.f32 1.0, %v1814
  %v1816 = vmul.f32 %v1815, 2.0
  %v1817 = vsub.f32 %v1816, 1.0
  %v1818 = vmul.f32 %v1815, %v1562
  %1820 = vrot.lane.b32.xlu0 %v1817, 64
  %v1821 = vpop.permute.xlu0 %1820
  %v1823 = vmul.f32 %v1815, %v1821
  %1825 = vrot.lane.b32.xlu0 %v1823, 32
  %v1826 = vpop.permute.xlu0 %1825
  %v1828 = vadd.f32 %v1818, %v1826
  %v1829 = vtanh.pop %v1828
  %1831 = vrot.lane.b32.xlu0 %v1829, 64
  %v1832 = vpop.permute.xlu0 %1831
  %v1834 = vmul.f32 %v1815, %v1832
  %1836 = vrot.lane.b32.xlu0 %v1834, 32
  %v1837 = vpop.permute.xlu0 %1836
  %v1838 = vsel %vm44, %v1837, 0
  %1840 = vmatpush.msra.mxu0 0.0
  %1841 = vmatpush.msra.mxu0 0.0
  %1842 = vmatpush.msra.mxu0 0.0
  %1843 = vmatpush.msra.mxu0 0.0
  %1844 = vmatpush.msra.mxu0 0.0
  %1845 = vmatpush.msra.mxu0 0.0
  %1846 = vmatpush.msra.mxu0 0.0
  %1847 = vmatpush.msra.mxu0 0.0
  %1848 = vmatpush.msra.mxu0 0.0
  %1849 = vmatpush.msra.mxu0 0.0
  %1850 = vmatpush.msra.mxu0 0.0
  %1851 = vmatpush.msra.mxu0 0.0
  %1852 = vmatpush.msra.mxu0 %v1100
  %1853 = vmatpush.msra.mxu0 %v1099
  %1854 = vmatpush.msra.mxu0 %v1098
  %1855 = vmatpush.msra.mxu0 %v1097
  %1856 = vmatmul.f32.gmra.mxu0 %v1838
  %v1857 = vpop.f32.mrf.mxu0
  %v1858 = vadd.f32 %v1299, %v1857
  %1859 = vdwg.mxu0
  %s1860 = scalar_lea.vmem %s9, 24
  %1861 = vst [vmem:[%s1860] sm:$0xff] %v1858
  %s1862 = scalar_lea.vmem %s1, 24
  %v1863 = vld [vmem:[%s1862] sm:$0xff]
  %v1864 = vld [vmem:[%s5] sm:$0xff]
  %v1865 = vld [vmem:[%s5 + $0x8] sm:$0xff]
  %v1866 = vld [vmem:[%s5 + $0x10] sm:$0xff]
  %v1867 = vld [vmem:[%s5 + $0x18] sm:$0xff]
  %v1868 = vld [vmem:[%s5 + $0x20] sm:$0xff]
  %v1869 = vld [vmem:[%s5 + $0x28] sm:$0xff]
  %v1870 = vld [vmem:[%s5 + $0x30] sm:$0xff]
  %v1871 = vld [vmem:[%s5 + $0x38] sm:$0xff]
  %1872 = vmatpush.msra.mxu0 0.0
  %1873 = vmatpush.msra.mxu0 0.0
  %1874 = vmatpush.msra.mxu0 0.0
  %1875 = vmatpush.msra.mxu0 0.0
  %1876 = vmatpush.msra.mxu0 0.0
  %1877 = vmatpush.msra.mxu0 0.0
  %1878 = vmatpush.msra.mxu0 0.0
  %1879 = vmatpush.msra.mxu0 0.0
  %1880 = vmatpush.msra.mxu0 0.0
  %1881 = vmatpush.msra.mxu0 0.0
  %1882 = vmatpush.msra.mxu0 0.0
  %1883 = vmatpush.msra.mxu0 0.0
  %1884 = vmatpush.msra.mxu0 %v1871
  %1885 = vmatpush.msra.mxu0 %v1870
  %1886 = vmatpush.msra.mxu0 %v1869
  %1887 = vmatpush.msra.mxu0 %v1868
  %1888 = vmatmul.f32.gmra.mxu0 %v1774
  %v1889 = vpop.f32.mrf.mxu0
  %v1890 = vadd.f32 0.0, %v1889
  %1891 = vdwg.mxu0
  %v1893 = vsel %vm44, %v1863, 0
  %1895 = vmatpush.msra.mxu0 0.0
  %1896 = vmatpush.msra.mxu0 0.0
  %1897 = vmatpush.msra.mxu0 0.0
  %1898 = vmatpush.msra.mxu0 0.0
  %1899 = vmatpush.msra.mxu0 0.0
  %1900 = vmatpush.msra.mxu0 0.0
  %1901 = vmatpush.msra.mxu0 0.0
  %1902 = vmatpush.msra.mxu0 0.0
  %1903 = vmatpush.msra.mxu0 0.0
  %1904 = vmatpush.msra.mxu0 0.0
  %1905 = vmatpush.msra.mxu0 0.0
  %1906 = vmatpush.msra.mxu0 0.0
  %1907 = vmatpush.msra.mxu0 %v1867
  %1908 = vmatpush.msra.mxu0 %v1866
  %1909 = vmatpush.msra.mxu0 %v1865
  %1910 = vmatpush.msra.mxu0 %v1864
  %1911 = vmatmul.f32.gmra.mxu0 %v1893
  %v1912 = vpop.f32.mrf.mxu0
  %v1913 = vadd.f32 %v1890, %v1912
  %1914 = vdwg.mxu0
  %v1915 = vadd.f32 %v1913, %v1156
  %v1916 = vxor.u32 %v1915, 2147483648
  %v1917 = vmul.f32 %v1916, 1.442695
  %v1918 = vpow.pop %v1917
  %v1919 = vadd.f32 %v1918, 1.0
  %v1920 = vrcp.pop %v1919
  %v1921 = vmul.f32 %v1919, %v1920
  %v1922 = vsub.f32 1.0, %v1921
  %v1923 = vmul.f32 %v1920, %v1922
  %v1924 = vadd.f32 %v1920, %v1923
  %vm1925 = vweird.f32 %v1919
  %vm1926 = vweird.f32 %v1920
  %vm1927 = vmor %vm1925, %vm1926
  %v1928 = vsel %vm1927, %v1920, %v1924
  %v1929 = vand.u32 2147483647, %v1919
  %vm1930 = vcmp.eq.f32.partialorder %v1929, 8.507059e+37
  %v1931 = vand.u32 %v1919, 2147483648
  %v1932 = vor.u32 1.1754944e-38, %v1931
  %v1933 = vsel %vm1930, %v1932, %v1928
  %v1934 = vmul.f32 1.0, %v1933
  %v1935 = vmul.f32 %v1934, 2.0
  %v1936 = vsub.f32 %v1935, 1.0
  %v1937 = vmul.f32 %v1934, %v1736
  %1939 = vrot.lane.b32.xlu0 %v1936, 64
  %v1940 = vpop.permute.xlu0 %1939
  %v1942 = vmul.f32 %v1934, %v1940
  %1944 = vrot.lane.b32.xlu0 %v1942, 32
  %v1945 = vpop.permute.xlu0 %1944
  %v1947 = vadd.f32 %v1937, %v1945
  %v1948 = vtanh.pop %v1947
  %1950 = vrot.lane.b32.xlu0 %v1948, 64
  %v1951 = vpop.permute.xlu0 %1950
  %v1953 = vmul.f32 %v1934, %v1951
  %v1954 = vld [vmem:[%s1197] sm:$0xff]
  %v1955 = vld [vmem:[%s1197 + $0x8] sm:$0xff]
  %v1956 = vld [vmem:[%s1197 + $0x10] sm:$0xff]
  %v1957 = vld [vmem:[%s1197 + $0x18] sm:$0xff]
  %v1958 = vld [vmem:[%s1197 + $0x20] sm:$0xff]
  %v1959 = vld [vmem:[%s1197 + $0x28] sm:$0xff]
  %v1960 = vld [vmem:[%s1197 + $0x30] sm:$0xff]
  %v1961 = vld [vmem:[%s1197 + $0x38] sm:$0xff]
  %1962 = vmatpush.msra.mxu0 0.0
  %1963 = vmatpush.msra.mxu0 0.0
  %1964 = vmatpush.msra.mxu0 0.0
  %1965 = vmatpush.msra.mxu0 0.0
  %1966 = vmatpush.msra.mxu0 0.0
  %1967 = vmatpush.msra.mxu0 0.0
  %1968 = vmatpush.msra.mxu0 0.0
  %1969 = vmatpush.msra.mxu0 0.0
  %1970 = vmatpush.msra.mxu0 0.0
  %1971 = vmatpush.msra.mxu0 0.0
  %1972 = vmatpush.msra.mxu0 0.0
  %1973 = vmatpush.msra.mxu0 0.0
  %1974 = vmatpush.msra.mxu0 %v1961
  %1975 = vmatpush.msra.mxu0 %v1960
  %1976 = vmatpush.msra.mxu0 %v1959
  %1977 = vmatpush.msra.mxu0 %v1958
  %1978 = vmatmul.f32.gmra.mxu0 %v1838
  %v1979 = vpop.f32.mrf.mxu0
  %v1980 = vadd.f32 0.0, %v1979
  %1981 = vdwg.mxu0
  %1983 = vrot.lane.b32.xlu0 %v1953, 32
  %v1984 = vpop.permute.xlu0 %1983
  %v1985 = vsel %vm44, %v1984, 0
  %1987 = vmatpush.msra.mxu0 0.0
  %1988 = vmatpush.msra.mxu0 0.0
  %1989 = vmatpush.msra.mxu0 0.0
  %1990 = vmatpush.msra.mxu0 0.0
  %1991 = vmatpush.msra.mxu0 0.0
  %1992 = vmatpush.msra.mxu0 0.0
  %1993 = vmatpush.msra.mxu0 0.0
  %1994 = vmatpush.msra.mxu0 0.0
  %1995 = vmatpush.msra.mxu0 0.0
  %1996 = vmatpush.msra.mxu0 0.0
  %1997 = vmatpush.msra.mxu0 0.0
  %1998 = vmatpush.msra.mxu0 0.0
  %1999 = vmatpush.msra.mxu0 %v1957
  %2000 = vmatpush.msra.mxu0 %v1956
  %2001 = vmatpush.msra.mxu0 %v1955
  %2002 = vmatpush.msra.mxu0 %v1954
  %2003 = vmatmul.f32.gmra.mxu0 %v1985
  %v2004 = vpop.f32.mrf.mxu0
  %v2005 = vadd.f32 %v1980, %v2004
  %2006 = vdwg.mxu0
  %v2007 = vadd.f32 %v2005, %v1257
  %v2008 = vxor.u32 %v2007, 2147483648
  %v2009 = vmul.f32 %v2008, 1.442695
  %v2010 = vpow.pop %v2009
  %v2011 = vadd.f32 %v2010, 1.0
  %v2012 = vrcp.pop %v2011
  %v2013 = vmul.f32 %v2011, %v2012
  %v2014 = vsub.f32 1.0, %v2013
  %v2015 = vmul.f32 %v2012, %v2014
  %v2016 = vadd.f32 %v2012, %v2015
  %vm2017 = vweird.f32 %v2011
  %vm2018 = vweird.f32 %v2012
  %vm2019 = vmor %vm2017, %vm2018
  %v2020 = vsel %vm2019, %v2012, %v2016
  %v2021 = vand.u32 2147483647, %v2011
  %vm2022 = vcmp.eq.f32.partialorder %v2021, 8.507059e+37
  %v2023 = vand.u32 %v2011, 2147483648
  %v2024 = vor.u32 1.1754944e-38, %v2023
  %v2025 = vsel %vm2022, %v2024, %v2020
  %v2026 = vmul.f32 1.0, %v2025
  %v2027 = vmul.f32 %v2026, 2.0
  %v2028 = vsub.f32 %v2027, 1.0
  %v2029 = vmul.f32 %v2026, %v1828
  %2031 = vrot.lane.b32.xlu0 %v2028, 64
  %v2032 = vpop.permute.xlu0 %2031
  %v2034 = vmul.f32 %v2026, %v2032
  %2036 = vrot.lane.b32.xlu0 %v2034, 32
  %v2037 = vpop.permute.xlu0 %2036
  %v2039 = vadd.f32 %v2029, %v2037
  %v2040 = vtanh.pop %v2039
  %2042 = vrot.lane.b32.xlu0 %v2040, 64
  %v2043 = vpop.permute.xlu0 %2042
  %v2045 = vmul.f32 %v2026, %v2043
  %2047 = vrot.lane.b32.xlu0 %v2045, 32
  %v2048 = vpop.permute.xlu0 %2047
  %v2049 = vsel %vm44, %v2048, 0
  %2051 = vmatpush.msra.mxu0 0.0
  %2052 = vmatpush.msra.mxu0 0.0
  %2053 = vmatpush.msra.mxu0 0.0
  %2054 = vmatpush.msra.mxu0 0.0
  %2055 = vmatpush.msra.mxu0 0.0
  %2056 = vmatpush.msra.mxu0 0.0
  %2057 = vmatpush.msra.mxu0 0.0
  %2058 = vmatpush.msra.mxu0 0.0
  %2059 = vmatpush.msra.mxu0 0.0
  %2060 = vmatpush.msra.mxu0 0.0
  %2061 = vmatpush.msra.mxu0 0.0
  %2062 = vmatpush.msra.mxu0 0.0
  %2063 = vmatpush.msra.mxu0 %v1100
  %2064 = vmatpush.msra.mxu0 %v1099
  %2065 = vmatpush.msra.mxu0 %v1098
  %2066 = vmatpush.msra.mxu0 %v1097
  %2067 = vmatmul.f32.gmra.mxu0 %v2049
  %v2068 = vpop.f32.mrf.mxu0
  %v2069 = vadd.f32 %v1299, %v2068
  %2070 = vdwg.mxu0
  %s2071 = scalar_lea.vmem %s9, 32
  %2072 = vst [vmem:[%s2071] sm:$0xff] %v2069
  %s2073 = scalar_lea.vmem %s1, 32
  %v2074 = vld [vmem:[%s2073] sm:$0xff]
  %v2075 = vld [vmem:[%s5] sm:$0xff]
  %v2076 = vld [vmem:[%s5 + $0x8] sm:$0xff]
  %v2077 = vld [vmem:[%s5 + $0x10] sm:$0xff]
  %v2078 = vld [vmem:[%s5 + $0x18] sm:$0xff]
  %v2079 = vld [vmem:[%s5 + $0x20] sm:$0xff]
  %v2080 = vld [vmem:[%s5 + $0x28] sm:$0xff]
  %v2081 = vld [vmem:[%s5 + $0x30] sm:$0xff]
  %v2082 = vld [vmem:[%s5 + $0x38] sm:$0xff]
  %2083 = vmatpush.msra.mxu0 0.0
  %2084 = vmatpush.msra.mxu0 0.0
  %2085 = vmatpush.msra.mxu0 0.0
  %2086 = vmatpush.msra.mxu0 0.0
  %2087 = vmatpush.msra.mxu0 0.0
  %2088 = vmatpush.msra.mxu0 0.0
  %2089 = vmatpush.msra.mxu0 0.0
  %2090 = vmatpush.msra.mxu0 0.0
  %2091 = vmatpush.msra.mxu0 0.0
  %2092 = vmatpush.msra.mxu0 0.0
  %2093 = vmatpush.msra.mxu0 0.0
  %2094 = vmatpush.msra.mxu0 0.0
  %2095 = vmatpush.msra.mxu0 %v2082
  %2096 = vmatpush.msra.mxu0 %v2081
  %2097 = vmatpush.msra.mxu0 %v2080
  %2098 = vmatpush.msra.mxu0 %v2079
  %2099 = vmatmul.f32.gmra.mxu0 %v1985
  %v2100 = vpop.f32.mrf.mxu0
  %v2101 = vadd.f32 0.0, %v2100
  %2102 = vdwg.mxu0
  %v2104 = vsel %vm44, %v2074, 0
  %2106 = vmatpush.msra.mxu0 0.0
  %2107 = vmatpush.msra.mxu0 0.0
  %2108 = vmatpush.msra.mxu0 0.0
  %2109 = vmatpush.msra.mxu0 0.0
  %2110 = vmatpush.msra.mxu0 0.0
  %2111 = vmatpush.msra.mxu0 0.0
  %2112 = vmatpush.msra.mxu0 0.0
  %2113 = vmatpush.msra.mxu0 0.0
  %2114 = vmatpush.msra.mxu0 0.0
  %2115 = vmatpush.msra.mxu0 0.0
  %2116 = vmatpush.msra.mxu0 0.0
  %2117 = vmatpush.msra.mxu0 0.0
  %2118 = vmatpush.msra.mxu0 %v2078
  %2119 = vmatpush.msra.mxu0 %v2077
  %2120 = vmatpush.msra.mxu0 %v2076
  %2121 = vmatpush.msra.mxu0 %v2075
  %2122 = vmatmul.f32.gmra.mxu0 %v2104
  %v2123 = vpop.f32.mrf.mxu0
  %v2124 = vadd.f32 %v2101, %v2123
  %2125 = vdwg.mxu0
  %v2126 = vadd.f32 %v2124, %v1156
  %v2127 = vxor.u32 %v2126, 2147483648
  %v2128 = vmul.f32 %v2127, 1.442695
  %v2129 = vpow.pop %v2128
  %v2130 = vadd.f32 %v2129, 1.0
  %v2131 = vrcp.pop %v2130
  %v2132 = vmul.f32 %v2130, %v2131
  %v2133 = vsub.f32 1.0, %v2132
  %v2134 = vmul.f32 %v2131, %v2133
  %v2135 = vadd.f32 %v2131, %v2134
  %vm2136 = vweird.f32 %v2130
  %vm2137 = vweird.f32 %v2131
  %vm2138 = vmor %vm2136, %vm2137
  %v2139 = vsel %vm2138, %v2131, %v2135
  %v2140 = vand.u32 2147483647, %v2130
  %vm2141 = vcmp.eq.f32.partialorder %v2140, 8.507059e+37
  %v2142 = vand.u32 %v2130, 2147483648
  %v2143 = vor.u32 1.1754944e-38, %v2142
  %v2144 = vsel %vm2141, %v2143, %v2139
  %v2145 = vmul.f32 1.0, %v2144
  %v2146 = vmul.f32 %v2145, 2.0
  %v2147 = vsub.f32 %v2146, 1.0
  %v2148 = vmul.f32 %v2145, %v1947
  %2150 = vrot.lane.b32.xlu0 %v2147, 64
  %v2151 = vpop.permute.xlu0 %2150
  %v2153 = vmul.f32 %v2145, %v2151
  %2155 = vrot.lane.b32.xlu0 %v2153, 32
  %v2156 = vpop.permute.xlu0 %2155
  %v2158 = vadd.f32 %v2148, %v2156
  %v2159 = vtanh.pop %v2158
  %2161 = vrot.lane.b32.xlu0 %v2159, 64
  %v2162 = vpop.permute.xlu0 %2161
  %v2164 = vmul.f32 %v2145, %v2162
  %v2165 = vld [vmem:[%s1197] sm:$0xff]
  %v2166 = vld [vmem:[%s1197 + $0x8] sm:$0xff]
  %v2167 = vld [vmem:[%s1197 + $0x10] sm:$0xff]
  %v2168 = vld [vmem:[%s1197 + $0x18] sm:$0xff]
  %v2169 = vld [vmem:[%s1197 + $0x20] sm:$0xff]
  %v2170 = vld [vmem:[%s1197 + $0x28] sm:$0xff]
  %v2171 = vld [vmem:[%s1197 + $0x30] sm:$0xff]
  %v2172 = vld [vmem:[%s1197 + $0x38] sm:$0xff]
  %2173 = vmatpush.msra.mxu0 0.0
  %2174 = vmatpush.msra.mxu0 0.0
  %2175 = vmatpush.msra.mxu0 0.0
  %2176 = vmatpush.msra.mxu0 0.0
  %2177 = vmatpush.msra.mxu0 0.0
  %2178 = vmatpush.msra.mxu0 0.0
  %2179 = vmatpush.msra.mxu0 0.0
  %2180 = vmatpush.msra.mxu0 0.0
  %2181 = vmatpush.msra.mxu0 0.0
  %2182 = vmatpush.msra.mxu0 0.0
  %2183 = vmatpush.msra.mxu0 0.0
  %2184 = vmatpush.msra.mxu0 0.0
  %2185 = vmatpush.msra.mxu0 %v2172
  %2186 = vmatpush.msra.mxu0 %v2171
  %2187 = vmatpush.msra.mxu0 %v2170
  %2188 = vmatpush.msra.mxu0 %v2169
  %2189 = vmatmul.f32.gmra.mxu0 %v2049
  %v2190 = vpop.f32.mrf.mxu0
  %v2191 = vadd.f32 0.0, %v2190
  %2192 = vdwg.mxu0
  %2194 = vrot.lane.b32.xlu0 %v2164, 32
  %v2195 = vpop.permute.xlu0 %2194
  %v2196 = vsel %vm44, %v2195, 0
  %2198 = vmatpush.msra.mxu0 0.0
  %2199 = vmatpush.msra.mxu0 0.0
  %2200 = vmatpush.msra.mxu0 0.0
  %2201 = vmatpush.msra.mxu0 0.0
  %2202 = vmatpush.msra.mxu0 0.0
  %2203 = vmatpush.msra.mxu0 0.0
  %2204 = vmatpush.msra.mxu0 0.0
  %2205 = vmatpush.msra.mxu0 0.0
  %2206 = vmatpush.msra.mxu0 0.0
  %2207 = vmatpush.msra.mxu0 0.0
  %2208 = vmatpush.msra.mxu0 0.0
  %2209 = vmatpush.msra.mxu0 0.0
  %2210 = vmatpush.msra.mxu0 %v2168
  %2211 = vmatpush.msra.mxu0 %v2167
  %2212 = vmatpush.msra.mxu0 %v2166
  %2213 = vmatpush.msra.mxu0 %v2165
  %2214 = vmatmul.f32.gmra.mxu0 %v2196
  %v2215 = vpop.f32.mrf.mxu0
  %v2216 = vadd.f32 %v2191, %v2215
  %2217 = vdwg.mxu0
  %v2218 = vadd.f32 %v2216, %v1257
  %v2219 = vxor.u32 %v2218, 2147483648
  %v2220 = vmul.f32 %v2219, 1.442695
  %v2221 = vpow.pop %v2220
  %v2222 = vadd.f32 %v2221, 1.0
  %v2223 = vrcp.pop %v2222
  %v2224 = vmul.f32 %v2222, %v2223
  %v2225 = vsub.f32 1.0, %v2224
  %v2226 = vmul.f32 %v2223, %v2225
  %v2227 = vadd.f32 %v2223, %v2226
  %vm2228 = vweird.f32 %v2222
  %vm2229 = vweird.f32 %v2223
  %vm2230 = vmor %vm2228, %vm2229
  %v2231 = vsel %vm2230, %v2223, %v2227
  %v2232 = vand.u32 2147483647, %v2222
  %vm2233 = vcmp.eq.f32.partialorder %v2232, 8.507059e+37
  %v2234 = vand.u32 %v2222, 2147483648
  %v2235 = vor.u32 1.1754944e-38, %v2234
  %v2236 = vsel %vm2233, %v2235, %v2231
  %v2237 = vmul.f32 1.0, %v2236
  %v2238 = vmul.f32 %v2237, 2.0
  %v2239 = vsub.f32 %v2238, 1.0
  %v2240 = vmul.f32 %v2237, %v2039
  %2242 = vrot.lane.b32.xlu0 %v2239, 64
  %v2243 = vpop.permute.xlu0 %2242
  %v2245 = vmul.f32 %v2237, %v2243
  %2247 = vrot.lane.b32.xlu0 %v2245, 32
  %v2248 = vpop.permute.xlu0 %2247
  %v2250 = vadd.f32 %v2240, %v2248
  %v2251 = vtanh.pop %v2250
  %2253 = vrot.lane.b32.xlu0 %v2251, 64
  %v2254 = vpop.permute.xlu0 %2253
  %v2256 = vmul.f32 %v2237, %v2254
  %2258 = vrot.lane.b32.xlu0 %v2256, 32
  %v2259 = vpop.permute.xlu0 %2258
  %v2260 = vsel %vm44, %v2259, 0
  %2262 = vmatpush.msra.mxu0 0.0
  %2263 = vmatpush.msra.mxu0 0.0
  %2264 = vmatpush.msra.mxu0 0.0
  %2265 = vmatpush.msra.mxu0 0.0
  %2266 = vmatpush.msra.mxu0 0.0
  %2267 = vmatpush.msra.mxu0 0.0
  %2268 = vmatpush.msra.mxu0 0.0
  %2269 = vmatpush.msra.mxu0 0.0
  %2270 = vmatpush.msra.mxu0 0.0
  %2271 = vmatpush.msra.mxu0 0.0
  %2272 = vmatpush.msra.mxu0 0.0
  %2273 = vmatpush.msra.mxu0 0.0
  %2274 = vmatpush.msra.mxu0 %v1100
  %2275 = vmatpush.msra.mxu0 %v1099
  %2276 = vmatpush.msra.mxu0 %v1098
  %2277 = vmatpush.msra.mxu0 %v1097
  %2278 = vmatmul.f32.gmra.mxu0 %v2260
  %v2279 = vpop.f32.mrf.mxu0
  %v2280 = vadd.f32 %v1299, %v2279
  %2281 = vdwg.mxu0
  %s2282 = scalar_lea.vmem %s9, 40
  %2283 = vst [vmem:[%s2282] sm:$0xff] %v2280
  %2284 = vmax.xlane.f32.xlu0 %v2280
  %v2285 = vpop.xlane.xlu0 %2284
  %vm2286 = vcmp.eq.f32.partialorder %v2280, %v2285
  %v2287 = vsel %vm2286, %v1329, 128
  %v2288 = vand.u32 %v2287, 65535
  %v2289 = vshra.s32 %v2287, 16
  %v2290 = vcvt.s32.f32 %v2288
  %v2291 = vcvt.s32.f32 %v2289
  %2292 = vmin.xlane.f32.xlu0 %v2291
  %v2293 = vpop.xlane.xlu0 %2292
  %vm2294 = vcmp.eq.f32.partialorder %v2291, %v2293
  %v2295 = vsel %vm2294, %v2290, inf
  %2296 = vmin.xlane.f32.xlu0 %v2295
  %v2297 = vpop.xlane.xlu0 %2296
  %v2298 = vcvt.f32.s32 %v2297
  %v2299 = vcvt.f32.s32 %v2293
  %v2300 = vshll.u32 %v2299, 16
  %v2301 = vadd.s32 %v2300, %v2298
  %vm2302 = vcmp.eq.s32.totalorder %v1329, %v2301
  %v2303 = vsel %vm2302, 1, 0
  %v2304 = vcvt.s32.f32 %v2303
  %v2305 = vld [vmem:[%s2] sm:$0xff]
  %v2306 = vld [vmem:[%s2 + $0x8] sm:$0xff]
  %v2307 = vld [vmem:[%s2 + $0x10] sm:$0xff]
  %v2308 = vld [vmem:[%s2 + $0x18] sm:$0xff]
  %v2309 = vld [vmem:[%s2 + $0x20] sm:$0xff]
  %v2310 = vld [vmem:[%s2 + $0x28] sm:$0xff]
  %v2311 = vld [vmem:[%s2 + $0x30] sm:$0xff]
  %v2312 = vld [vmem:[%s2 + $0x38] sm:$0xff]
  %v2313 = vld [vmem:[%s2 + $0x40] sm:$0xff]
  %v2314 = vld [vmem:[%s2 + $0x48] sm:$0xff]
  %v2315 = vld [vmem:[%s2 + $0x50] sm:$0xff]
  %v2316 = vld [vmem:[%s2 + $0x58] sm:$0xff]
  %v2317 = vld [vmem:[%s2 + $0x60] sm:$0xff]
  %v2318 = vld [vmem:[%s2 + $0x68] sm:$0xff]
  %v2319 = vld [vmem:[%s2 + $0x70] sm:$0xff]
  %v2320 = vld [vmem:[%s2 + $0x78] sm:$0xff]
  %2321 = vmatpush.msra.mxu0 %v2320
  %2322 = vmatpush.msra.mxu0 %v2319
  %2323 = vmatpush.msra.mxu0 %v2318
  %2324 = vmatpush.msra.mxu0 %v2317
  %2325 = vmatpush.msra.mxu0 %v2316
  %2326 = vmatpush.msra.mxu0 %v2315
  %2327 = vmatpush.msra.mxu0 %v2314
  %2328 = vmatpush.msra.mxu0 %v2313
  %2329 = vmatpush.msra.mxu0 %v2312
  %2330 = vmatpush.msra.mxu0 %v2311
  %2331 = vmatpush.msra.mxu0 %v2310
  %2332 = vmatpush.msra.mxu0 %v2309
  %2333 = vmatpush.msra.mxu0 %v2308
  %2334 = vmatpush.msra.mxu0 %v2307
  %2335 = vmatpush.msra.mxu0 %v2306
  %2336 = vmatpush.msra.mxu0 %v2305
  %2337 = vmatmul.f32.gmra.mxu0 %v2304
  %v2338 = vpop.f32.mrf.mxu0
  %v2339 = vadd.f32 0.0, %v2338
  %2340 = vdwg.mxu0
  %v2341 = vld [vmem:[%s5] sm:$0xff]
  %v2342 = vld [vmem:[%s5 + $0x8] sm:$0xff]
  %v2343 = vld [vmem:[%s5 + $0x10] sm:$0xff]
  %v2344 = vld [vmem:[%s5 + $0x18] sm:$0xff]
  %v2345 = vld [vmem:[%s5 + $0x20] sm:$0xff]
  %v2346 = vld [vmem:[%s5 + $0x28] sm:$0xff]
  %v2347 = vld [vmem:[%s5 + $0x30] sm:$0xff]
  %v2348 = vld [vmem:[%s5 + $0x38] sm:$0xff]
  %2349 = vmatpush.msra.mxu0 0.0
  %2350 = vmatpush.msra.mxu0 0.0
  %2351 = vmatpush.msra.mxu0 0.0
  %2352 = vmatpush.msra.mxu0 0.0
  %2353 = vmatpush.msra.mxu0 0.0
  %2354 = vmatpush.msra.mxu0 0.0
  %2355 = vmatpush.msra.mxu0 0.0
  %2356 = vmatpush.msra.mxu0 0.0
  %2357 = vmatpush.msra.mxu0 0.0
  %2358 = vmatpush.msra.mxu0 0.0
  %2359 = vmatpush.msra.mxu0 0.0
  %2360 = vmatpush.msra.mxu0 0.0
  %2361 = vmatpush.msra.mxu0 %v2348
  %2362 = vmatpush.msra.mxu0 %v2347
  %2363 = vmatpush.msra.mxu0 %v2346
  %2364 = vmatpush.msra.mxu0 %v2345
  %2365 = vmatmul.f32.gmra.mxu0 %v2196
  %v2366 = vpop.f32.mrf.mxu0
  %v2367 = vadd.f32 0.0, %v2366
  %2368 = vdwg.mxu0
  %v2370 = vsel %vm44, %v2339, 0
  %2372 = vmatpush.msra.mxu0 0.0
  %2373 = vmatpush.msra.mxu0 0.0
  %2374 = vmatpush.msra.mxu0 0.0
  %2375 = vmatpush.msra.mxu0 0.0
  %2376 = vmatpush.msra.mxu0 0.0
  %2377 = vmatpush.msra.mxu0 0.0
  %2378 = vmatpush.msra.mxu0 0.0
  %2379 = vmatpush.msra.mxu0 0.0
  %2380 = vmatpush.msra.mxu0 0.0
  %2381 = vmatpush.msra.mxu0 0.0
  %2382 = vmatpush.msra.mxu0 0.0
  %2383 = vmatpush.msra.mxu0 0.0
  %2384 = vmatpush.msra.mxu0 %v2344
  %2385 = vmatpush.msra.mxu0 %v2343
  %2386 = vmatpush.msra.mxu0 %v2342
  %2387 = vmatpush.msra.mxu0 %v2341
  %2388 = vmatmul.f32.gmra.mxu0 %v2370
  %v2389 = vpop.f32.mrf.mxu0
  %v2390 = vadd.f32 %v2367, %v2389
  %2391 = vdwg.mxu0
  %v2392 = vadd.f32 %v2390, %v1156
  %v2393 = vxor.u32 %v2392, 2147483648
  %v2394 = vmul.f32 %v2393, 1.442695
  %v2395 = vpow.pop %v2394
  %v2396 = vadd.f32 %v2395, 1.0
  %v2397 = vrcp.pop %v2396
  %v2398 = vmul.f32 %v2396, %v2397
  %v2399 = vsub.f32 1.0, %v2398
  %v2400 = vmul.f32 %v2397, %v2399
  %v2401 = vadd.f32 %v2397, %v2400
  %vm2402 = vweird.f32 %v2396
  %vm2403 = vweird.f32 %v2397
  %vm2404 = vmor %vm2402, %vm2403
  %v2405 = vsel %vm2404, %v2397, %v2401
  %v2406 = vand.u32 2147483647, %v2396
  %vm2407 = vcmp.eq.f32.partialorder %v2406, 8.507059e+37
  %v2408 = vand.u32 %v2396, 2147483648
  %v2409 = vor.u32 1.1754944e-38, %v2408
  %v2410 = vsel %vm2407, %v2409, %v2405
  %v2411 = vmul.f32 1.0, %v2410
  %v2412 = vmul.f32 %v2411, 2.0
  %v2413 = vsub.f32 %v2412, 1.0
  %v2414 = vmul.f32 %v2411, %v2158
  %2416 = vrot.lane.b32.xlu0 %v2413, 64
  %v2417 = vpop.permute.xlu0 %2416
  %v2419 = vmul.f32 %v2411, %v2417
  %2421 = vrot.lane.b32.xlu0 %v2419, 32
  %v2422 = vpop.permute.xlu0 %2421
  %v2424 = vadd.f32 %v2414, %v2422
  %v2425 = vtanh.pop %v2424
  %2427 = vrot.lane.b32.xlu0 %v2425, 64
  %v2428 = vpop.permute.xlu0 %2427
  %v2430 = vmul.f32 %v2411, %v2428
  %v2431 = vld [vmem:[%s1197] sm:$0xff]
  %v2432 = vld [vmem:[%s1197 + $0x8] sm:$0xff]
  %v2433 = vld [vmem:[%s1197 + $0x10] sm:$0xff]
  %v2434 = vld [vmem:[%s1197 + $0x18] sm:$0xff]
  %v2435 = vld [vmem:[%s1197 + $0x20] sm:$0xff]
  %v2436 = vld [vmem:[%s1197 + $0x28] sm:$0xff]
  %v2437 = vld [vmem:[%s1197 + $0x30] sm:$0xff]
  %v2438 = vld [vmem:[%s1197 + $0x38] sm:$0xff]
  %2439 = vmatpush.msra.mxu0 0.0
  %2440 = vmatpush.msra.mxu0 0.0
  %2441 = vmatpush.msra.mxu0 0.0
  %2442 = vmatpush.msra.mxu0 0.0
  %2443 = vmatpush.msra.mxu0 0.0
  %2444 = vmatpush.msra.mxu0 0.0
  %2445 = vmatpush.msra.mxu0 0.0
  %2446 = vmatpush.msra.mxu0 0.0
  %2447 = vmatpush.msra.mxu0 0.0
  %2448 = vmatpush.msra.mxu0 0.0
  %2449 = vmatpush.msra.mxu0 0.0
  %2450 = vmatpush.msra.mxu0 0.0
  %2451 = vmatpush.msra.mxu0 %v2438
  %2452 = vmatpush.msra.mxu0 %v2437
  %2453 = vmatpush.msra.mxu0 %v2436
  %2454 = vmatpush.msra.mxu0 %v2435
  %2455 = vmatmul.f32.gmra.mxu0 %v2260
  %v2456 = vpop.f32.mrf.mxu0
  %v2457 = vadd.f32 0.0, %v2456
  %2458 = vdwg.mxu0
  %2460 = vrot.lane.b32.xlu0 %v2430, 32
  %v2461 = vpop.permute.xlu0 %2460
  %v2462 = vsel %vm44, %v2461, 0
  %2464 = vmatpush.msra.mxu0 0.0
  %2465 = vmatpush.msra.mxu0 0.0
  %2466 = vmatpush.msra.mxu0 0.0
  %2467 = vmatpush.msra.mxu0 0.0
  %2468 = vmatpush.msra.mxu0 0.0
  %2469 = vmatpush.msra.mxu0 0.0
  %2470 = vmatpush.msra.mxu0 0.0
  %2471 = vmatpush.msra.mxu0 0.0
  %2472 = vmatpush.msra.mxu0 0.0
  %2473 = vmatpush.msra.mxu0 0.0
  %2474 = vmatpush.msra.mxu0 0.0
  %2475 = vmatpush.msra.mxu0 0.0
  %2476 = vmatpush.msra.mxu0 %v2434
  %2477 = vmatpush.msra.mxu0 %v2433
  %2478 = vmatpush.msra.mxu0 %v2432
  %2479 = vmatpush.msra.mxu0 %v2431
  %2480 = vmatmul.f32.gmra.mxu0 %v2462
  %v2481 = vpop.f32.mrf.mxu0
  %v2482 = vadd.f32 %v2457, %v2481
  %2483 = vdwg.mxu0
  %v2484 = vadd.f32 %v2482, %v1257
  %v2485 = vxor.u32 %v2484, 2147483648
  %v2486 = vmul.f32 %v2485, 1.442695
  %v2487 = vpow.pop %v2486
  %v2488 = vadd.f32 %v2487, 1.0
  %v2489 = vrcp.pop %v2488
  %v2490 = vmul.f32 %v2488, %v2489
  %v2491 = vsub.f32 1.0, %v2490
  %v2492 = vmul.f32 %v2489, %v2491
  %v2493 = vadd.f32 %v2489, %v2492
  %vm2494 = vweird.f32 %v2488
  %vm2495 = vweird.f32 %v2489
  %vm2496 = vmor %vm2494, %vm2495
  %v2497 = vsel %vm2496, %v2489, %v2493
  %v2498 = vand.u32 2147483647, %v2488
  %vm2499 = vcmp.eq.f32.partialorder %v2498, 8.507059e+37
  %v2500 = vand.u32 %v2488, 2147483648
  %v2501 = vor.u32 1.1754944e-38, %v2500
  %v2502 = vsel %vm2499, %v2501, %v2497
  %v2503 = vmul.f32 1.0, %v2502
  %v2504 = vmul.f32 %v2503, 2.0
  %v2505 = vsub.f32 %v2504, 1.0
  %v2506 = vmul.f32 %v2503, %v2250
  %2508 = vrot.lane.b32.xlu0 %v2505, 64
  %v2509 = vpop.permute.xlu0 %2508
  %v2511 = vmul.f32 %v2503, %v2509
  %2513 = vrot.lane.b32.xlu0 %v2511, 32
  %v2514 = vpop.permute.xlu0 %2513
  %v2516 = vadd.f32 %v2506, %v2514
  %v2517 = vtanh.pop %v2516
  %2519 = vrot.lane.b32.xlu0 %v2517, 64
  %v2520 = vpop.permute.xlu0 %2519
  %v2522 = vmul.f32 %v2503, %v2520
  %2524 = vrot.lane.b32.xlu0 %v2522, 32
  %v2525 = vpop.permute.xlu0 %2524
  %v2526 = vsel %vm44, %v2525, 0
  %2528 = vmatpush.msra.mxu0 0.0
  %2529 = vmatpush.msra.mxu0 0.0
  %2530 = vmatpush.msra.mxu0 0.0
  %2531 = vmatpush.msra.mxu0 0.0
  %2532 = vmatpush.msra.mxu0 0.0
  %2533 = vmatpush.msra.mxu0 0.0
  %2534 = vmatpush.msra.mxu0 0.0
  %2535 = vmatpush.msra.mxu0 0.0
  %2536 = vmatpush.msra.mxu0 0.0
  %2537 = vmatpush.msra.mxu0 0.0
  %2538 = vmatpush.msra.mxu0 0.0
  %2539 = vmatpush.msra.mxu0 0.0
  %2540 = vmatpush.msra.mxu0 %v1100
  %2541 = vmatpush.msra.mxu0 %v1099
  %2542 = vmatpush.msra.mxu0 %v1098
  %2543 = vmatpush.msra.mxu0 %v1097
  %2544 = vmatmul.f32.gmra.mxu0 %v2526
  %v2545 = vpop.f32.mrf.mxu0
  %v2546 = vadd.f32 %v1299, %v2545
  %2547 = vdwg.mxu0
  %s2548 = scalar_lea.vmem %s9, 48
  %2549 = vst [vmem:[%s2548] sm:$0xff] %v2546
  %s2550 = scalar_lea.vmem %s1, 48
  %v2551 = vld [vmem:[%s2550] sm:$0xff]
  %v2552 = vld [vmem:[%s5] sm:$0xff]
  %v2553 = vld [vmem:[%s5 + $0x8] sm:$0xff]
  %v2554 = vld [vmem:[%s5 + $0x10] sm:$0xff]
  %v2555 = vld [vmem:[%s5 + $0x18] sm:$0xff]
  %v2556 = vld [vmem:[%s5 + $0x20] sm:$0xff]
  %v2557 = vld [vmem:[%s5 + $0x28] sm:$0xff]
  %v2558 = vld [vmem:[%s5 + $0x30] sm:$0xff]
  %v2559 = vld [vmem:[%s5 + $0x38] sm:$0xff]
  %2560 = vmatpush.msra.mxu0 0.0
  %2561 = vmatpush.msra.mxu0 0.0
  %2562 = vmatpush.msra.mxu0 0.0
  %2563 = vmatpush.msra.mxu0 0.0
  %2564 = vmatpush.msra.mxu0 0.0
  %2565 = vmatpush.msra.mxu0 0.0
  %2566 = vmatpush.msra.mxu0 0.0
  %2567 = vmatpush.msra.mxu0 0.0
  %2568 = vmatpush.msra.mxu0 0.0
  %2569 = vmatpush.msra.mxu0 0.0
  %2570 = vmatpush.msra.mxu0 0.0
  %2571 = vmatpush.msra.mxu0 0.0
  %2572 = vmatpush.msra.mxu0 %v2559
  %2573 = vmatpush.msra.mxu0 %v2558
  %2574 = vmatpush.msra.mxu0 %v2557
  %2575 = vmatpush.msra.mxu0 %v2556
  %2576 = vmatmul.f32.gmra.mxu0 %v2462
  %v2577 = vpop.f32.mrf.mxu0
  %v2578 = vadd.f32 0.0, %v2577
  %2579 = vdwg.mxu0
  %v2581 = vsel %vm44, %v2551, 0
  %2583 = vmatpush.msra.mxu0 0.0
  %2584 = vmatpush.msra.mxu0 0.0
  %2585 = vmatpush.msra.mxu0 0.0
  %2586 = vmatpush.msra.mxu0 0.0
  %2587 = vmatpush.msra.mxu0 0.0
  %2588 = vmatpush.msra.mxu0 0.0
  %2589 = vmatpush.msra.mxu0 0.0
  %2590 = vmatpush.msra.mxu0 0.0
  %2591 = vmatpush.msra.mxu0 0.0
  %2592 = vmatpush.msra.mxu0 0.0
  %2593 = vmatpush.msra.mxu0 0.0
  %2594 = vmatpush.msra.mxu0 0.0
  %2595 = vmatpush.msra.mxu0 %v2555
  %2596 = vmatpush.msra.mxu0 %v2554
  %2597 = vmatpush.msra.mxu0 %v2553
  %2598 = vmatpush.msra.mxu0 %v2552
  %2599 = vmatmul.f32.gmra.mxu0 %v2581
  %v2600 = vpop.f32.mrf.mxu0
  %v2601 = vadd.f32 %v2578, %v2600
  %2602 = vdwg.mxu0
  %v2603 = vadd.f32 %v2601, %v1156
  %v2604 = vxor.u32 %v2603, 2147483648
  %v2605 = vmul.f32 %v2604, 1.442695
  %v2606 = vpow.pop %v2605
  %v2607 = vadd.f32 %v2606, 1.0
  %v2608 = vrcp.pop %v2607
  %v2609 = vmul.f32 %v2607, %v2608
  %v2610 = vsub.f32 1.0, %v2609
  %v2611 = vmul.f32 %v2608, %v2610
  %v2612 = vadd.f32 %v2608, %v2611
  %vm2613 = vweird.f32 %v2607
  %vm2614 = vweird.f32 %v2608
  %vm2615 = vmor %vm2613, %vm2614
  %v2616 = vsel %vm2615, %v2608, %v2612
  %v2617 = vand.u32 2147483647, %v2607
  %vm2618 = vcmp.eq.f32.partialorder %v2617, 8.507059e+37
  %v2619 = vand.u32 %v2607, 2147483648
  %v2620 = vor.u32 1.1754944e-38, %v2619
  %v2621 = vsel %vm2618, %v2620, %v2616
  %v2622 = vmul.f32 1.0, %v2621
  %v2623 = vmul.f32 %v2622, 2.0
  %v2624 = vsub.f32 %v2623, 1.0
  %v2625 = vmul.f32 %v2622, %v2424
  %2627 = vrot.lane.b32.xlu0 %v2624, 64
  %v2628 = vpop.permute.xlu0 %2627
  %v2630 = vmul.f32 %v2622, %v2628
  %2632 = vrot.lane.b32.xlu0 %v2630, 32
  %v2633 = vpop.permute.xlu0 %2632
  %v2635 = vadd.f32 %v2625, %v2633
  %v2636 = vtanh.pop %v2635
  %2638 = vrot.lane.b32.xlu0 %v2636, 64
  %v2639 = vpop.permute.xlu0 %2638
  %v2641 = vmul.f32 %v2622, %v2639
  %v2642 = vld [vmem:[%s1197] sm:$0xff]
  %v2643 = vld [vmem:[%s1197 + $0x8] sm:$0xff]
  %v2644 = vld [vmem:[%s1197 + $0x10] sm:$0xff]
  %v2645 = vld [vmem:[%s1197 + $0x18] sm:$0xff]
  %v2646 = vld [vmem:[%s1197 + $0x20] sm:$0xff]
  %v2647 = vld [vmem:[%s1197 + $0x28] sm:$0xff]
  %v2648 = vld [vmem:[%s1197 + $0x30] sm:$0xff]
  %v2649 = vld [vmem:[%s1197 + $0x38] sm:$0xff]
  %2650 = vmatpush.msra.mxu0 0.0
  %2651 = vmatpush.msra.mxu0 0.0
  %2652 = vmatpush.msra.mxu0 0.0
  %2653 = vmatpush.msra.mxu0 0.0
  %2654 = vmatpush.msra.mxu0 0.0
  %2655 = vmatpush.msra.mxu0 0.0
  %2656 = vmatpush.msra.mxu0 0.0
  %2657 = vmatpush.msra.mxu0 0.0
  %2658 = vmatpush.msra.mxu0 0.0
  %2659 = vmatpush.msra.mxu0 0.0
  %2660 = vmatpush.msra.mxu0 0.0
  %2661 = vmatpush.msra.mxu0 0.0
  %2662 = vmatpush.msra.mxu0 %v2649
  %2663 = vmatpush.msra.mxu0 %v2648
  %2664 = vmatpush.msra.mxu0 %v2647
  %2665 = vmatpush.msra.mxu0 %v2646
  %2666 = vmatmul.f32.gmra.mxu0 %v2526
  %v2667 = vpop.f32.mrf.mxu0
  %v2668 = vadd.f32 0.0, %v2667
  %2669 = vdwg.mxu0
  %2671 = vrot.lane.b32.xlu0 %v2641, 32
  %v2672 = vpop.permute.xlu0 %2671
  %v2673 = vsel %vm44, %v2672, 0
  %2675 = vmatpush.msra.mxu0 0.0
  %2676 = vmatpush.msra.mxu0 0.0
  %2677 = vmatpush.msra.mxu0 0.0
  %2678 = vmatpush.msra.mxu0 0.0
  %2679 = vmatpush.msra.mxu0 0.0
  %2680 = vmatpush.msra.mxu0 0.0
  %2681 = vmatpush.msra.mxu0 0.0
  %2682 = vmatpush.msra.mxu0 0.0
  %2683 = vmatpush.msra.mxu0 0.0
  %2684 = vmatpush.msra.mxu0 0.0
  %2685 = vmatpush.msra.mxu0 0.0
  %2686 = vmatpush.msra.mxu0 0.0
  %2687 = vmatpush.msra.mxu0 %v2645
  %2688 = vmatpush.msra.mxu0 %v2644
  %2689 = vmatpush.msra.mxu0 %v2643
  %2690 = vmatpush.msra.mxu0 %v2642
  %2691 = vmatmul.f32.gmra.mxu0 %v2673
  %v2692 = vpop.f32.mrf.mxu0
  %v2693 = vadd.f32 %v2668, %v2692
  %2694 = vdwg.mxu0
  %v2695 = vadd.f32 %v2693, %v1257
  %v2696 = vxor.u32 %v2695, 2147483648
  %v2697 = vmul.f32 %v2696, 1.442695
  %v2698 = vpow.pop %v2697
  %v2699 = vadd.f32 %v2698, 1.0
  %v2700 = vrcp.pop %v2699
  %v2701 = vmul.f32 %v2699, %v2700
  %v2702 = vsub.f32 1.0, %v2701
  %v2703 = vmul.f32 %v2700, %v2702
  %v2704 = vadd.f32 %v2700, %v2703
  %vm2705 = vweird.f32 %v2699
  %vm2706 = vweird.f32 %v2700
  %vm2707 = vmor %vm2705, %vm2706
  %v2708 = vsel %vm2707, %v2700, %v2704
  %v2709 = vand.u32 2147483647, %v2699
  %vm2710 = vcmp.eq.f32.partialorder %v2709, 8.507059e+37
  %v2711 = vand.u32 %v2699, 2147483648
  %v2712 = vor.u32 1.1754944e-38, %v2711
  %v2713 = vsel %vm2710, %v2712, %v2708
  %v2714 = vmul.f32 1.0, %v2713
  %v2715 = vmul.f32 %v2714, 2.0
  %v2716 = vsub.f32 %v2715, 1.0
  %v2717 = vmul.f32 %v2714, %v2516
  %2719 = vrot.lane.b32.xlu0 %v2716, 64
  %v2720 = vpop.permute.xlu0 %2719
  %v2722 = vmul.f32 %v2714, %v2720
  %2724 = vrot.lane.b32.xlu0 %v2722, 32
  %v2725 = vpop.permute.xlu0 %2724
  %v2727 = vadd.f32 %v2717, %v2725
  %v2728 = vtanh.pop %v2727
  %2730 = vrot.lane.b32.xlu0 %v2728, 64
  %v2731 = vpop.permute.xlu0 %2730
  %v2733 = vmul.f32 %v2714, %v2731
  %2735 = vrot.lane.b32.xlu0 %v2733, 32
  %v2736 = vpop.permute.xlu0 %2735
  %v2737 = vsel %vm44, %v2736, 0
  %2739 = vmatpush.msra.mxu0 0.0
  %2740 = vmatpush.msra.mxu0 0.0
  %2741 = vmatpush.msra.mxu0 0.0
  %2742 = vmatpush.msra.mxu0 0.0
  %2743 = vmatpush.msra.mxu0 0.0
  %2744 = vmatpush.msra.mxu0 0.0
  %2745 = vmatpush.msra.mxu0 0.0
  %2746 = vmatpush.msra.mxu0 0.0
  %2747 = vmatpush.msra.mxu0 0.0
  %2748 = vmatpush.msra.mxu0 0.0
  %2749 = vmatpush.msra.mxu0 0.0
  %2750 = vmatpush.msra.mxu0 0.0
  %2751 = vmatpush.msra.mxu0 %v1100
  %2752 = vmatpush.msra.mxu0 %v1099
  %2753 = vmatpush.msra.mxu0 %v1098
  %2754 = vmatpush.msra.mxu0 %v1097
  %2755 = vmatmul.f32.gmra.mxu0 %v2737
  %v2756 = vpop.f32.mrf.mxu0
  %v2757 = vadd.f32 %v1299, %v2756
  %2758 = vdwg.mxu0
  %s2759 = scalar_lea.vmem %s9, 56
  %2760 = vst [vmem:[%s2759] sm:$0xff] %v2757
  // Predicated region
  $region38: #{seq2seq_forward.1} parent=0 // pred_check
    _
  $region39: #{seq2seq_forward.1} parent=0 // pred_check_branch
    %2762 = sbr.rel (0) target = $region41
  $region40: #{seq2seq_forward.1} parent=0 // pred_region
    _
  $region41: #{seq2seq_forward.1} parent=0 // pred_fallthru
    _
  // Predicated region
  $region42: #{seq2seq_forward.1} parent=0 // pred_check
    _
  $region43: #{seq2seq_forward.1} parent=0 // pred_check_branch
    %2764 = sbr.rel (0) target = $region45
  $region44: #{seq2seq_forward.1} parent=0 // pred_region
    _
  $region45: #{seq2seq_forward.1} parent=0 // pred_fallthru
    _

</llo_original>
